<compile_context>
chip_gen: v7x
topology: tpu7x:2x2x1
jax: 0.10.0
libtpu: 0.0.40
codegen_flags: <defaults>
</compile_context>

<pallas_src>
import functools

import jax
import jax.numpy as jnp
from jax import lax
from jax.experimental import pallas as pl
from jax.experimental.pallas import tpu as pltpu


# ---------------------------------------------------------------------------
# Kernel: one image per grid step, everything in lane-folded (rows, W*C) form.
# ---------------------------------------------------------------------------
def mbv2_block_kernel(x_ref, w1b_ref, b1_ref, sky_ref, dky_ref, b2_ref,
                      w3b_ref, b3_ref, o_ref, *, shortcut):
    """Refs:
      x_ref   : (1, H, W*Cin)          input image, (w, c) folded into lanes
      w1b_ref : (W*Cin, W*Cmid)        1x1 expand, block-diag over W, BN1 scale folded
      b1_ref  : (1, W*Cmid)            BN1 bias tiled over W
      sky_ref : (3, Hout, H)           per-ky row shift (+H zero-pad, +stride)
      dky_ref : (3, W*Cmid, Wout*Cmid) per-ky depthwise taps as banded channel-diag
                                       matrices (BN2 scale, W zero-pad, W stride folded)
      b2_ref  : (1, Wout*Cmid)
      w3b_ref : (Wout*Cmid, Wout*Cout) 1x1 project, block-diag over Wout, BN3 scale folded
      b3_ref  : (1, Wout*Cout)
      o_ref   : (1, Hout, Wout*Cout)
    """
    x = x_ref[0]                                                     # (H, W*Cin)

    # ---- conv1 (1x1) + BN1 + relu1 (clamp to [0,1]) ----
    h1 = jnp.dot(x, w1b_ref[...], preferred_element_type=jnp.float32)
    h1 = jnp.clip(h1 + b1_ref[...], 0.0, 1.0)                        # (H, W*Cmid)

    # ---- depthwise 3x3 (padding=1, stride folded into sky/dky) + BN2 + relu1 ----
    rows = jnp.dot(sky_ref[0], h1, preferred_element_type=jnp.float32)
    acc = jnp.dot(rows, dky_ref[0], preferred_element_type=jnp.float32)
    for ky in (1, 2):                                                # static unroll
        rows = jnp.dot(sky_ref[ky], h1, preferred_element_type=jnp.float32)
        acc = acc + jnp.dot(rows, dky_ref[ky], preferred_element_type=jnp.float32)
    h2 = jnp.clip(acc + b2_ref[...], 0.0, 1.0)                       # (Hout, Wout*Cmid)

    # ---- conv3 (1x1 projection) + BN3 (+ residual) ----
    y = jnp.dot(h2, w3b_ref[...], preferred_element_type=jnp.float32) + b3_ref[...]
    if shortcut:
        y = y + x                                                    # same folded layout
    o_ref[0] = y.astype(o_ref.dtype)


# ---------------------------------------------------------------------------
# Wrapper-side parameter folding (pure JAX, runs once at trace time).
# ---------------------------------------------------------------------------
def _fold_params(params, H, W, stride, dtype=jnp.float32):
    w1, s1, b1 = params["w1"], params["s1"], params["b1"]    # (Cin,Cmid),(1,Cmid),(1,Cmid)
    wdw, s2, b2 = params["wdw"], params["s2"], params["b2"]  # (9,Cmid), (1,Cmid),(1,Cmid)
    w3, s3, b3 = params["w3"], params["s3"], params["b3"]    # (Cmid,Cout),(1,Cout),(1,Cout)
    Cin, Cmid = w1.shape
    Cout = w3.shape[1]
    Hout = (H - 1) // stride + 1
    Wout = (W - 1) // stride + 1

    # conv1: block-diagonal over W, BN1 scale folded into the weight columns.
    w1s = (w1 * s1).astype(dtype)                                     # (Cin, Cmid)
    eye_w = jnp.eye(W, dtype=dtype)
    w1b = (eye_w[:, None, :, None] * w1s[None, :, None, :]).reshape(W * Cin, W * Cmid)
    b1_t = jnp.tile(b1.astype(dtype), (1, W))                         # (1, W*Cmid)

    # Depthwise: S_ky (row shift / H zero-pad / H stride) and D_ky (W taps / W
    # zero-pad / W stride / BN2 scale, diagonal in channels).
    ho = jnp.arange(Hout)
    hin = jnp.arange(H)
    kys = jnp.arange(3)
    sky = (hin[None, None, :] ==
           (stride * ho[None, :, None] + kys[:, None, None] - 1)).astype(dtype)  # (3,Hout,H)

    wdws = (wdw * s2).astype(dtype).reshape(3, 3, Cmid)               # [ky, kx, c]
    win = jnp.arange(W)
    wo = jnp.arange(Wout)
    kx = win[:, None] - stride * wo[None, :] + 1                      # (W, Wout)
    valid = ((kx >= 0) & (kx <= 2)).astype(dtype)
    kx_c = jnp.clip(kx, 0, 2)
    tapw = wdws[:, kx_c, :] * valid[None, :, :, None]                 # (3, W, Wout, Cmid)
    eye_c = jnp.eye(Cmid, dtype=dtype)
    dky = (tapw[:, :, :, :, None] * eye_c[None, None, None, :, :])    # (3,W,Wout,Cmid,Cmid)
    dky = dky.transpose(0, 1, 3, 2, 4).reshape(3, W * Cmid, Wout * Cmid)
    b2_t = jnp.tile(b2.astype(dtype), (1, Wout))                      # (1, Wout*Cmid)

    # conv3: block-diagonal over Wout, BN3 scale folded.
    w3s = (w3 * s3).astype(dtype)                                     # (Cmid, Cout)
    eye_wo = jnp.eye(Wout, dtype=dtype)
    w3b = (eye_wo[:, None, :, None] * w3s[None, :, None, :]).reshape(Wout * Cmid, Wout * Cout)
    b3_t = jnp.tile(b3.astype(dtype), (1, Wout))                      # (1, Wout*Cout)

    return dict(w1b=w1b, b1=b1_t, sky=sky, dky=dky, b2=b2_t, w3b=w3b, b3=b3_t,
                Hout=Hout, Wout=Wout, Cmid=Cmid, Cout=Cout)


def mobilenetv2_block_pallas(x_nchw, params, *, down_sample=False):
    """x_nchw: (N, Cin, H, W) float32.  Returns (N, Cout, Hout, Wout) float32."""
    N, Cin, H, W = x_nchw.shape
    Cmid = params["w1"].shape[1]
    Cout = params["w3"].shape[1]
    stride = 2 if down_sample else 1
    shortcut = (not down_sample) and (Cin == Cout)

    f = _fold_params(params, H, W, stride)
    Hout, Wout = f["Hout"], f["Wout"]

    # NCHW -> NHWC -> fold (W, C) into the lane axis (done by XLA at the boundary).
    x_f = jnp.transpose(x_nchw, (0, 2, 3, 1)).reshape(N, H, W * Cin)

    kernel = functools.partial(mbv2_block_kernel, shortcut=shortcut)
    # Constant operands: same block every grid step -> stay resident in VMEM.
    rep = lambda shape: pl.BlockSpec(shape, lambda n: (0,) * len(shape))

    out = pl.pallas_call(
        kernel,
        out_shape=jax.ShapeDtypeStruct((N, Hout, Wout * Cout), jnp.float32),
        grid_spec=pltpu.PrefetchScalarGridSpec(
            num_scalar_prefetch=0,
            grid=(N,),
            in_specs=[
                pl.BlockSpec((1, H, W * Cin), lambda n: (n, 0, 0)),   # x (folded)
                rep((W * Cin, W * Cmid)),                             # w1 block-diag
                rep((1, W * Cmid)),                                   # bn1 bias
                rep((3, Hout, H)),                                    # row-shift mats
                rep((3, W * Cmid, Wout * Cmid)),                      # depthwise mats
                rep((1, Wout * Cmid)),                                # bn2 bias
                rep((Wout * Cmid, Wout * Cout)),                      # w3 block-diag
                rep((1, Wout * Cout)),                                # bn3 bias
            ],
            out_specs=pl.BlockSpec((1, Hout, Wout * Cout), lambda n: (n, 0, 0)),
        ),
        compiler_params=pltpu.CompilerParams(
            dimension_semantics=("parallel",),
            vmem_limit_bytes=32 * 1024 * 1024,
        ),
    )(x_f, f["w1b"], f["b1"], f["sky"], f["dky"], f["b2"], f["w3b"], f["b3"])

    # (N, Hout, Wout*Cout) -> NCHW
    return jnp.transpose(out.reshape(N, Hout, Wout, Cout), (0, 3, 1, 2))


# ------------------------ pure-JAX reference (for checking) ------------------------
def mobilenetv2_block_ref(x_nchw, params, *, down_sample=False):
    w1, s1, b1, wdw, s2, b2, w3, s3, b3 = (
        params["w1"], params["s1"], params["b1"], params["wdw"],
        params["s2"], params["b2"], params["w3"], params["s3"], params["b3"])
    Cin = x_nchw.shape[1]
    Cmid = w1.shape[1]
    Cout = w3.shape[1]
    stride = 2 if down_sample else 1
    shortcut = (not down_sample) and (Cin == Cout)

    x = jnp.transpose(x_nchw, (0, 2, 3, 1))                     # NHWC
    dn = ("NHWC", "HWIO", "NHWC")

    y = lax.conv_general_dilated(x, w1.reshape(1, 1, Cin, Cmid),
                                 (1, 1), "VALID", dimension_numbers=dn)
    y = jnp.clip(y * s1[0] + b1[0], 0.0, 1.0)

    y = lax.conv_general_dilated(y, wdw.reshape(3, 3, 1, Cmid),
                                 (stride, stride), ((1, 1), (1, 1)),
                                 dimension_numbers=dn, feature_group_count=Cmid)
    y = jnp.clip(y * s2[0] + b2[0], 0.0, 1.0)

    y = lax.conv_general_dilated(y, w3.reshape(1, 1, Cmid, Cout),
                                 (1, 1), "VALID", dimension_numbers=dn)
    y = y * s3[0] + b3[0]
    if shortcut:
        y = y + x
    return jnp.transpose(y, (0, 3, 1, 2))


def make_params(key, Cin, Cout, expansion=6, eps=1e-5):
    Cmid = Cin * expansion
    ks = jax.random.split(key, 12)

    def bn(kg, kb, km, kv, C):
        gamma = 1.0 + 0.1 * jax.random.normal(kg, (C,), jnp.float32)
        beta = 0.1 * jax.random.normal(kb, (C,), jnp.float32)
        mean = 0.1 * jax.random.normal(km, (C,), jnp.float32)
        var = jax.random.uniform(kv, (C,), jnp.float32, 0.5, 1.5)
        scale = gamma / jnp.sqrt(var + eps)
        bias = beta - mean * scale
        return scale.reshape(1, C), bias.reshape(1, C)

    w1 = 0.3 * jax.random.normal(ks[0], (Cin, Cmid), jnp.float32)
    wdw = 0.3 * jax.random.normal(ks[1], (9, Cmid), jnp.float32)
    w3 = 0.3 * jax.random.normal(ks[2], (Cmid, Cout), jnp.float32)
    s1, b1 = bn(ks[3], ks[4], ks[5], ks[6], Cmid)
    s2, b2 = bn(ks[7], ks[8], ks[9], ks[10], Cmid)
    s3, b3 = bn(ks[11], ks[11], ks[0], ks[1], Cout)
    return dict(w1=w1, s1=s1, b1=b1, wdw=wdw, s2=s2, b2=b2, w3=w3, s3=s3, b3=b3)


if __name__ == "__main__":
    key = jax.random.PRNGKey(0)
    kx_, kp = jax.random.split(key)

    # Small shapes consistent with the module: batch=2, inputChannels=4,
    # outputChannels=4 (=> shortcut path), imageDims=16x16, expansionFactor=6.
    N, Cin, H, W = 2, 4, 16, 16
    Cout = 4
    x = jax.random.normal(kx_, (N, Cin, H, W), jnp.float32)
    params = make_params(kp, Cin, Cout, expansion=6)

    # Residual (stride-1) block.
    out = jax.block_until_ready(mobilenetv2_block_pallas(x, params, down_sample=False))
    ref = mobilenetv2_block_ref(x, params, down_sample=False)
    assert out.shape == (N, Cout, H, W), out.shape
    assert jnp.allclose(out, ref, atol=5e-4, rtol=5e-4), float(jnp.max(jnp.abs(out - ref)))

    # Down-sample (stride-2, no shortcut) block.
    out2 = jax.block_until_ready(mobilenetv2_block_pallas(x, params, down_sample=True))
    ref2 = mobilenetv2_block_ref(x, params, down_sample=True)
    assert out2.shape == (N, Cout, H // 2, W // 2), out2.shape
    assert jnp.allclose(out2, ref2, atol=5e-4, rtol=5e-4), float(jnp.max(jnp.abs(out2 - ref2)))

    print("KERNEL_OK")
</pallas_src>

<mosaic_0001>
module attributes {stable_mosaic.version = 11 : i64} {
  func.func @mbv2_block_kernel(%arg0: i32, %arg1: memref<1x16x64xf32, #tpu.memory_space<vmem>>, %arg2: memref<64x384xf32, #tpu.memory_space<vmem>>, %arg3: memref<1x384xf32, #tpu.memory_space<vmem>>, %arg4: memref<3x16x16xf32, #tpu.memory_space<vmem>>, %arg5: memref<3x384x384xf32, #tpu.memory_space<vmem>>, %arg6: memref<1x384xf32, #tpu.memory_space<vmem>>, %arg7: memref<384x64xf32, #tpu.memory_space<vmem>>, %arg8: memref<1x64xf32, #tpu.memory_space<vmem>>, %arg9: memref<1x16x64xf32, #tpu.memory_space<vmem>>) attributes {dimension_semantics = [#tpu.dimension_semantics<parallel>], iteration_bounds = array<i64: 2>, scalar_prefetch = 0 : i64, scratch_operands = 0 : i64, tpu.core_type = #tpu.core_type<tc>, window_params = [{transform_indices = @transform_0, window_bounds = array<i64: 1, 16, 64>}, {pipeline_mode = #tpu.pipeline_mode<synchronous>, transform_indices = @transform_1, window_bounds = array<i64: 64, 384>}, {pipeline_mode = #tpu.pipeline_mode<synchronous>, transform_indices = @transform_2, window_bounds = array<i64: 1, 384>}, {pipeline_mode = #tpu.pipeline_mode<synchronous>, transform_indices = @transform_3, window_bounds = array<i64: 3, 16, 16>}, {pipeline_mode = #tpu.pipeline_mode<synchronous>, transform_indices = @transform_4, window_bounds = array<i64: 3, 384, 384>}, {pipeline_mode = #tpu.pipeline_mode<synchronous>, transform_indices = @transform_5, window_bounds = array<i64: 1, 384>}, {pipeline_mode = #tpu.pipeline_mode<synchronous>, transform_indices = @transform_6, window_bounds = array<i64: 384, 64>}, {pipeline_mode = #tpu.pipeline_mode<synchronous>, transform_indices = @transform_7, window_bounds = array<i64: 1, 64>}, {transform_indices = @transform_8, window_bounds = array<i64: 1, 16, 64>}]} {
    %c0 = arith.constant 0 : index
    %c0_0 = arith.constant 0 : index
    %c0_1 = arith.constant 0 : index
    %0 = vector.load %arg1[%c0, %c0_0, %c0_1] : memref<1x16x64xf32, #tpu.memory_space<vmem>>, vector<1x16x64xf32>
    %1 = vector.shape_cast %0 : vector<1x16x64xf32> to vector<16x64xf32>
    %c0_2 = arith.constant 0 : index
    %c0_3 = arith.constant 0 : index
    %2 = vector.load %arg2[%c0_2, %c0_3] : memref<64x384xf32, #tpu.memory_space<vmem>>, vector<64x384xf32>
    %cst = arith.constant dense<0.000000e+00> : vector<16x384xf32>
    %3 = tpu.matmul %1, %2, %cst {dimension_numbers = #tpu.dot_dimension_numbers<[1], [0], [0], [1], [0, 0, 1, 1], [], []>} : vector<16x64xf32>, vector<64x384xf32>, vector<16x384xf32> -> vector<16x384xf32>
    %c0_4 = arith.constant 0 : index
    %c0_5 = arith.constant 0 : index
    %4 = vector.load %arg3[%c0_4, %c0_5] : memref<1x384xf32, #tpu.memory_space<vmem>>, vector<1x384xf32>
    %5 = vector.broadcast %4 : vector<1x384xf32> to vector<16x384xf32>
    %6 = arith.addf %3, %5 : vector<16x384xf32>
    %cst_6 = arith.constant 0.000000e+00 : f32
    %cst_7 = arith.constant 1.000000e+00 : f32
    %7 = vector.broadcast %cst_6 : f32 to vector<16x384xf32>
    %8 = arith.maximumf %7, %6 : vector<16x384xf32>
    %9 = vector.broadcast %cst_7 : f32 to vector<16x384xf32>
    %10 = arith.minimumf %9, %8 : vector<16x384xf32>
    %c0_8 = arith.constant 0 : index
    %c0_9 = arith.constant 0 : index
    %c0_10 = arith.constant 0 : index
    %11 = vector.load %arg4[%c0_8, %c0_9, %c0_10] : memref<3x16x16xf32, #tpu.memory_space<vmem>>, vector<1x16x16xf32>
    %12 = vector.shape_cast %11 : vector<1x16x16xf32> to vector<16x16xf32>
    %cst_11 = arith.constant dense<0.000000e+00> : vector<16x384xf32>
    %13 = tpu.matmul %12, %10, %cst_11 {dimension_numbers = #tpu.dot_dimension_numbers<[1], [0], [0], [1], [0, 0, 1, 1], [], []>} : vector<16x16xf32>, vector<16x384xf32>, vector<16x384xf32> -> vector<16x384xf32>
    %c0_12 = arith.constant 0 : index
    %c0_13 = arith.constant 0 : index
    %c0_14 = arith.constant 0 : index
    %14 = vector.load %arg5[%c0_12, %c0_13, %c0_14] : memref<3x384x384xf32, #tpu.memory_space<vmem>>, vector<1x384x384xf32>
    %15 = vector.shape_cast %14 : vector<1x384x384xf32> to vector<384x384xf32>
    %cst_15 = arith.constant dense<0.000000e+00> : vector<16x384xf32>
    %16 = tpu.matmul %13, %15, %cst_15 {dimension_numbers = #tpu.dot_dimension_numbers<[1], [0], [0], [1], [0, 0, 1, 1], [], []>} : vector<16x384xf32>, vector<384x384xf32>, vector<16x384xf32> -> vector<16x384xf32>
    %c1 = arith.constant 1 : index
    %c0_16 = arith.constant 0 : index
    %c0_17 = arith.constant 0 : index
    %17 = vector.load %arg4[%c1, %c0_16, %c0_17] : memref<3x16x16xf32, #tpu.memory_space<vmem>>, vector<1x16x16xf32>
    %18 = vector.shape_cast %17 : vector<1x16x16xf32> to vector<16x16xf32>
    %cst_18 = arith.constant dense<0.000000e+00> : vector<16x384xf32>
    %19 = tpu.matmul %18, %10, %cst_18 {dimension_numbers = #tpu.dot_dimension_numbers<[1], [0], [0], [1], [0, 0, 1, 1], [], []>} : vector<16x16xf32>, vector<16x384xf32>, vector<16x384xf32> -> vector<16x384xf32>
    %c1_19 = arith.constant 1 : index
    %c0_20 = arith.constant 0 : index
    %c0_21 = arith.constant 0 : index
    %20 = vector.load %arg5[%c1_19, %c0_20, %c0_21] : memref<3x384x384xf32, #tpu.memory_space<vmem>>, vector<1x384x384xf32>
    %21 = vector.shape_cast %20 : vector<1x384x384xf32> to vector<384x384xf32>
    %cst_22 = arith.constant dense<0.000000e+00> : vector<16x384xf32>
    %22 = tpu.matmul %19, %21, %cst_22 {dimension_numbers = #tpu.dot_dimension_numbers<[1], [0], [0], [1], [0, 0, 1, 1], [], []>} : vector<16x384xf32>, vector<384x384xf32>, vector<16x384xf32> -> vector<16x384xf32>
    %23 = arith.addf %16, %22 : vector<16x384xf32>
    %c2 = arith.constant 2 : index
    %c0_23 = arith.constant 0 : index
    %c0_24 = arith.constant 0 : index
    %24 = vector.load %arg4[%c2, %c0_23, %c0_24] : memref<3x16x16xf32, #tpu.memory_space<vmem>>, vector<1x16x16xf32>
    %25 = vector.shape_cast %24 : vector<1x16x16xf32> to vector<16x16xf32>
    %cst_25 = arith.constant dense<0.000000e+00> : vector<16x384xf32>
    %26 = tpu.matmul %25, %10, %cst_25 {dimension_numbers = #tpu.dot_dimension_numbers<[1], [0], [0], [1], [0, 0, 1, 1], [], []>} : vector<16x16xf32>, vector<16x384xf32>, vector<16x384xf32> -> vector<16x384xf32>
    %c2_26 = arith.constant 2 : index
    %c0_27 = arith.constant 0 : index
    %c0_28 = arith.constant 0 : index
    %27 = vector.load %arg5[%c2_26, %c0_27, %c0_28] : memref<3x384x384xf32, #tpu.memory_space<vmem>>, vector<1x384x384xf32>
    %28 = vector.shape_cast %27 : vector<1x384x384xf32> to vector<384x384xf32>
    %cst_29 = arith.constant dense<0.000000e+00> : vector<16x384xf32>
    %29 = tpu.matmul %26, %28, %cst_29 {dimension_numbers = #tpu.dot_dimension_numbers<[1], [0], [0], [1], [0, 0, 1, 1], [], []>} : vector<16x384xf32>, vector<384x384xf32>, vector<16x384xf32> -> vector<16x384xf32>
    %30 = arith.addf %23, %29 : vector<16x384xf32>
    %c0_30 = arith.constant 0 : index
    %c0_31 = arith.constant 0 : index
    %31 = vector.load %arg6[%c0_30, %c0_31] : memref<1x384xf32, #tpu.memory_space<vmem>>, vector<1x384xf32>
    %32 = vector.broadcast %31 : vector<1x384xf32> to vector<16x384xf32>
    %33 = arith.addf %30, %32 : vector<16x384xf32>
    %cst_32 = arith.constant 0.000000e+00 : f32
    %cst_33 = arith.constant 1.000000e+00 : f32
    %34 = vector.broadcast %cst_32 : f32 to vector<16x384xf32>
    %35 = arith.maximumf %34, %33 : vector<16x384xf32>
    %36 = vector.broadcast %cst_33 : f32 to vector<16x384xf32>
    %37 = arith.minimumf %36, %35 : vector<16x384xf32>
    %c0_34 = arith.constant 0 : index
    %c0_35 = arith.constant 0 : index
    %38 = vector.load %arg7[%c0_34, %c0_35] : memref<384x64xf32, #tpu.memory_space<vmem>>, vector<384x64xf32>
    %cst_36 = arith.constant dense<0.000000e+00> : vector<16x64xf32>
    %39 = tpu.matmul %37, %38, %cst_36 {dimension_numbers = #tpu.dot_dimension_numbers<[1], [0], [0], [1], [0, 0, 1, 1], [], []>} : vector<16x384xf32>, vector<384x64xf32>, vector<16x64xf32> -> vector<16x64xf32>
    %c0_37 = arith.constant 0 : index
    %c0_38 = arith.constant 0 : index
    %40 = vector.load %arg8[%c0_37, %c0_38] : memref<1x64xf32, #tpu.memory_space<vmem>>, vector<1x64xf32>
    %41 = vector.broadcast %40 : vector<1x64xf32> to vector<16x64xf32>
    %42 = arith.addf %39, %41 : vector<16x64xf32>
    %43 = arith.addf %42, %1 : vector<16x64xf32>
    %c0_39 = arith.constant 0 : index
    %c0_40 = arith.constant 0 : index
    %c0_41 = arith.constant 0 : index
    %44 = vector.load %arg9[%c0_39, %c0_40, %c0_41] : memref<1x16x64xf32, #tpu.memory_space<vmem>>, vector<1x16x64xf32>
    %45 = vector.shape_cast %44 : vector<1x16x64xf32> to vector<16x64xf32>
    %46 = vector.shape_cast %43 : vector<16x64xf32> to vector<1x16x64xf32>
    tpu.vector_store %arg9[%c0_39, %c0_40, %c0_41], %46 {strides = array<i32>} : memref<1x16x64xf32, #tpu.memory_space<vmem>>, vector<1x16x64xf32>,
    return
  }
  func.func @transform_0(%arg0: i32) -> (i32, i32, i32) {
    %c0_i32 = arith.constant 0 : i32
    %c0_i32_0 = arith.constant 0 : i32
    %c0_i32_1 = arith.constant 0 : i32
    return %arg0, %c0_i32, %c0_i32_0 : i32, i32, i32
  }
  func.func @transform_1(%arg0: i32) -> (i32, i32) {
    %c0_i32 = arith.constant 0 : i32
    %c0_i32_0 = arith.constant 0 : i32
    %c0_i32_1 = arith.constant 0 : i32
    return %c0_i32, %c0_i32_0 : i32, i32
  }
  func.func @transform_2(%arg0: i32) -> (i32, i32) {
    %c0_i32 = arith.constant 0 : i32
    %c0_i32_0 = arith.constant 0 : i32
    %c0_i32_1 = arith.constant 0 : i32
    return %c0_i32, %c0_i32_0 : i32, i32
  }
  func.func @transform_3(%arg0: i32) -> (i32, i32, i32) {
    %c0_i32 = arith.constant 0 : i32
    %c0_i32_0 = arith.constant 0 : i32
    %c0_i32_1 = arith.constant 0 : i32
    %c0_i32_2 = arith.constant 0 : i32
    return %c0_i32, %c0_i32_0, %c0_i32_1 : i32, i32, i32
  }
  func.func @transform_4(%arg0: i32) -> (i32, i32, i32) {
    %c0_i32 = arith.constant 0 : i32
    %c0_i32_0 = arith.constant 0 : i32
    %c0_i32_1 = arith.constant 0 : i32
    %c0_i32_2 = arith.constant 0 : i32
    return %c0_i32, %c0_i32_0, %c0_i32_1 : i32, i32, i32
  }
  func.func @transform_5(%arg0: i32) -> (i32, i32) {
    %c0_i32 = arith.constant 0 : i32
    %c0_i32_0 = arith.constant 0 : i32
    %c0_i32_1 = arith.constant 0 : i32
    return %c0_i32, %c0_i32_0 : i32, i32
  }
  func.func @transform_6(%arg0: i32) -> (i32, i32) {
    %c0_i32 = arith.constant 0 : i32
    %c0_i32_0 = arith.constant 0 : i32
    %c0_i32_1 = arith.constant 0 : i32
    return %c0_i32, %c0_i32_0 : i32, i32
  }
  func.func @transform_7(%arg0: i32) -> (i32, i32) {
    %c0_i32 = arith.constant 0 : i32
    %c0_i32_0 = arith.constant 0 : i32
    %c0_i32_1 = arith.constant 0 : i32
    return %c0_i32, %c0_i32_0 : i32, i32
  }
  func.func @transform_8(%arg0: i32) -> (i32, i32, i32) {
    %c0_i32 = arith.constant 0 : i32
    %c0_i32_0 = arith.constant 0 : i32
    %c0_i32_1 = arith.constant 0 : i32
    return %arg0, %c0_i32, %c0_i32_0 : i32, i32, i32
  }
}

</mosaic_0001>

<llo_original>
// kernel: tpu_custom_call.1
$region0: #{tpu_custom_call.1}
  #allocation0 [shape = 'u32[]', space=smem, size = 0x4, offset = 0x4, fixed_abs, tag = 'smem constant byte address 0x4 - core index']
  #allocation1 [shape = 'u32[144,128]{1,0:T(1,128)}', space=vmem, size = 0x12000, scoped, tag = 'internal scratch']
  %s0 = inlined_call_operand.hbm [shape: f32[2,16,64], index: 0, kind: input, shape index: {}]
  %s1 = inlined_call_operand.hbm [shape: f32[64,384], index: 1, kind: input, shape index: {}]
  %s2 = inlined_call_operand.hbm [shape: f32[1,384], index: 2, kind: input, shape index: {}]
  %s3 = inlined_call_operand.hbm [shape: f32[3,16,16], index: 3, kind: input, shape index: {}]
  %s4 = inlined_call_operand.hbm [shape: f32[3,384,384], index: 4, kind: input, shape index: {}]
  %s5 = inlined_call_operand.hbm [shape: f32[1,384], index: 5, kind: input, shape index: {}]
  %s6 = inlined_call_operand.vmem [shape: f32[384,64], index: 6, kind: input, shape index: {}]
  %s7 = inlined_call_operand.hbm [shape: f32[1,64], index: 7, kind: input, shape index: {}]
  %s8 = inlined_call_operand.hbm [shape: f32[2,16,64], index: 8, kind: output, shape index: {}]
  %s9 = sld [smem:[#allocation0]]
  $region93: #{tpu_custom_call.1} parent=0
    _
  %s11 = ssub.s32 1, %s9
  %s12 = scalar_select 0, %s11, %s9
  $region1: #{tpu_custom_call.1} parent=0
    #allocation2 [shape = 'u8[16384]{0}', space=vmem, size = 0x4000, scoped, tag = 'input window, operand 0']
    #allocation3 [shape = 's32[2]{0}', space=sflag, size = 0x8, scoped, tag = 'scoped memory for tpu_custom_call.1']
    #allocation4 [shape = 's32[2]{0}', space=sflag, size = 0x8, scoped, tag = 'scoped memory for tpu_custom_call.1']
    #allocation5 [shape = 'u8[98304]{0}', space=vmem, size = 0x18000, scoped, tag = 'input window, operand 1, single buffered']
    #allocation6 [shape = 's32[1]{0}', space=sflag, size = 0x4, scoped, tag = 'scoped memory for tpu_custom_call.1']
    #allocation7 [shape = 'u8[1536]{0}', space=vmem, size = 0x800, scoped, tag = 'input window, operand 2, single buffered']
    #allocation8 [shape = 'u8[24576]{0}', space=vmem, size = 0x6000, scoped, tag = 'input window, operand 3, single buffered']
    #allocation9 [shape = 's32[1]{0}', space=sflag, size = 0x4, scoped, tag = 'scoped memory for tpu_custom_call.1']
    #allocation10 [shape = 'u8[1769472]{0}', space=vmem, size = 0x1b0000, scoped, tag = 'input window, operand 4, single buffered']
    #allocation11 [shape = 'u8[1536]{0}', space=vmem, size = 0x800, scoped, tag = 'input window, operand 5, single buffered']
    #allocation12 [shape = 's32[1]{0}', space=sflag, size = 0x4, scoped, tag = 'scoped memory for tpu_custom_call.1']
    #allocation13 [shape = 'u8[512]{0}', space=vmem, size = 0x400, scoped, tag = 'input window, operand 7, single buffered']
    #allocation14 [shape = 'u8[16384]{0}', space=vmem, size = 0x4000, scoped, tag = 'output window, operand 0']
    %13 = vsyncpa [#allocation3], 0
    %s14 = scalar_lea.sflag [#allocation3], 1
    %15 = vsyncpa %s14, 0
    %16 = vsyncpa [#allocation6], 0
    %17 = vsyncpa [#allocation9], 0
    %18 = vsyncpa [#allocation12], 0
    %19 = vsyncpa [#allocation4], 0
    %s20 = scalar_lea.sflag [#allocation4], 1
    %21 = vsyncpa %s20, 0
    loop: start=0, step=1, limit=4
    $region2: #{tpu_custom_call.1} parent=1 // loop_pre_header
      _
    $region3: #{tpu_custom_call.1} parent=1 // loop_header
      %s23 = sphi 0, %s27
      %p24 = scmp.ge.s32.totalorder %s23, 4
      %s33 = sphi 0, %s35
      %s36 = sphi 0, %s33
      %s37 = sphi 0, %s36
      %s53 = sphi 0, %s37
      %s57 = sphi 0, %s57
      %s59 = sphi 0, %s57
      %s60 = sphi 0, %s59
      %s74 = sphi 0, %s60
      %s78 = sphi 0, %s78
      %s80 = sphi 0, %s78
      %s81 = sphi 0, %s80
      %s95 = sphi 0, %s81
      %s99 = sphi 0, %s99
      %s101 = sphi 0, %s99
      %s102 = sphi 0, %s101
      %s116 = sphi 0, %s102
      %s120 = sphi 0, %s120
      %s122 = sphi 0, %s120
      %s123 = sphi 0, %s122
      %s137 = sphi 0, %s123
      %s141 = sphi 0, %s141
      %s143 = sphi 0, %s141
      %s144 = sphi 0, %s143
      %s158 = sphi 0, %s144
      %s162 = sphi 0, %s162
      %s164 = sphi 0, %s162
      %s165 = sphi 0, %s164
      %s179 = sphi 0, %s165
      %s183 = sphi 0, %s183
      %s185 = sphi 0, %s183
      %s186 = sphi 0, %s185
      %s200 = sphi 0, %s186
      %s206 = sphi 0, %s208
      %s209 = sphi 0, %s206
      %s210 = sphi 0, %s209
      %s226 = sphi 0, %s210
    $region4: #{tpu_custom_call.1} parent=1 // loop_header_branch
      %26 = sbr.rel (%p24) target = $region8
    $region5: #{tpu_custom_call.1} parent=1 // loop_body
      %s28 = ssub.s32 %s23, 1
      %s29 = ssub.s32 %s23, 2
      %s30 = sadd.s32 %s23, 1
      %s31 = ssub.s32 %s23, %s30
      %p32 = scmp.eq.s32.totalorder %s31, 0
      %s34 = sadd.s32 %s33, 1
      %s35 = scalar_select %p32, %s33, %s34
      %p38 = pneg %p32
      %p39 = scmp.eq.s32.totalorder %s23, 1
      %p40 = por %p38, %p39
      %p41 = scmp.ne.s32.totalorder %s33, %s36
      %p42 = scmp.eq.s32.totalorder %s23, 0
      %p43 = por %p41, %p42
      %p44 = scmp.ne.s32.totalorder %s33, %s36
      %p45 = scmp.eq.s32.totalorder %s28, 1
      %p46 = por %p44, %p45
      %p47 = scmp.ne.s32.totalorder %s36, %s37
      %p48 = scmp.eq.s32.totalorder %s28, 0
      %p49 = por %p47, %p48
      %p50 = scmp.ne.s32.totalorder %s36, %s37
      %p51 = scmp.eq.s32.totalorder %s29, 1
      %p52 = por %p50, %p51
      %p54 = scmp.ne.s32.totalorder %s37, %s53
      %p55 = scmp.eq.s32.totalorder %s29, 0
      %p56 = por %p54, %p55
      %s58 = sadd.s32 %s57, 1
      %p61 = scmp.eq.s32.totalorder %s23, 1
      %p62 = scmp.ne.s32.totalorder %s57, %s59
      %p63 = scmp.eq.s32.totalorder %s23, 0
      %p64 = por %p62, %p63
      %p65 = scmp.ne.s32.totalorder %s57, %s59
      %p66 = scmp.eq.s32.totalorder %s28, 1
      %p67 = por %p65, %p66
      %p68 = scmp.ne.s32.totalorder %s59, %s60
      %p69 = scmp.eq.s32.totalorder %s28, 0
      %p70 = por %p68, %p69
      %p71 = scmp.ne.s32.totalorder %s59, %s60
      %p72 = scmp.eq.s32.totalorder %s29, 1
      %p73 = por %p71, %p72
      %p75 = scmp.ne.s32.totalorder %s60, %s74
      %p76 = scmp.eq.s32.totalorder %s29, 0
      %p77 = por %p75, %p76
      %s79 = sadd.s32 %s78, 1
      %p82 = scmp.eq.s32.totalorder %s23, 1
      %p83 = scmp.ne.s32.totalorder %s78, %s80
      %p84 = scmp.eq.s32.totalorder %s23, 0
      %p85 = por %p83, %p84
      %p86 = scmp.ne.s32.totalorder %s78, %s80
      %p87 = scmp.eq.s32.totalorder %s28, 1
      %p88 = por %p86, %p87
      %p89 = scmp.ne.s32.totalorder %s80, %s81
      %p90 = scmp.eq.s32.totalorder %s28, 0
      %p91 = por %p89, %p90
      %p92 = scmp.ne.s32.totalorder %s80, %s81
      %p93 = scmp.eq.s32.totalorder %s29, 1
      %p94 = por %p92, %p93
      %p96 = scmp.ne.s32.totalorder %s81, %s95
      %p97 = scmp.eq.s32.totalorder %s29, 0
      %p98 = por %p96, %p97
      %s100 = sadd.s32 %s99, 1
      %p103 = scmp.eq.s32.totalorder %s23, 1
      %p104 = scmp.ne.s32.totalorder %s99, %s101
      %p105 = scmp.eq.s32.totalorder %s23, 0
      %p106 = por %p104, %p105
      %p107 = scmp.ne.s32.totalorder %s99, %s101
      %p108 = scmp.eq.s32.totalorder %s28, 1
      %p109 = por %p107, %p108
      %p110 = scmp.ne.s32.totalorder %s101, %s102
      %p111 = scmp.eq.s32.totalorder %s28, 0
      %p112 = por %p110, %p111
      %p113 = scmp.ne.s32.totalorder %s101, %s102
      %p114 = scmp.eq.s32.totalorder %s29, 1
      %p115 = por %p113, %p114
      %p117 = scmp.ne.s32.totalorder %s102, %s116
      %p118 = scmp.eq.s32.totalorder %s29, 0
      %p119 = por %p117, %p118
      %s121 = sadd.s32 %s120, 1
      %p124 = scmp.eq.s32.totalorder %s23, 1
      %p125 = scmp.ne.s32.totalorder %s120, %s122
      %p126 = scmp.eq.s32.totalorder %s23, 0
      %p127 = por %p125, %p126
      %p128 = scmp.ne.s32.totalorder %s120, %s122
      %p129 = scmp.eq.s32.totalorder %s28, 1
      %p130 = por %p128, %p129
      %p131 = scmp.ne.s32.totalorder %s122, %s123
      %p132 = scmp.eq.s32.totalorder %s28, 0
      %p133 = por %p131, %p132
      %p134 = scmp.ne.s32.totalorder %s122, %s123
      %p135 = scmp.eq.s32.totalorder %s29, 1
      %p136 = por %p134, %p135
      %p138 = scmp.ne.s32.totalorder %s123, %s137
      %p139 = scmp.eq.s32.totalorder %s29, 0
      %p140 = por %p138, %p139
      %s142 = sadd.s32 %s141, 1
      %p145 = scmp.eq.s32.totalorder %s23, 1
      %p146 = scmp.ne.s32.totalorder %s141, %s143
      %p147 = scmp.eq.s32.totalorder %s23, 0
      %p148 = por %p146, %p147
      %p149 = scmp.ne.s32.totalorder %s141, %s143
      %p150 = scmp.eq.s32.totalorder %s28, 1
      %p151 = por %p149, %p150
      %p152 = scmp.ne.s32.totalorder %s143, %s144
      %p153 = scmp.eq.s32.totalorder %s28, 0
      %p154 = por %p152, %p153
      %p155 = scmp.ne.s32.totalorder %s143, %s144
      %p156 = scmp.eq.s32.totalorder %s29, 1
      %p157 = por %p155, %p156
      %p159 = scmp.ne.s32.totalorder %s144, %s158
      %p160 = scmp.eq.s32.totalorder %s29, 0
      %p161 = por %p159, %p160
      %s163 = sadd.s32 %s162, 1
      %p166 = scmp.eq.s32.totalorder %s23, 1
      %p167 = scmp.ne.s32.totalorder %s162, %s164
      %p168 = scmp.eq.s32.totalorder %s23, 0
      %p169 = por %p167, %p168
      %p170 = scmp.ne.s32.totalorder %s162, %s164
      %p171 = scmp.eq.s32.totalorder %s28, 1
      %p172 = por %p170, %p171
      %p173 = scmp.ne.s32.totalorder %s164, %s165
      %p174 = scmp.eq.s32.totalorder %s28, 0
      %p175 = por %p173, %p174
      %p176 = scmp.ne.s32.totalorder %s164, %s165
      %p177 = scmp.eq.s32.totalorder %s29, 1
      %p178 = por %p176, %p177
      %p180 = scmp.ne.s32.totalorder %s165, %s179
      %p181 = scmp.eq.s32.totalorder %s29, 0
      %p182 = por %p180, %p181
      %s184 = sadd.s32 %s183, 1
      %p187 = scmp.eq.s32.totalorder %s23, 1
      %p188 = scmp.ne.s32.totalorder %s183, %s185
      %p189 = scmp.eq.s32.totalorder %s23, 0
      %p190 = por %p188, %p189
      %p191 = scmp.ne.s32.totalorder %s183, %s185
      %p192 = scmp.eq.s32.totalorder %s28, 1
      %p193 = por %p191, %p192
      %p194 = scmp.ne.s32.totalorder %s185, %s186
      %p195 = scmp.eq.s32.totalorder %s28, 0
      %p196 = por %p194, %p195
      %p197 = scmp.ne.s32.totalorder %s185, %s186
      %p198 = scmp.eq.s32.totalorder %s29, 1
      %p199 = por %p197, %p198
      %p201 = scmp.ne.s32.totalorder %s186, %s200
      %p202 = scmp.eq.s32.totalorder %s29, 0
      %p203 = por %p201, %p202
      %s204 = ssub.s32 %s23, %s30
      %p205 = scmp.eq.s32.totalorder %s204, 0
      %s207 = sadd.s32 %s206, 1
      %s208 = scalar_select %p205, %s206, %s207
      %p211 = pneg %p205
      %p212 = scmp.eq.s32.totalorder %s23, 1
      %p213 = por %p211, %p212
      %p214 = scmp.ne.s32.totalorder %s206, %s209
      %p215 = scmp.eq.s32.totalorder %s23, 0
      %p216 = por %p214, %p215
      %p217 = scmp.ne.s32.totalorder %s206, %s209
      %p218 = scmp.eq.s32.totalorder %s28, 1
      %p219 = por %p217, %p218
      %p220 = scmp.ne.s32.totalorder %s209, %s210
      %p221 = scmp.eq.s32.totalorder %s28, 0
      %p222 = por %p220, %p221
      %p223 = scmp.ne.s32.totalorder %s209, %s210
      %p224 = scmp.eq.s32.totalorder %s29, 1
      %p225 = por %p223, %p224
      %p227 = scmp.ne.s32.totalorder %s210, %s226
      %p228 = scmp.eq.s32.totalorder %s29, 0
      %p229 = por %p227, %p228
      %p230 = scmp.le.s32.totalorder 1, %s23
      %p231 = scmp.lt.s32.totalorder %s23, 3
      %p232 = pnand %p230, %p231
      %p233 = pneg %p232
      // Predicated region
      $region9: #{tpu_custom_call.1} parent=5 // pred_check
        _
      $region10: #{tpu_custom_call.1} parent=5 // pred_check_branch
        %235 = sbr.rel (%p232) target = $region12
      $region11: #{tpu_custom_call.1} parent=5 // pred_region
        %s236 = ssub.s32 %s23, 1
        // Predicated region
        $region13: #{tpu_custom_call.1} parent=11 // pred_check
          %p237 = pneg %p70
        $region14: #{tpu_custom_call.1} parent=11 // pred_check_branch
          %239 = sbr.rel (%p237) target = $region16
        $region15: #{tpu_custom_call.1} parent=11 // pred_region
          %s241 = ssub.s32 3072, 3072
          %242 = vsyncadd [#allocation6], %s241
          %s243 = sshll.u32 [#allocation5], 4
          %s244 = int_to_ptr.vmem [resolvable:$true] %s243
          %249 = dma.hbm_to_vmem [thread:$0]  %s1, 3072, %s244, [#allocation6], 384, 384, 24
        $region16: #{tpu_custom_call.1} parent=11 // pred_fallthru
          _
        // Predicated region
        $region17: #{tpu_custom_call.1} parent=11 // pred_check
          %p250 = pneg %p91
        $region18: #{tpu_custom_call.1} parent=11 // pred_check_branch
          %252 = sbr.rel (%p250) target = $region20
        $region19: #{tpu_custom_call.1} parent=11 // pred_region
          %s254 = ssub.s32 48, 48
          %255 = vsyncadd [#allocation6], %s254
          %s257 = sshll.u32 [#allocation7], 4
          %s258 = int_to_ptr.vmem [resolvable:$true] %s257
          %260 = dma.hbm_to_vmem [thread:$0]  %s2, 48, %s258, [#allocation6]
        $region20: #{tpu_custom_call.1} parent=11 // pred_fallthru
          _
        // Predicated region
        $region21: #{tpu_custom_call.1} parent=11 // pred_check
          %p261 = pneg %p112
        $region22: #{tpu_custom_call.1} parent=11 // pred_check_branch
          %263 = sbr.rel (%p261) target = $region24
        $region23: #{tpu_custom_call.1} parent=11 // pred_region
          %s265 = ssub.s32 768, 768
          %266 = vsyncadd [#allocation9], %s265
          %s267 = sshll.u32 [#allocation8], 4
          %s268 = int_to_ptr.vmem [resolvable:$true] %s267
          %273 = dma.hbm_to_vmem [thread:$0]  %s3, 768, %s268, [#allocation9], 128, 128, 8
        $region24: #{tpu_custom_call.1} parent=11 // pred_fallthru
          _
        // Predicated region
        $region25: #{tpu_custom_call.1} parent=11 // pred_check
          %p274 = pneg %p133
        $region26: #{tpu_custom_call.1} parent=11 // pred_check_branch
          %276 = sbr.rel (%p274) target = $region28
        $region27: #{tpu_custom_call.1} parent=11 // pred_region
          %s278 = ssub.s32 55296, 55296
          %279 = vsyncadd [#allocation9], %s278
          %s280 = sshll.u32 [#allocation10], 4
          %s281 = int_to_ptr.vmem [resolvable:$true] %s280
          %286 = dma.hbm_to_vmem [thread:$0]  %s4, 55296, %s281, [#allocation9], 384, 384, 24
        $region28: #{tpu_custom_call.1} parent=11 // pred_fallthru
          _
        // Predicated region
        $region29: #{tpu_custom_call.1} parent=11 // pred_check
          %p287 = pneg %p154
        $region30: #{tpu_custom_call.1} parent=11 // pred_check_branch
          %289 = sbr.rel (%p287) target = $region32
        $region31: #{tpu_custom_call.1} parent=11 // pred_region
          %s291 = ssub.s32 48, 48
          %292 = vsyncadd [#allocation12], %s291
          %s294 = sshll.u32 [#allocation11], 4
          %s295 = int_to_ptr.vmem [resolvable:$true] %s294
          %297 = dma.hbm_to_vmem [thread:$0]  %s5, 48, %s295, [#allocation12]
        $region32: #{tpu_custom_call.1} parent=11 // pred_fallthru
          _
        // Predicated region
        $region33: #{tpu_custom_call.1} parent=11 // pred_check
          %p298 = pneg %p175
        $region34: #{tpu_custom_call.1} parent=11 // pred_check_branch
          %300 = sbr.rel (%p298) target = $region36
        $region35: #{tpu_custom_call.1} parent=11 // pred_region
          _
        $region36: #{tpu_custom_call.1} parent=11 // pred_fallthru
          _
        // Predicated region
        $region37: #{tpu_custom_call.1} parent=11 // pred_check
          %p301 = pneg %p196
        $region38: #{tpu_custom_call.1} parent=11 // pred_check_branch
          %303 = sbr.rel (%p301) target = $region40
        $region39: #{tpu_custom_call.1} parent=11 // pred_region
          %s305 = ssub.s32 16, 16
          %306 = vsyncadd [#allocation12], %s305
          %s308 = sshll.u32 [#allocation13], 4
          %s309 = int_to_ptr.vmem [resolvable:$true] %s308
          %311 = dma.hbm_to_vmem [thread:$0]  %s7, 16, %s309, [#allocation12]
        $region40: #{tpu_custom_call.1} parent=11 // pred_fallthru
          _
      $region12: #{tpu_custom_call.1} parent=5 // pred_fallthru
        _
      %p312 = scmp.lt.s32.totalorder %s23, 2
      // Predicated region
      $region41: #{tpu_custom_call.1} parent=5 // pred_check
        %p313 = pneg %p312
      $region42: #{tpu_custom_call.1} parent=5 // pred_check_branch
        %315 = sbr.rel (%p313) target = $region44
      $region43: #{tpu_custom_call.1} parent=5 // pred_region
        // Predicated region
        $region45: #{tpu_custom_call.1} parent=43 // pred_check
          %p316 = pneg %p43
        $region46: #{tpu_custom_call.1} parent=43 // pred_check_branch
          %318 = sbr.rel (%p316) target = $region48
        $region47: #{tpu_custom_call.1} parent=43 // pred_region
          %s319 = sand.u32 %s33, 1
          %s320 = scalar_lea.sflag [#allocation3], %s319
          %s321 = sand.u32 %s33, 1
          %s322 = smul.addr %s321, 16
          %s323 = scalar_lea.vmem [#allocation2], %s322
          %s325 = ssub.s32 256, 256
          %326 = vsyncadd %s320, %s325
          %s327 = smul.addr %s23, 2
          %s328 = smul.addr %s327, 128
          %s329 = scalar_lea.hbm %s0, %s328
          %s330 = sshll.u32 %s323, 4
          %s331 = int_to_ptr.vmem [resolvable:$true] %s330
          %336 = dma.hbm_to_vmem [thread:$0]  %s329, 256, %s331, %s320, 128, 128, 8
        $region48: #{tpu_custom_call.1} parent=43 // pred_fallthru
          _
      $region44: #{tpu_custom_call.1} parent=5 // pred_fallthru
        _
      %p337 = scmp.le.s32.totalorder 1, %s23
      %p338 = scmp.lt.s32.totalorder %s23, 3
      %p339 = pnand %p337, %p338
      %p340 = pneg %p339
      // Predicated region
      $region49: #{tpu_custom_call.1} parent=5 // pred_check
        _
      $region50: #{tpu_custom_call.1} parent=5 // pred_check_branch
        %342 = sbr.rel (%p339) target = $region52
      $region51: #{tpu_custom_call.1} parent=5 // pred_region
        %s343 = ssub.s32 %s23, 1
        %s344 = sand.u32 %s36, 1
        %s345 = scalar_lea.sflag [#allocation3], %s344
        %s346 = sand.u32 %s36, 1
        %s347 = smul.addr %s346, 16
        %s348 = scalar_lea.vmem [#allocation2], %s347
        // Predicated region
        $region53: #{tpu_custom_call.1} parent=51 // pred_check
          %p349 = pneg %p49
        $region54: #{tpu_custom_call.1} parent=51 // pred_check_branch
          %351 = sbr.rel (%p349) target = $region56
        $region55: #{tpu_custom_call.1} parent=51 // pred_region
          %352 = dma.done %s345, 256
        $region56: #{tpu_custom_call.1} parent=51 // pred_fallthru
          _
        // Predicated region
        $region57: #{tpu_custom_call.1} parent=51 // pred_check
          %p353 = pneg %p70
        $region58: #{tpu_custom_call.1} parent=51 // pred_check_branch
          %355 = sbr.rel (%p353) target = $region60
        $region59: #{tpu_custom_call.1} parent=51 // pred_region
          %356 = dma.done [#allocation6], 3072
        $region60: #{tpu_custom_call.1} parent=51 // pred_fallthru
          _
        // Predicated region
        $region61: #{tpu_custom_call.1} parent=51 // pred_check
          %p357 = pneg %p91
        $region62: #{tpu_custom_call.1} parent=51 // pred_check_branch
          %359 = sbr.rel (%p357) target = $region64
        $region63: #{tpu_custom_call.1} parent=51 // pred_region
          %360 = dma.done [#allocation6], 48
        $region64: #{tpu_custom_call.1} parent=51 // pred_fallthru
          _
        // Predicated region
        $region65: #{tpu_custom_call.1} parent=51 // pred_check
          %p361 = pneg %p112
        $region66: #{tpu_custom_call.1} parent=51 // pred_check_branch
          %363 = sbr.rel (%p361) target = $region68
        $region67: #{tpu_custom_call.1} parent=51 // pred_region
          %364 = dma.done [#allocation9], 768
        $region68: #{tpu_custom_call.1} parent=51 // pred_fallthru
          _
        // Predicated region
        $region69: #{tpu_custom_call.1} parent=51 // pred_check
          %p365 = pneg %p133
        $region70: #{tpu_custom_call.1} parent=51 // pred_check_branch
          %367 = sbr.rel (%p365) target = $region72
        $region71: #{tpu_custom_call.1} parent=51 // pred_region
          %368 = dma.done [#allocation9], 55296
        $region72: #{tpu_custom_call.1} parent=51 // pred_fallthru
          _
        // Predicated region
        $region73: #{tpu_custom_call.1} parent=51 // pred_check
          %p369 = pneg %p154
        $region74: #{tpu_custom_call.1} parent=51 // pred_check_branch
          %371 = sbr.rel (%p369) target = $region76
        $region75: #{tpu_custom_call.1} parent=51 // pred_region
          %372 = dma.done [#allocation12], 48
        $region76: #{tpu_custom_call.1} parent=51 // pred_fallthru
          _
        // Predicated region
        $region77: #{tpu_custom_call.1} parent=51 // pred_check
          %p373 = pneg %p196
        $region78: #{tpu_custom_call.1} parent=51 // pred_check_branch
          %375 = sbr.rel (%p373) target = $region80
        $region79: #{tpu_custom_call.1} parent=51 // pred_region
          %376 = dma.done [#allocation12], 16
        $region80: #{tpu_custom_call.1} parent=51 // pred_fallthru
          _
        %s377 = sand.u32 %s36, 1
        %s378 = scalar_lea.sflag [#allocation3], %s377
        %s379 = sand.u32 %s36, 1
        %s380 = smul.addr %s379, 16
        %s381 = scalar_lea.vmem [#allocation2], %s380
        %p382 = pneg %p49
        %p383 = pneg %p46
        %p384 = pneg %p70
        %p385 = pneg %p67
        %p386 = pneg %p91
        %p387 = pneg %p88
        %p388 = pneg %p112
        %p389 = pneg %p109
        %p390 = pneg %p133
        %p391 = pneg %p130
        %p392 = pneg %p154
        %p393 = pneg %p151
        %p394 = pneg %p175
        %p395 = pneg %p172
        %p396 = pneg %p196
        %p397 = pneg %p193
        %p398 = pneg %p222
        %p399 = pneg %p219
        %s400 = sand.u32 %s209, 1
        %s401 = scalar_lea.sflag [#allocation4], %s400
        %s402 = sand.u32 %s209, 1
        %s403 = smul.addr %s402, 16
        %s404 = scalar_lea.vmem [#allocation14], %s403
        %v405 = vld [vmem:[%s348] sm:$0xff]
        %v406 = vld [vmem:[%s348 + $0x8] sm:$0xff]
        %v407 = vld [vmem:[#allocation5] sm:$0xff]
        %v408 = vld [vmem:[#allocation5 + $0x8] sm:$0xff]
        %v409 = vld [vmem:[#allocation5 + $0x10] sm:$0xff]
        %v410 = vld [vmem:[#allocation5 + $0x18] sm:$0xff]
        %v411 = vld [vmem:[#allocation5 + $0x20] sm:$0xff]
        %v412 = vld [vmem:[#allocation5 + $0x28] sm:$0xff]
        %v413 = vld [vmem:[#allocation5 + $0x30] sm:$0xff]
        %v414 = vld [vmem:[#allocation5 + $0x38] sm:$0xff]
        %v415 = vld [vmem:[#allocation5 + $0x40] sm:$0xff]
        %v416 = vld [vmem:[#allocation5 + $0x48] sm:$0xff]
        %v417 = vld [vmem:[#allocation5 + $0x50] sm:$0xff]
        %v418 = vld [vmem:[#allocation5 + $0x58] sm:$0xff]
        %v419 = vld [vmem:[#allocation5 + $0x60] sm:$0xff]
        %v420 = vld [vmem:[#allocation5 + $0x68] sm:$0xff]
        %v421 = vld [vmem:[#allocation5 + $0x70] sm:$0xff]
        %v422 = vld [vmem:[#allocation5 + $0x78] sm:$0xff]
        %v423 = vld [vmem:[#allocation5 + $0x80] sm:$0xff]
        %v424 = vld [vmem:[#allocation5 + $0x88] sm:$0xff]
        %v425 = vld [vmem:[#allocation5 + $0x90] sm:$0xff]
        %v426 = vld [vmem:[#allocation5 + $0x98] sm:$0xff]
        %v427 = vld [vmem:[#allocation5 + $0xa0] sm:$0xff]
        %v428 = vld [vmem:[#allocation5 + $0xa8] sm:$0xff]
        %v429 = vld [vmem:[#allocation5 + $0xb0] sm:$0xff]
        %v430 = vld [vmem:[#allocation5 + $0xb8] sm:$0xff]
        %v431 = vld [vmem:[#allocation7] sm:$0x7]
        %v433 = vlaneseq
        %v434 = vshrl.u32 %v433, 7
        %v435 = vsub.s32 0, %v434
        %v436 = vrot.slane %v431, %v435
        %v437 = vlaneseq
        %v438 = vshrl.u32 %v437, 7
        %v439 = vsub.s32 1, %v438
        %v440 = vrot.slane %v431, %v439
        %v441 = vlaneseq
        %v442 = vshrl.u32 %v441, 7
        %v443 = vsub.s32 2, %v442
        %v444 = vrot.slane %v431, %v443
        %vm448 = vcmask 523264
        %v450 = vsel %vm448, %v405, 0
        %v453 = vsel %vm448, %v406, 0
        %455 = vmatprep.subr.mxu0 %v408
        %456 = vmatpush1.msra.mxu0 %v407
        %457 = vmatprep.subr.mxu0 %v411
        %458 = vmatpush1.msra.mxu0 %v410
        %459 = vmatprep.subr.mxu0 %v414
        %460 = vmatpush1.msra.mxu0 %v413
        %461 = vmatprep.subr.mxu0 %v417
        %462 = vmatpush1.msra.mxu0 %v416
        %463 = vmatprep.subr.mxu0 %v420
        %464 = vmatpush1.msra.mxu0 %v419
        %465 = vmatprep.subr.mxu0 %v423
        %466 = vmatpush1.msra.mxu0 %v422
        %467 = vmatprep.subr.mxu0 %v426
        %468 = vmatpush1.msra.mxu0 %v425
        %469 = vmatprep.subr.mxu0 %v429
        %470 = vmatpush1.msra.mxu0 %v428
        %471 = vmatprep.subr.mxu0 0.0
        %472 = vmatpush1.msra.mxu0 0.0
        %473 = vmatprep.subr.mxu0 0.0
        %474 = vmatpush1.msra.mxu0 0.0
        %475 = vmatprep.subr.mxu0 0.0
        %476 = vmatpush1.msra.mxu0 0.0
        %477 = vmatprep.subr.mxu0 0.0
        %478 = vmatpush1.msra.mxu0 0.0
        %479 = vmatprep.subr.mxu0 0.0
        %480 = vmatpush1.msra.mxu0 0.0
        %481 = vmatprep.subr.mxu0 0.0
        %482 = vmatpush1.msra.mxu0 0.0
        %483 = vmatprep.subr.mxu0 0.0
        %484 = vmatpush1.msra.mxu0 0.0
        %485 = vmatprep.subr.mxu0 0.0
        %486 = vmatpush1.msra.mxu0 0.0
        %487 = vmatprep.subr.mxu0 0.0
        %488 = vmatpush1.msra.mxu0 0.0
        %489 = vmatprep.subr.mxu0 0.0
        %490 = vmatpush1.msra.mxu0 0.0
        %491 = vmatprep.subr.mxu0 0.0
        %492 = vmatpush1.msra.mxu0 0.0
        %493 = vmatprep.subr.mxu0 0.0
        %494 = vmatpush1.msra.mxu0 0.0
        %495 = vmatprep.subr.mxu0 0.0
        %496 = vmatpush1.msra.mxu0 0.0
        %497 = vmatprep.subr.mxu0 0.0
        %498 = vmatpush1.msra.mxu0 0.0
        %499 = vmatprep.subr.mxu0 0.0
        %500 = vmatpush1.msra.mxu0 0.0
        %501 = vmatprep.subr.mxu0 0.0
        %502 = vmatpush1.msra.mxu0 0.0
        %503 = vmatprep.subr.mxu0 0.0
        %504 = vmatpush1.msra.mxu0 0.0
        %505 = vmatprep.subr.mxu0 0.0
        %506 = vmatpush1.msra.mxu0 0.0
        %507 = vmatprep.subr.mxu0 0.0
        %508 = vmatpush1.msra.mxu0 0.0
        %509 = vmatprep.subr.mxu0 0.0
        %510 = vmatpush1.msra.mxu0 0.0
        %511 = vmatprep.subr.mxu0 0.0
        %512 = vmatpush1.msra.mxu0 0.0
        %513 = vmatprep.subr.mxu0 0.0
        %514 = vmatpush1.msra.mxu0 0.0
        %515 = vmatprep.subr.mxu0 0.0
        %516 = vmatpush1.msra.mxu0 0.0
        %517 = vmatprep.subr.mxu0 0.0
        %518 = vmatpush1.msra.mxu0 0.0
        %519 = vmatprep.mubr.f32.mxu0 0.0
        %520 = vmatmul.mubr.f32.gmra.mrb[0].mxu0 %v450
        %v521 = vpop.f32.mrb[0].mxu0
        %v522 = vadd.f32 %v436, %v521
        %v523 = vpop.f32.mrb[0].mxu0
        %v524 = vadd.f32 %v440, %v523
        %525 = vmatprep.mubr.f32.mxu0 0.0
        %526 = vmatmul.mubr.f32.gmra.mrb[0].mxu0 %v453
        %v527 = vpop.f32.mrb[0].mxu0
        %v528 = vadd.f32 %v436, %v527
        %v529 = vpop.f32.mrb[0].mxu0
        %v530 = vadd.f32 %v440, %v529
        %531 = vdwg.mxu0
        %532 = vmatprep.subr.mxu0 0.0
        %533 = vmatpush1.msra.mxu0 %v409
        %534 = vmatprep.subr.mxu0 0.0
        %535 = vmatpush1.msra.mxu0 %v412
        %536 = vmatprep.subr.mxu0 0.0
        %537 = vmatpush1.msra.mxu0 %v415
        %538 = vmatprep.subr.mxu0 0.0
        %539 = vmatpush1.msra.mxu0 %v418
        %540 = vmatprep.subr.mxu0 0.0
        %541 = vmatpush1.msra.mxu0 %v421
        %542 = vmatprep.subr.mxu0 0.0
        %543 = vmatpush1.msra.mxu0 %v424
        %544 = vmatprep.subr.mxu0 0.0
        %545 = vmatpush1.msra.mxu0 %v427
        %546 = vmatprep.subr.mxu0 0.0
        %547 = vmatpush1.msra.mxu0 %v430
        %548 = vmatprep.subr.mxu0 0.0
        %549 = vmatpush1.msra.mxu0 0.0
        %550 = vmatprep.subr.mxu0 0.0
        %551 = vmatpush1.msra.mxu0 0.0
        %552 = vmatprep.subr.mxu0 0.0
        %553 = vmatpush1.msra.mxu0 0.0
        %554 = vmatprep.subr.mxu0 0.0
        %555 = vmatpush1.msra.mxu0 0.0
        %556 = vmatprep.subr.mxu0 0.0
        %557 = vmatpush1.msra.mxu0 0.0
        %558 = vmatprep.subr.mxu0 0.0
        %559 = vmatpush1.msra.mxu0 0.0
        %560 = vmatprep.subr.mxu0 0.0
        %561 = vmatpush1.msra.mxu0 0.0
        %562 = vmatprep.subr.mxu0 0.0
        %563 = vmatpush1.msra.mxu0 0.0
        %564 = vmatprep.subr.mxu0 0.0
        %565 = vmatpush1.msra.mxu0 0.0
        %566 = vmatprep.subr.mxu0 0.0
        %567 = vmatpush1.msra.mxu0 0.0
        %568 = vmatprep.subr.mxu0 0.0
        %569 = vmatpush1.msra.mxu0 0.0
        %570 = vmatprep.subr.mxu0 0.0
        %571 = vmatpush1.msra.mxu0 0.0
        %572 = vmatprep.subr.mxu0 0.0
        %573 = vmatpush1.msra.mxu0 0.0
        %574 = vmatprep.subr.mxu0 0.0
        %575 = vmatpush1.msra.mxu0 0.0
        %576 = vmatprep.subr.mxu0 0.0
        %577 = vmatpush1.msra.mxu0 0.0
        %578 = vmatprep.subr.mxu0 0.0
        %579 = vmatpush1.msra.mxu0 0.0
        %580 = vmatprep.subr.mxu0 0.0
        %581 = vmatpush1.msra.mxu0 0.0
        %582 = vmatprep.subr.mxu0 0.0
        %583 = vmatpush1.msra.mxu0 0.0
        %584 = vmatprep.subr.mxu0 0.0
        %585 = vmatpush1.msra.mxu0 0.0
        %586 = vmatprep.subr.mxu0 0.0
        %587 = vmatpush1.msra.mxu0 0.0
        %588 = vmatprep.subr.mxu0 0.0
        %589 = vmatpush1.msra.mxu0 0.0
        %590 = vmatprep.subr.mxu0 0.0
        %591 = vmatpush1.msra.mxu0 0.0
        %592 = vmatprep.subr.mxu0 0.0
        %593 = vmatpush1.msra.mxu0 0.0
        %594 = vmatprep.subr.mxu0 0.0
        %595 = vmatpush1.msra.mxu0 0.0
        %596 = vmatprep.mubr.f32.mxu0 0.0
        %597 = vmatmul.mubr.f32.gmra.mrb[0].mxu0 %v450
        %v598 = vpop.f32.mrb[0].mxu0
        %v599 = vadd.f32 %v444, %v598
        %v600 = vpop.f32.mrb[0].mxu0
        %601 = vmatprep.mubr.f32.mxu0 0.0
        %602 = vmatmul.mubr.f32.gmra.mrb[0].mxu0 %v453
        %v603 = vpop.f32.mrb[0].mxu0
        %v604 = vadd.f32 %v444, %v603
        %v605 = vpop.f32.mrb[0].mxu0
        %606 = vdwg.mxu0
        %v607 = vmax.f32 %v522, 0.0
        %v608 = vmax.f32 %v524, 0.0
        %v609 = vmax.f32 %v599, 0.0
        %v610 = vmax.f32 %v528, 0.0
        %v611 = vmax.f32 %v530, 0.0
        %v612 = vmax.f32 %v604, 0.0
        %v613 = vmin.f32 %v607, 1.0
        %v614 = vmin.f32 %v608, 1.0
        %v615 = vmin.f32 %v609, 1.0
        %v616 = vmin.f32 %v610, 1.0
        %v617 = vmin.f32 %v611, 1.0
        %v618 = vmin.f32 %v612, 1.0
        %v619 = vld [vmem:[#allocation8] sm:$0xff]
        %v620 = vld [vmem:[#allocation8 + $0x8] sm:$0xff]
        %vm621 = vcmask 130048
        %v623 = vsel %vm621, %v619, 0
        %v626 = vsel %vm621, %v620, 0
        %628 = vmatprep.subr.mxu0 %v614
        %629 = vmatpush1.msra.mxu0 %v613
        %630 = vmatprep.subr.mxu0 %v617
        %631 = vmatpush1.msra.mxu0 %v616
        %632 = vmatprep.subr.mxu0 0.0
        %633 = vmatpush1.msra.mxu0 0.0
        %634 = vmatprep.subr.mxu0 0.0
        %635 = vmatpush1.msra.mxu0 0.0
        %636 = vmatprep.subr.mxu0 0.0
        %637 = vmatpush1.msra.mxu0 0.0
        %638 = vmatprep.subr.mxu0 0.0
        %639 = vmatpush1.msra.mxu0 0.0
        %640 = vmatprep.subr.mxu0 0.0
        %641 = vmatpush1.msra.mxu0 0.0
        %642 = vmatprep.subr.mxu0 0.0
        %643 = vmatpush1.msra.mxu0 0.0
        %644 = vmatprep.subr.mxu0 0.0
        %645 = vmatpush1.msra.mxu0 0.0
        %646 = vmatprep.subr.mxu0 0.0
        %647 = vmatpush1.msra.mxu0 0.0
        %648 = vmatprep.subr.mxu0 0.0
        %649 = vmatpush1.msra.mxu0 0.0
        %650 = vmatprep.subr.mxu0 0.0
        %651 = vmatpush1.msra.mxu0 0.0
        %652 = vmatprep.subr.mxu0 0.0
        %653 = vmatpush1.msra.mxu0 0.0
        %654 = vmatprep.subr.mxu0 0.0
        %655 = vmatpush1.msra.mxu0 0.0
        %656 = vmatprep.subr.mxu0 0.0
        %657 = vmatpush1.msra.mxu0 0.0
        %658 = vmatprep.subr.mxu0 0.0
        %659 = vmatpush1.msra.mxu0 0.0
        %660 = vmatprep.subr.mxu0 0.0
        %661 = vmatpush1.msra.mxu0 0.0
        %662 = vmatprep.subr.mxu0 0.0
        %663 = vmatpush1.msra.mxu0 0.0
        %664 = vmatprep.subr.mxu0 0.0
        %665 = vmatpush1.msra.mxu0 0.0
        %666 = vmatprep.subr.mxu0 0.0
        %667 = vmatpush1.msra.mxu0 0.0
        %668 = vmatprep.subr.mxu0 0.0
        %669 = vmatpush1.msra.mxu0 0.0
        %670 = vmatprep.subr.mxu0 0.0
        %671 = vmatpush1.msra.mxu0 0.0
        %672 = vmatprep.subr.mxu0 0.0
        %673 = vmatpush1.msra.mxu0 0.0
        %674 = vmatprep.subr.mxu0 0.0
        %675 = vmatpush1.msra.mxu0 0.0
        %676 = vmatprep.subr.mxu0 0.0
        %677 = vmatpush1.msra.mxu0 0.0
        %678 = vmatprep.subr.mxu0 0.0
        %679 = vmatpush1.msra.mxu0 0.0
        %680 = vmatprep.subr.mxu0 0.0
        %681 = vmatpush1.msra.mxu0 0.0
        %682 = vmatprep.subr.mxu0 0.0
        %683 = vmatpush1.msra.mxu0 0.0
        %684 = vmatprep.subr.mxu0 0.0
        %685 = vmatpush1.msra.mxu0 0.0
        %686 = vmatprep.subr.mxu0 0.0
        %687 = vmatpush1.msra.mxu0 0.0
        %688 = vmatprep.subr.mxu0 0.0
        %689 = vmatpush1.msra.mxu0 0.0
        %690 = vmatprep.subr.mxu0 0.0
        %691 = vmatpush1.msra.mxu0 0.0
        %692 = vmatprep.mubr.f32.mxu0 0.0
        %693 = vmatmul.mubr.f32.gmra.mrb[0].mxu0 %v623
        %v694 = vpop.f32.mrb[0].mxu0
        %v695 = vadd.f32 0.0, %v694
        %v696 = vpop.f32.mrb[0].mxu0
        %v697 = vadd.f32 0.0, %v696
        %698 = vmatprep.mubr.f32.mxu0 0.0
        %699 = vmatmul.mubr.f32.gmra.mrb[0].mxu0 %v626
        %v700 = vpop.f32.mrb[0].mxu0
        %v701 = vadd.f32 0.0, %v700
        %v702 = vpop.f32.mrb[0].mxu0
        %v703 = vadd.f32 0.0, %v702
        %704 = vdwg.mxu0
        %705 = vmatprep.subr.mxu0 0.0
        %706 = vmatpush1.msra.mxu0 %v615
        %707 = vmatprep.subr.mxu0 0.0
        %708 = vmatpush1.msra.mxu0 %v618
        %709 = vmatprep.subr.mxu0 0.0
        %710 = vmatpush1.msra.mxu0 0.0
        %711 = vmatprep.subr.mxu0 0.0
        %712 = vmatpush1.msra.mxu0 0.0
        %713 = vmatprep.subr.mxu0 0.0
        %714 = vmatpush1.msra.mxu0 0.0
        %715 = vmatprep.subr.mxu0 0.0
        %716 = vmatpush1.msra.mxu0 0.0
        %717 = vmatprep.subr.mxu0 0.0
        %718 = vmatpush1.msra.mxu0 0.0
        %719 = vmatprep.subr.mxu0 0.0
        %720 = vmatpush1.msra.mxu0 0.0
        %721 = vmatprep.subr.mxu0 0.0
        %722 = vmatpush1.msra.mxu0 0.0
        %723 = vmatprep.subr.mxu0 0.0
        %724 = vmatpush1.msra.mxu0 0.0
        %725 = vmatprep.subr.mxu0 0.0
        %726 = vmatpush1.msra.mxu0 0.0
        %727 = vmatprep.subr.mxu0 0.0
        %728 = vmatpush1.msra.mxu0 0.0
        %729 = vmatprep.subr.mxu0 0.0
        %730 = vmatpush1.msra.mxu0 0.0
        %731 = vmatprep.subr.mxu0 0.0
        %732 = vmatpush1.msra.mxu0 0.0
        %733 = vmatprep.subr.mxu0 0.0
        %734 = vmatpush1.msra.mxu0 0.0
        %735 = vmatprep.subr.mxu0 0.0
        %736 = vmatpush1.msra.mxu0 0.0
        %737 = vmatprep.subr.mxu0 0.0
        %738 = vmatpush1.msra.mxu0 0.0
        %739 = vmatprep.subr.mxu0 0.0
        %740 = vmatpush1.msra.mxu0 0.0
        %741 = vmatprep.subr.mxu0 0.0
        %742 = vmatpush1.msra.mxu0 0.0
        %743 = vmatprep.subr.mxu0 0.0
        %744 = vmatpush1.msra.mxu0 0.0
        %745 = vmatprep.subr.mxu0 0.0
        %746 = vmatpush1.msra.mxu0 0.0
        %747 = vmatprep.subr.mxu0 0.0
        %748 = vmatpush1.msra.mxu0 0.0
        %749 = vmatprep.subr.mxu0 0.0
        %750 = vmatpush1.msra.mxu0 0.0
        %751 = vmatprep.subr.mxu0 0.0
        %752 = vmatpush1.msra.mxu0 0.0
        %753 = vmatprep.subr.mxu0 0.0
        %754 = vmatpush1.msra.mxu0 0.0
        %755 = vmatprep.subr.mxu0 0.0
        %756 = vmatpush1.msra.mxu0 0.0
        %757 = vmatprep.subr.mxu0 0.0
        %758 = vmatpush1.msra.mxu0 0.0
        %759 = vmatprep.subr.mxu0 0.0
        %760 = vmatpush1.msra.mxu0 0.0
        %761 = vmatprep.subr.mxu0 0.0
        %762 = vmatpush1.msra.mxu0 0.0
        %763 = vmatprep.subr.mxu0 0.0
        %764 = vmatpush1.msra.mxu0 0.0
        %765 = vmatprep.subr.mxu0 0.0
        %766 = vmatpush1.msra.mxu0 0.0
        %767 = vmatprep.subr.mxu0 0.0
        %768 = vmatpush1.msra.mxu0 0.0
        %769 = vmatprep.mubr.f32.mxu0 0.0
        %770 = vmatmul.mubr.f32.gmra.mrb[0].mxu0 %v623
        %v771 = vpop.f32.mrb[0].mxu0
        %v772 = vadd.f32 0.0, %v771
        %v773 = vpop.f32.mrb[0].mxu0
        %774 = vmatprep.mubr.f32.mxu0 0.0
        %775 = vmatmul.mubr.f32.gmra.mrb[0].mxu0 %v626
        %v776 = vpop.f32.mrb[0].mxu0
        %v777 = vadd.f32 0.0, %v776
        %v778 = vpop.f32.mrb[0].mxu0
        %779 = vdwg.mxu0
        %v780 = vld [vmem:[#allocation10] sm:$0xff]
        %v781 = vld [vmem:[#allocation10 + $0x8] sm:$0xff]
        %v782 = vld [vmem:[#allocation10 + $0x10] sm:$0xff]
        %v783 = vld [vmem:[#allocation10 + $0x18] sm:$0xff]
        %v784 = vld [vmem:[#allocation10 + $0x20] sm:$0xff]
        %v785 = vld [vmem:[#allocation10 + $0x28] sm:$0xff]
        %v786 = vld [vmem:[#allocation10 + $0x30] sm:$0xff]
        %v787 = vld [vmem:[#allocation10 + $0x38] sm:$0xff]
        %v788 = vld [vmem:[#allocation10 + $0x40] sm:$0xff]
        %v789 = vld [vmem:[#allocation10 + $0x48] sm:$0xff]
        %v790 = vld [vmem:[#allocation10 + $0x50] sm:$0xff]
        %v791 = vld [vmem:[#allocation10 + $0x58] sm:$0xff]
        %v792 = vld [vmem:[#allocation10 + $0x60] sm:$0xff]
        %v793 = vld [vmem:[#allocation10 + $0x68] sm:$0xff]
        %v794 = vld [vmem:[#allocation10 + $0x70] sm:$0xff]
        %v795 = vld [vmem:[#allocation10 + $0x78] sm:$0xff]
        %v796 = vld [vmem:[#allocation10 + $0x80] sm:$0xff]
        %v797 = vld [vmem:[#allocation10 + $0x88] sm:$0xff]
        %v798 = vld [vmem:[#allocation10 + $0x90] sm:$0xff]
        %v799 = vld [vmem:[#allocation10 + $0x98] sm:$0xff]
        %v800 = vld [vmem:[#allocation10 + $0xa0] sm:$0xff]
        %v801 = vld [vmem:[#allocation10 + $0xa8] sm:$0xff]
        %v802 = vld [vmem:[#allocation10 + $0xb0] sm:$0xff]
        %v803 = vld [vmem:[#allocation10 + $0xb8] sm:$0xff]
        %v804 = vld [vmem:[#allocation10 + $0xc0] sm:$0xff]
        %v805 = vld [vmem:[#allocation10 + $0xc8] sm:$0xff]
        %v806 = vld [vmem:[#allocation10 + $0xd0] sm:$0xff]
        %v807 = vld [vmem:[#allocation10 + $0xd8] sm:$0xff]
        %v808 = vld [vmem:[#allocation10 + $0xe0] sm:$0xff]
        %v809 = vld [vmem:[#allocation10 + $0xe8] sm:$0xff]
        %v810 = vld [vmem:[#allocation10 + $0xf0] sm:$0xff]
        %v811 = vld [vmem:[#allocation10 + $0xf8] sm:$0xff]
        %v812 = vld [vmem:[#allocation10 + $0x100] sm:$0xff]
        %v813 = vld [vmem:[#allocation10 + $0x108] sm:$0xff]
        %v814 = vld [vmem:[#allocation10 + $0x110] sm:$0xff]
        %v815 = vld [vmem:[#allocation10 + $0x118] sm:$0xff]
        %v816 = vld [vmem:[#allocation10 + $0x120] sm:$0xff]
        %v817 = vld [vmem:[#allocation10 + $0x128] sm:$0xff]
        %v818 = vld [vmem:[#allocation10 + $0x130] sm:$0xff]
        %v819 = vld [vmem:[#allocation10 + $0x138] sm:$0xff]
        %v820 = vld [vmem:[#allocation10 + $0x140] sm:$0xff]
        %v821 = vld [vmem:[#allocation10 + $0x148] sm:$0xff]
        %v822 = vld [vmem:[#allocation10 + $0x150] sm:$0xff]
        %v823 = vld [vmem:[#allocation10 + $0x158] sm:$0xff]
        %v824 = vld [vmem:[#allocation10 + $0x160] sm:$0xff]
        %v825 = vld [vmem:[#allocation10 + $0x168] sm:$0xff]
        %v826 = vld [vmem:[#allocation10 + $0x170] sm:$0xff]
        %v827 = vld [vmem:[#allocation10 + $0x178] sm:$0xff]
        %v828 = vld [vmem:[#allocation10 + $0x180] sm:$0xff]
        %v829 = vld [vmem:[#allocation10 + $0x188] sm:$0xff]
        %v830 = vld [vmem:[#allocation10 + $0x190] sm:$0xff]
        %v831 = vld [vmem:[#allocation10 + $0x198] sm:$0xff]
        %v832 = vld [vmem:[#allocation10 + $0x1a0] sm:$0xff]
        %v833 = vld [vmem:[#allocation10 + $0x1a8] sm:$0xff]
        %v834 = vld [vmem:[#allocation10 + $0x1b0] sm:$0xff]
        %v835 = vld [vmem:[#allocation10 + $0x1b8] sm:$0xff]
        %v836 = vld [vmem:[#allocation10 + $0x1c0] sm:$0xff]
        %v837 = vld [vmem:[#allocation10 + $0x1c8] sm:$0xff]
        %v838 = vld [vmem:[#allocation10 + $0x1d0] sm:$0xff]
        %v839 = vld [vmem:[#allocation10 + $0x1d8] sm:$0xff]
        %v840 = vld [vmem:[#allocation10 + $0x1e0] sm:$0xff]
        %v841 = vld [vmem:[#allocation10 + $0x1e8] sm:$0xff]
        %v842 = vld [vmem:[#allocation10 + $0x1f0] sm:$0xff]
        %v843 = vld [vmem:[#allocation10 + $0x1f8] sm:$0xff]
        %v844 = vld [vmem:[#allocation10 + $0x200] sm:$0xff]
        %v845 = vld [vmem:[#allocation10 + $0x208] sm:$0xff]
        %v846 = vld [vmem:[#allocation10 + $0x210] sm:$0xff]
        %v847 = vld [vmem:[#allocation10 + $0x218] sm:$0xff]
        %v848 = vld [vmem:[#allocation10 + $0x220] sm:$0xff]
        %v849 = vld [vmem:[#allocation10 + $0x228] sm:$0xff]
        %v850 = vld [vmem:[#allocation10 + $0x230] sm:$0xff]
        %v851 = vld [vmem:[#allocation10 + $0x238] sm:$0xff]
        %v852 = vld [vmem:[#allocation10 + $0x240] sm:$0xff]
        %v853 = vld [vmem:[#allocation10 + $0x248] sm:$0xff]
        %v854 = vld [vmem:[#allocation10 + $0x250] sm:$0xff]
        %v855 = vld [vmem:[#allocation10 + $0x258] sm:$0xff]
        %v856 = vld [vmem:[#allocation10 + $0x260] sm:$0xff]
        %v857 = vld [vmem:[#allocation10 + $0x268] sm:$0xff]
        %v858 = vld [vmem:[#allocation10 + $0x270] sm:$0xff]
        %v859 = vld [vmem:[#allocation10 + $0x278] sm:$0xff]
        %v860 = vld [vmem:[#allocation10 + $0x280] sm:$0xff]
        %v861 = vld [vmem:[#allocation10 + $0x288] sm:$0xff]
        %v862 = vld [vmem:[#allocation10 + $0x290] sm:$0xff]
        %v863 = vld [vmem:[#allocation10 + $0x298] sm:$0xff]
        %v864 = vld [vmem:[#allocation10 + $0x2a0] sm:$0xff]
        %v865 = vld [vmem:[#allocation10 + $0x2a8] sm:$0xff]
        %v866 = vld [vmem:[#allocation10 + $0x2b0] sm:$0xff]
        %v867 = vld [vmem:[#allocation10 + $0x2b8] sm:$0xff]
        %v868 = vld [vmem:[#allocation10 + $0x2c0] sm:$0xff]
        %v869 = vld [vmem:[#allocation10 + $0x2c8] sm:$0xff]
        %v870 = vld [vmem:[#allocation10 + $0x2d0] sm:$0xff]
        %v871 = vld [vmem:[#allocation10 + $0x2d8] sm:$0xff]
        %v872 = vld [vmem:[#allocation10 + $0x2e0] sm:$0xff]
        %v873 = vld [vmem:[#allocation10 + $0x2e8] sm:$0xff]
        %v874 = vld [vmem:[#allocation10 + $0x2f0] sm:$0xff]
        %v875 = vld [vmem:[#allocation10 + $0x2f8] sm:$0xff]
        %v876 = vld [vmem:[#allocation10 + $0x300] sm:$0xff]
        %v877 = vld [vmem:[#allocation10 + $0x308] sm:$0xff]
        %v878 = vld [vmem:[#allocation10 + $0x310] sm:$0xff]
        %v879 = vld [vmem:[#allocation10 + $0x318] sm:$0xff]
        %v880 = vld [vmem:[#allocation10 + $0x320] sm:$0xff]
        %v881 = vld [vmem:[#allocation10 + $0x328] sm:$0xff]
        %v882 = vld [vmem:[#allocation10 + $0x330] sm:$0xff]
        %v883 = vld [vmem:[#allocation10 + $0x338] sm:$0xff]
        %v884 = vld [vmem:[#allocation10 + $0x340] sm:$0xff]
        %v885 = vld [vmem:[#allocation10 + $0x348] sm:$0xff]
        %v886 = vld [vmem:[#allocation10 + $0x350] sm:$0xff]
        %v887 = vld [vmem:[#allocation10 + $0x358] sm:$0xff]
        %v888 = vld [vmem:[#allocation10 + $0x360] sm:$0xff]
        %v889 = vld [vmem:[#allocation10 + $0x368] sm:$0xff]
        %v890 = vld [vmem:[#allocation10 + $0x370] sm:$0xff]
        %v891 = vld [vmem:[#allocation10 + $0x378] sm:$0xff]
        %v892 = vld [vmem:[#allocation10 + $0x380] sm:$0xff]
        %v893 = vld [vmem:[#allocation10 + $0x388] sm:$0xff]
        %v894 = vld [vmem:[#allocation10 + $0x390] sm:$0xff]
        %v895 = vld [vmem:[#allocation10 + $0x398] sm:$0xff]
        %v896 = vld [vmem:[#allocation10 + $0x3a0] sm:$0xff]
        %v897 = vld [vmem:[#allocation10 + $0x3a8] sm:$0xff]
        %v898 = vld [vmem:[#allocation10 + $0x3b0] sm:$0xff]
        %v899 = vld [vmem:[#allocation10 + $0x3b8] sm:$0xff]
        %v900 = vld [vmem:[#allocation10 + $0x3c0] sm:$0xff]
        %v901 = vld [vmem:[#allocation10 + $0x3c8] sm:$0xff]
        %v902 = vld [vmem:[#allocation10 + $0x3d0] sm:$0xff]
        %v903 = vld [vmem:[#allocation10 + $0x3d8] sm:$0xff]
        %v904 = vld [vmem:[#allocation10 + $0x3e0] sm:$0xff]
        %v905 = vld [vmem:[#allocation10 + $0x3e8] sm:$0xff]
        %v906 = vld [vmem:[#allocation10 + $0x3f0] sm:$0xff]
        %v907 = vld [vmem:[#allocation10 + $0x3f8] sm:$0xff]
        %v908 = vld [vmem:[#allocation10 + $0x400] sm:$0xff]
        %v909 = vld [vmem:[#allocation10 + $0x408] sm:$0xff]
        %v910 = vld [vmem:[#allocation10 + $0x410] sm:$0xff]
        %v911 = vld [vmem:[#allocation10 + $0x418] sm:$0xff]
        %v912 = vld [vmem:[#allocation10 + $0x420] sm:$0xff]
        %v913 = vld [vmem:[#allocation10 + $0x428] sm:$0xff]
        %v914 = vld [vmem:[#allocation10 + $0x430] sm:$0xff]
        %v915 = vld [vmem:[#allocation10 + $0x438] sm:$0xff]
        %v916 = vld [vmem:[#allocation10 + $0x440] sm:$0xff]
        %v917 = vld [vmem:[#allocation10 + $0x448] sm:$0xff]
        %v918 = vld [vmem:[#allocation10 + $0x450] sm:$0xff]
        %v919 = vld [vmem:[#allocation10 + $0x458] sm:$0xff]
        %v920 = vld [vmem:[#allocation10 + $0x460] sm:$0xff]
        %v921 = vld [vmem:[#allocation10 + $0x468] sm:$0xff]
        %v922 = vld [vmem:[#allocation10 + $0x470] sm:$0xff]
        %v923 = vld [vmem:[#allocation10 + $0x478] sm:$0xff]
        %s924 = scalar_lea.vmem [#allocation8], 16
        %v925 = vld [vmem:[%s924] sm:$0xff]
        %v926 = vld [vmem:[%s924 + $0x8] sm:$0xff]
        %v928 = vsel %vm621, %v925, 0
        %v931 = vsel %vm621, %v926, 0
        %933 = vmatprep.subr.mxu0 %v614
        %934 = vmatpush1.msra.mxu0 %v613
        %935 = vmatprep.subr.mxu0 %v617
        %936 = vmatpush1.msra.mxu0 %v616
        %937 = vmatprep.subr.mxu0 0.0
        %938 = vmatpush1.msra.mxu0 0.0
        %939 = vmatprep.subr.mxu0 0.0
        %940 = vmatpush1.msra.mxu0 0.0
        %941 = vmatprep.subr.mxu0 0.0
        %942 = vmatpush1.msra.mxu0 0.0
        %943 = vmatprep.subr.mxu0 0.0
        %944 = vmatpush1.msra.mxu0 0.0
        %945 = vmatprep.subr.mxu0 0.0
        %946 = vmatpush1.msra.mxu0 0.0
        %947 = vmatprep.subr.mxu0 0.0
        %948 = vmatpush1.msra.mxu0 0.0
        %949 = vmatprep.subr.mxu0 0.0
        %950 = vmatpush1.msra.mxu0 0.0
        %951 = vmatprep.subr.mxu0 0.0
        %952 = vmatpush1.msra.mxu0 0.0
        %953 = vmatprep.subr.mxu0 0.0
        %954 = vmatpush1.msra.mxu0 0.0
        %955 = vmatprep.subr.mxu0 0.0
        %956 = vmatpush1.msra.mxu0 0.0
        %957 = vmatprep.subr.mxu0 0.0
        %958 = vmatpush1.msra.mxu0 0.0
        %959 = vmatprep.subr.mxu0 0.0
        %960 = vmatpush1.msra.mxu0 0.0
        %961 = vmatprep.subr.mxu0 0.0
        %962 = vmatpush1.msra.mxu0 0.0
        %963 = vmatprep.subr.mxu0 0.0
        %964 = vmatpush1.msra.mxu0 0.0
        %965 = vmatprep.subr.mxu0 0.0
        %966 = vmatpush1.msra.mxu0 0.0
        %967 = vmatprep.subr.mxu0 0.0
        %968 = vmatpush1.msra.mxu0 0.0
        %969 = vmatprep.subr.mxu0 0.0
        %970 = vmatpush1.msra.mxu0 0.0
        %971 = vmatprep.subr.mxu0 0.0
        %972 = vmatpush1.msra.mxu0 0.0
        %973 = vmatprep.subr.mxu0 0.0
        %974 = vmatpush1.msra.mxu0 0.0
        %975 = vmatprep.subr.mxu0 0.0
        %976 = vmatpush1.msra.mxu0 0.0
        %977 = vmatprep.subr.mxu0 0.0
        %978 = vmatpush1.msra.mxu0 0.0
        %979 = vmatprep.subr.mxu0 0.0
        %980 = vmatpush1.msra.mxu0 0.0
        %981 = vmatprep.subr.mxu0 0.0
        %982 = vmatpush1.msra.mxu0 0.0
        %983 = vmatprep.subr.mxu0 0.0
        %984 = vmatpush1.msra.mxu0 0.0
        %985 = vmatprep.subr.mxu0 0.0
        %986 = vmatpush1.msra.mxu0 0.0
        %987 = vmatprep.subr.mxu0 0.0
        %988 = vmatpush1.msra.mxu0 0.0
        %989 = vmatprep.subr.mxu0 0.0
        %990 = vmatpush1.msra.mxu0 0.0
        %991 = vmatprep.subr.mxu0 0.0
        %992 = vmatpush1.msra.mxu0 0.0
        %993 = vmatprep.subr.mxu0 0.0
        %994 = vmatpush1.msra.mxu0 0.0
        %995 = vmatprep.subr.mxu0 0.0
        %996 = vmatpush1.msra.mxu0 0.0
        %997 = vmatprep.mubr.f32.mxu0 0.0
        %998 = vmatmul.mubr.f32.gmra.mrb[0].mxu0 %v928
        %v999 = vpop.f32.mrb[0].mxu0
        %v1000 = vadd.f32 0.0, %v999
        %v1001 = vpop.f32.mrb[0].mxu0
        %v1002 = vadd.f32 0.0, %v1001
        %1003 = vmatprep.mubr.f32.mxu0 0.0
        %1004 = vmatmul.mubr.f32.gmra.mrb[0].mxu0 %v931
        %v1005 = vpop.f32.mrb[0].mxu0
        %v1006 = vadd.f32 0.0, %v1005
        %v1007 = vpop.f32.mrb[0].mxu0
        %v1008 = vadd.f32 0.0, %v1007
        %1009 = vdwg.mxu0
        %1010 = vmatprep.subr.mxu0 0.0
        %1011 = vmatpush1.msra.mxu0 %v615
        %1012 = vmatprep.subr.mxu0 0.0
        %1013 = vmatpush1.msra.mxu0 %v618
        %1014 = vmatprep.subr.mxu0 0.0
        %1015 = vmatpush1.msra.mxu0 0.0
        %1016 = vmatprep.subr.mxu0 0.0
        %1017 = vmatpush1.msra.mxu0 0.0
        %1018 = vmatprep.subr.mxu0 0.0
        %1019 = vmatpush1.msra.mxu0 0.0
        %1020 = vmatprep.subr.mxu0 0.0
        %1021 = vmatpush1.msra.mxu0 0.0
        %1022 = vmatprep.subr.mxu0 0.0
        %1023 = vmatpush1.msra.mxu0 0.0
        %1024 = vmatprep.subr.mxu0 0.0
        %1025 = vmatpush1.msra.mxu0 0.0
        %1026 = vmatprep.subr.mxu0 0.0
        %1027 = vmatpush1.msra.mxu0 0.0
        %1028 = vmatprep.subr.mxu0 0.0
        %1029 = vmatpush1.msra.mxu0 0.0
        %1030 = vmatprep.subr.mxu0 0.0
        %1031 = vmatpush1.msra.mxu0 0.0
        %1032 = vmatprep.subr.mxu0 0.0
        %1033 = vmatpush1.msra.mxu0 0.0
        %1034 = vmatprep.subr.mxu0 0.0
        %1035 = vmatpush1.msra.mxu0 0.0
        %1036 = vmatprep.subr.mxu0 0.0
        %1037 = vmatpush1.msra.mxu0 0.0
        %1038 = vmatprep.subr.mxu0 0.0
        %1039 = vmatpush1.msra.mxu0 0.0
        %1040 = vmatprep.subr.mxu0 0.0
        %1041 = vmatpush1.msra.mxu0 0.0
        %1042 = vmatprep.subr.mxu0 0.0
        %1043 = vmatpush1.msra.mxu0 0.0
        %1044 = vmatprep.subr.mxu0 0.0
        %1045 = vmatpush1.msra.mxu0 0.0
        %1046 = vmatprep.subr.mxu0 0.0
        %1047 = vmatpush1.msra.mxu0 0.0
        %1048 = vmatprep.subr.mxu0 0.0
        %1049 = vmatpush1.msra.mxu0 0.0
        %1050 = vmatprep.subr.mxu0 0.0
        %1051 = vmatpush1.msra.mxu0 0.0
        %1052 = vmatprep.subr.mxu0 0.0
        %1053 = vmatpush1.msra.mxu0 0.0
        %1054 = vmatprep.subr.mxu0 0.0
        %1055 = vmatpush1.msra.mxu0 0.0
        %1056 = vmatprep.subr.mxu0 0.0
        %1057 = vmatpush1.msra.mxu0 0.0
        %1058 = vmatprep.subr.mxu0 0.0
        %1059 = vmatpush1.msra.mxu0 0.0
        %1060 = vmatprep.subr.mxu0 0.0
        %1061 = vmatpush1.msra.mxu0 0.0
        %1062 = vmatprep.subr.mxu0 0.0
        %1063 = vmatpush1.msra.mxu0 0.0
        %1064 = vmatprep.subr.mxu0 0.0
        %1065 = vmatpush1.msra.mxu0 0.0
        %1066 = vmatprep.subr.mxu0 0.0
        %1067 = vmatpush1.msra.mxu0 0.0
        %1068 = vmatprep.subr.mxu0 0.0
        %1069 = vmatpush1.msra.mxu0 0.0
        %1070 = vmatprep.subr.mxu0 0.0
        %1071 = vmatpush1.msra.mxu0 0.0
        %1072 = vmatprep.subr.mxu0 0.0
        %1073 = vmatpush1.msra.mxu0 0.0
        %1074 = vmatprep.mubr.f32.mxu0 0.0
        %1075 = vmatmul.mubr.f32.gmra.mrb[0].mxu0 %v928
        %v1076 = vpop.f32.mrb[0].mxu0
        %v1077 = vadd.f32 0.0, %v1076
        %v1078 = vpop.f32.mrb[0].mxu0
        %1079 = vmatprep.mubr.f32.mxu0 0.0
        %1080 = vmatmul.mubr.f32.gmra.mrb[0].mxu0 %v931
        %v1081 = vpop.f32.mrb[0].mxu0
        %v1082 = vadd.f32 0.0, %v1081
        %v1083 = vpop.f32.mrb[0].mxu0
        %1084 = vdwg.mxu0
        %s1085 = scalar_lea.vmem [#allocation10], 1152
        %v1086 = vld [vmem:[%s1085] sm:$0xff]
        %v1087 = vld [vmem:[%s1085 + $0x8] sm:$0xff]
        %v1088 = vld [vmem:[%s1085 + $0x10] sm:$0xff]
        %v1089 = vld [vmem:[%s1085 + $0x18] sm:$0xff]
        %v1090 = vld [vmem:[%s1085 + $0x20] sm:$0xff]
        %v1091 = vld [vmem:[%s1085 + $0x28] sm:$0xff]
        %v1092 = vld [vmem:[%s1085 + $0x30] sm:$0xff]
        %v1093 = vld [vmem:[%s1085 + $0x38] sm:$0xff]
        %v1094 = vld [vmem:[%s1085 + $0x40] sm:$0xff]
        %v1095 = vld [vmem:[%s1085 + $0x48] sm:$0xff]
        %v1096 = vld [vmem:[%s1085 + $0x50] sm:$0xff]
        %v1097 = vld [vmem:[%s1085 + $0x58] sm:$0xff]
        %v1098 = vld [vmem:[%s1085 + $0x60] sm:$0xff]
        %v1099 = vld [vmem:[%s1085 + $0x68] sm:$0xff]
        %v1100 = vld [vmem:[%s1085 + $0x70] sm:$0xff]
        %v1101 = vld [vmem:[%s1085 + $0x78] sm:$0xff]
        %v1102 = vld [vmem:[%s1085 + $0x80] sm:$0xff]
        %v1103 = vld [vmem:[%s1085 + $0x88] sm:$0xff]
        %v1104 = vld [vmem:[%s1085 + $0x90] sm:$0xff]
        %v1105 = vld [vmem:[%s1085 + $0x98] sm:$0xff]
        %v1106 = vld [vmem:[%s1085 + $0xa0] sm:$0xff]
        %v1107 = vld [vmem:[%s1085 + $0xa8] sm:$0xff]
        %v1108 = vld [vmem:[%s1085 + $0xb0] sm:$0xff]
        %v1109 = vld [vmem:[%s1085 + $0xb8] sm:$0xff]
        %v1110 = vld [vmem:[%s1085 + $0xc0] sm:$0xff]
        %v1111 = vld [vmem:[%s1085 + $0xc8] sm:$0xff]
        %v1112 = vld [vmem:[%s1085 + $0xd0] sm:$0xff]
        %v1113 = vld [vmem:[%s1085 + $0xd8] sm:$0xff]
        %v1114 = vld [vmem:[%s1085 + $0xe0] sm:$0xff]
        %v1115 = vld [vmem:[%s1085 + $0xe8] sm:$0xff]
        %v1116 = vld [vmem:[%s1085 + $0xf0] sm:$0xff]
        %v1117 = vld [vmem:[%s1085 + $0xf8] sm:$0xff]
        %v1118 = vld [vmem:[%s1085 + $0x100] sm:$0xff]
        %v1119 = vld [vmem:[%s1085 + $0x108] sm:$0xff]
        %v1120 = vld [vmem:[%s1085 + $0x110] sm:$0xff]
        %v1121 = vld [vmem:[%s1085 + $0x118] sm:$0xff]
        %v1122 = vld [vmem:[%s1085 + $0x120] sm:$0xff]
        %v1123 = vld [vmem:[%s1085 + $0x128] sm:$0xff]
        %v1124 = vld [vmem:[%s1085 + $0x130] sm:$0xff]
        %v1125 = vld [vmem:[%s1085 + $0x138] sm:$0xff]
        %v1126 = vld [vmem:[%s1085 + $0x140] sm:$0xff]
        %v1127 = vld [vmem:[%s1085 + $0x148] sm:$0xff]
        %v1128 = vld [vmem:[%s1085 + $0x150] sm:$0xff]
        %v1129 = vld [vmem:[%s1085 + $0x158] sm:$0xff]
        %v1130 = vld [vmem:[%s1085 + $0x160] sm:$0xff]
        %v1131 = vld [vmem:[%s1085 + $0x168] sm:$0xff]
        %v1132 = vld [vmem:[%s1085 + $0x170] sm:$0xff]
        %v1133 = vld [vmem:[%s1085 + $0x178] sm:$0xff]
        %v1134 = vld [vmem:[%s1085 + $0x180] sm:$0xff]
        %v1135 = vld [vmem:[%s1085 + $0x188] sm:$0xff]
        %v1136 = vld [vmem:[%s1085 + $0x190] sm:$0xff]
        %v1137 = vld [vmem:[%s1085 + $0x198] sm:$0xff]
        %v1138 = vld [vmem:[%s1085 + $0x1a0] sm:$0xff]
        %v1139 = vld [vmem:[%s1085 + $0x1a8] sm:$0xff]
        %v1140 = vld [vmem:[%s1085 + $0x1b0] sm:$0xff]
        %v1141 = vld [vmem:[%s1085 + $0x1b8] sm:$0xff]
        %v1142 = vld [vmem:[%s1085 + $0x1c0] sm:$0xff]
        %v1143 = vld [vmem:[%s1085 + $0x1c8] sm:$0xff]
        %v1144 = vld [vmem:[%s1085 + $0x1d0] sm:$0xff]
        %v1145 = vld [vmem:[%s1085 + $0x1d8] sm:$0xff]
        %v1146 = vld [vmem:[%s1085 + $0x1e0] sm:$0xff]
        %v1147 = vld [vmem:[%s1085 + $0x1e8] sm:$0xff]
        %v1148 = vld [vmem:[%s1085 + $0x1f0] sm:$0xff]
        %v1149 = vld [vmem:[%s1085 + $0x1f8] sm:$0xff]
        %v1150 = vld [vmem:[%s1085 + $0x200] sm:$0xff]
        %v1151 = vld [vmem:[%s1085 + $0x208] sm:$0xff]
        %v1152 = vld [vmem:[%s1085 + $0x210] sm:$0xff]
        %v1153 = vld [vmem:[%s1085 + $0x218] sm:$0xff]
        %v1154 = vld [vmem:[%s1085 + $0x220] sm:$0xff]
        %v1155 = vld [vmem:[%s1085 + $0x228] sm:$0xff]
        %v1156 = vld [vmem:[%s1085 + $0x230] sm:$0xff]
        %v1157 = vld [vmem:[%s1085 + $0x238] sm:$0xff]
        %v1158 = vld [vmem:[%s1085 + $0x240] sm:$0xff]
        %v1159 = vld [vmem:[%s1085 + $0x248] sm:$0xff]
        %v1160 = vld [vmem:[%s1085 + $0x250] sm:$0xff]
        %v1161 = vld [vmem:[%s1085 + $0x258] sm:$0xff]
        %v1162 = vld [vmem:[%s1085 + $0x260] sm:$0xff]
        %v1163 = vld [vmem:[%s1085 + $0x268] sm:$0xff]
        %v1164 = vld [vmem:[%s1085 + $0x270] sm:$0xff]
        %v1165 = vld [vmem:[%s1085 + $0x278] sm:$0xff]
        %v1166 = vld [vmem:[%s1085 + $0x280] sm:$0xff]
        %v1167 = vld [vmem:[%s1085 + $0x288] sm:$0xff]
        %v1168 = vld [vmem:[%s1085 + $0x290] sm:$0xff]
        %v1169 = vld [vmem:[%s1085 + $0x298] sm:$0xff]
        %v1170 = vld [vmem:[%s1085 + $0x2a0] sm:$0xff]
        %v1171 = vld [vmem:[%s1085 + $0x2a8] sm:$0xff]
        %v1172 = vld [vmem:[%s1085 + $0x2b0] sm:$0xff]
        %v1173 = vld [vmem:[%s1085 + $0x2b8] sm:$0xff]
        %v1174 = vld [vmem:[%s1085 + $0x2c0] sm:$0xff]
        %v1175 = vld [vmem:[%s1085 + $0x2c8] sm:$0xff]
        %v1176 = vld [vmem:[%s1085 + $0x2d0] sm:$0xff]
        %v1177 = vld [vmem:[%s1085 + $0x2d8] sm:$0xff]
        %v1178 = vld [vmem:[%s1085 + $0x2e0] sm:$0xff]
        %v1179 = vld [vmem:[%s1085 + $0x2e8] sm:$0xff]
        %v1180 = vld [vmem:[%s1085 + $0x2f0] sm:$0xff]
        %v1181 = vld [vmem:[%s1085 + $0x2f8] sm:$0xff]
        %v1182 = vld [vmem:[%s1085 + $0x300] sm:$0xff]
        %v1183 = vld [vmem:[%s1085 + $0x308] sm:$0xff]
        %v1184 = vld [vmem:[%s1085 + $0x310] sm:$0xff]
        %v1185 = vld [vmem:[%s1085 + $0x318] sm:$0xff]
        %v1186 = vld [vmem:[%s1085 + $0x320] sm:$0xff]
        %v1187 = vld [vmem:[%s1085 + $0x328] sm:$0xff]
        %v1188 = vld [vmem:[%s1085 + $0x330] sm:$0xff]
        %v1189 = vld [vmem:[%s1085 + $0x338] sm:$0xff]
        %v1190 = vld [vmem:[%s1085 + $0x340] sm:$0xff]
        %v1191 = vld [vmem:[%s1085 + $0x348] sm:$0xff]
        %v1192 = vld [vmem:[%s1085 + $0x350] sm:$0xff]
        %v1193 = vld [vmem:[%s1085 + $0x358] sm:$0xff]
        %v1194 = vld [vmem:[%s1085 + $0x360] sm:$0xff]
        %v1195 = vld [vmem:[%s1085 + $0x368] sm:$0xff]
        %v1196 = vld [vmem:[%s1085 + $0x370] sm:$0xff]
        %v1197 = vld [vmem:[%s1085 + $0x378] sm:$0xff]
        %v1198 = vld [vmem:[%s1085 + $0x380] sm:$0xff]
        %v1199 = vld [vmem:[%s1085 + $0x388] sm:$0xff]
        %v1200 = vld [vmem:[%s1085 + $0x390] sm:$0xff]
        %v1201 = vld [vmem:[%s1085 + $0x398] sm:$0xff]
        %v1202 = vld [vmem:[%s1085 + $0x3a0] sm:$0xff]
        %v1203 = vld [vmem:[%s1085 + $0x3a8] sm:$0xff]
        %v1204 = vld [vmem:[%s1085 + $0x3b0] sm:$0xff]
        %v1205 = vld [vmem:[%s1085 + $0x3b8] sm:$0xff]
        %v1206 = vld [vmem:[%s1085 + $0x3c0] sm:$0xff]
        %v1207 = vld [vmem:[%s1085 + $0x3c8] sm:$0xff]
        %v1208 = vld [vmem:[%s1085 + $0x3d0] sm:$0xff]
        %v1209 = vld [vmem:[%s1085 + $0x3d8] sm:$0xff]
        %v1210 = vld [vmem:[%s1085 + $0x3e0] sm:$0xff]
        %v1211 = vld [vmem:[%s1085 + $0x3e8] sm:$0xff]
        %v1212 = vld [vmem:[%s1085 + $0x3f0] sm:$0xff]
        %v1213 = vld [vmem:[%s1085 + $0x3f8] sm:$0xff]
        %v1214 = vld [vmem:[%s1085 + $0x400] sm:$0xff]
        %v1215 = vld [vmem:[%s1085 + $0x408] sm:$0xff]
        %v1216 = vld [vmem:[%s1085 + $0x410] sm:$0xff]
        %v1217 = vld [vmem:[%s1085 + $0x418] sm:$0xff]
        %v1218 = vld [vmem:[%s1085 + $0x420] sm:$0xff]
        %v1219 = vld [vmem:[%s1085 + $0x428] sm:$0xff]
        %v1220 = vld [vmem:[%s1085 + $0x430] sm:$0xff]
        %v1221 = vld [vmem:[%s1085 + $0x438] sm:$0xff]
        %v1222 = vld [vmem:[%s1085 + $0x440] sm:$0xff]
        %v1223 = vld [vmem:[%s1085 + $0x448] sm:$0xff]
        %v1224 = vld [vmem:[%s1085 + $0x450] sm:$0xff]
        %v1225 = vld [vmem:[%s1085 + $0x458] sm:$0xff]
        %v1226 = vld [vmem:[%s1085 + $0x460] sm:$0xff]
        %v1227 = vld [vmem:[%s1085 + $0x468] sm:$0xff]
        %v1228 = vld [vmem:[%s1085 + $0x470] sm:$0xff]
        %v1229 = vld [vmem:[%s1085 + $0x478] sm:$0xff]
        %1230 = vmatprep.subr.mxu0 %v1087
        %1231 = vmatpush1.msra.mxu0 %v1086
        %1232 = vmatprep.subr.mxu0 %v1090
        %1233 = vmatpush1.msra.mxu0 %v1089
        %1234 = vmatprep.subr.mxu0 %v1093
        %1235 = vmatpush1.msra.mxu0 %v1092
        %1236 = vmatprep.subr.mxu0 %v1096
        %1237 = vmatpush1.msra.mxu0 %v1095
        %1238 = vmatprep.subr.mxu0 %v1099
        %1239 = vmatpush1.msra.mxu0 %v1098
        %1240 = vmatprep.subr.mxu0 %v1102
        %1241 = vmatpush1.msra.mxu0 %v1101
        %1242 = vmatprep.subr.mxu0 %v1105
        %1243 = vmatpush1.msra.mxu0 %v1104
        %1244 = vmatprep.subr.mxu0 %v1108
        %1245 = vmatpush1.msra.mxu0 %v1107
        %1246 = vmatprep.subr.mxu0 %v1111
        %1247 = vmatpush1.msra.mxu0 %v1110
        %1248 = vmatprep.subr.mxu0 %v1114
        %1249 = vmatpush1.msra.mxu0 %v1113
        %1250 = vmatprep.subr.mxu0 %v1117
        %1251 = vmatpush1.msra.mxu0 %v1116
        %1252 = vmatprep.subr.mxu0 %v1120
        %1253 = vmatpush1.msra.mxu0 %v1119
        %1254 = vmatprep.subr.mxu0 %v1123
        %1255 = vmatpush1.msra.mxu0 %v1122
        %1256 = vmatprep.subr.mxu0 %v1126
        %1257 = vmatpush1.msra.mxu0 %v1125
        %1258 = vmatprep.subr.mxu0 %v1129
        %1259 = vmatpush1.msra.mxu0 %v1128
        %1260 = vmatprep.subr.mxu0 %v1132
        %1261 = vmatpush1.msra.mxu0 %v1131
        %1262 = vmatprep.subr.mxu0 %v1135
        %1263 = vmatpush1.msra.mxu0 %v1134
        %1264 = vmatprep.subr.mxu0 %v1138
        %1265 = vmatpush1.msra.mxu0 %v1137
        %1266 = vmatprep.subr.mxu0 %v1141
        %1267 = vmatpush1.msra.mxu0 %v1140
        %1268 = vmatprep.subr.mxu0 %v1144
        %1269 = vmatpush1.msra.mxu0 %v1143
        %1270 = vmatprep.subr.mxu0 %v1147
        %1271 = vmatpush1.msra.mxu0 %v1146
        %1272 = vmatprep.subr.mxu0 %v1150
        %1273 = vmatpush1.msra.mxu0 %v1149
        %1274 = vmatprep.subr.mxu0 %v1153
        %1275 = vmatpush1.msra.mxu0 %v1152
        %1276 = vmatprep.subr.mxu0 %v1156
        %1277 = vmatpush1.msra.mxu0 %v1155
        %1278 = vmatprep.subr.mxu0 %v1159
        %1279 = vmatpush1.msra.mxu0 %v1158
        %1280 = vmatprep.subr.mxu0 %v1162
        %1281 = vmatpush1.msra.mxu0 %v1161
        %1282 = vmatprep.subr.mxu0 %v1165
        %1283 = vmatpush1.msra.mxu0 %v1164
        %1284 = vmatprep.subr.mxu0 %v1168
        %1285 = vmatpush1.msra.mxu0 %v1167
        %1286 = vmatprep.subr.mxu0 %v1171
        %1287 = vmatpush1.msra.mxu0 %v1170
        %1288 = vmatprep.subr.mxu0 %v1174
        %1289 = vmatpush1.msra.mxu0 %v1173
        %1290 = vmatprep.subr.mxu0 %v1177
        %1291 = vmatpush1.msra.mxu0 %v1176
        %1292 = vmatprep.subr.mxu0 %v1180
        %1293 = vmatpush1.msra.mxu0 %v1179
        %1294 = vmatprep.mubr.f32.mxu0 %v1002
        %1295 = vmatmul.mubr.f32.gmra.mrb[0].mxu0 %v1000
        %v1296 = vpop.f32.mrb[0].mxu0
        %v1297 = vadd.f32 0.0, %v1296
        %v1298 = vpop.f32.mrb[0].mxu0
        %v1299 = vadd.f32 0.0, %v1298
        %1300 = vmatprep.mubr.f32.mxu0 %v1008
        %1301 = vmatmul.mubr.f32.gmra.mrb[0].mxu0 %v1006
        %v1302 = vpop.f32.mrb[0].mxu0
        %v1303 = vadd.f32 0.0, %v1302
        %v1304 = vpop.f32.mrb[0].mxu0
        %v1305 = vadd.f32 0.0, %v1304
        %1306 = vdwg.mxu0
        %1307 = vmatprep.subr.mxu0 %v1183
        %1308 = vmatpush1.msra.mxu0 %v1182
        %1309 = vmatprep.subr.mxu0 %v1186
        %1310 = vmatpush1.msra.mxu0 %v1185
        %1311 = vmatprep.subr.mxu0 %v1189
        %1312 = vmatpush1.msra.mxu0 %v1188
        %1313 = vmatprep.subr.mxu0 %v1192
        %1314 = vmatpush1.msra.mxu0 %v1191
        %1315 = vmatprep.subr.mxu0 %v1195
        %1316 = vmatpush1.msra.mxu0 %v1194
        %1317 = vmatprep.subr.mxu0 %v1198
        %1318 = vmatpush1.msra.mxu0 %v1197
        %1319 = vmatprep.subr.mxu0 %v1201
        %1320 = vmatpush1.msra.mxu0 %v1200
        %1321 = vmatprep.subr.mxu0 %v1204
        %1322 = vmatpush1.msra.mxu0 %v1203
        %1323 = vmatprep.subr.mxu0 %v1207
        %1324 = vmatpush1.msra.mxu0 %v1206
        %1325 = vmatprep.subr.mxu0 %v1210
        %1326 = vmatpush1.msra.mxu0 %v1209
        %1327 = vmatprep.subr.mxu0 %v1213
        %1328 = vmatpush1.msra.mxu0 %v1212
        %1329 = vmatprep.subr.mxu0 %v1216
        %1330 = vmatpush1.msra.mxu0 %v1215
        %1331 = vmatprep.subr.mxu0 %v1219
        %1332 = vmatpush1.msra.mxu0 %v1218
        %1333 = vmatprep.subr.mxu0 %v1222
        %1334 = vmatpush1.msra.mxu0 %v1221
        %1335 = vmatprep.subr.mxu0 %v1225
        %1336 = vmatpush1.msra.mxu0 %v1224
        %1337 = vmatprep.subr.mxu0 %v1228
        %1338 = vmatpush1.msra.mxu0 %v1227
        %1339 = vmatprep.subr.mxu0 0.0
        %1340 = vmatpush1.msra.mxu0 0.0
        %1341 = vmatprep.subr.mxu0 0.0
        %1342 = vmatpush1.msra.mxu0 0.0
        %1343 = vmatprep.subr.mxu0 0.0
        %1344 = vmatpush1.msra.mxu0 0.0
        %1345 = vmatprep.subr.mxu0 0.0
        %1346 = vmatpush1.msra.mxu0 0.0
        %1347 = vmatprep.subr.mxu0 0.0
        %1348 = vmatpush1.msra.mxu0 0.0
        %1349 = vmatprep.subr.mxu0 0.0
        %1350 = vmatpush1.msra.mxu0 0.0
        %1351 = vmatprep.subr.mxu0 0.0
        %1352 = vmatpush1.msra.mxu0 0.0
        %1353 = vmatprep.subr.mxu0 0.0
        %1354 = vmatpush1.msra.mxu0 0.0
        %1355 = vmatprep.subr.mxu0 0.0
        %1356 = vmatpush1.msra.mxu0 0.0
        %1357 = vmatprep.subr.mxu0 0.0
        %1358 = vmatpush1.msra.mxu0 0.0
        %1359 = vmatprep.subr.mxu0 0.0
        %1360 = vmatpush1.msra.mxu0 0.0
        %1361 = vmatprep.subr.mxu0 0.0
        %1362 = vmatpush1.msra.mxu0 0.0
        %1363 = vmatprep.subr.mxu0 0.0
        %1364 = vmatpush1.msra.mxu0 0.0
        %1365 = vmatprep.subr.mxu0 0.0
        %1366 = vmatpush1.msra.mxu0 0.0
        %1367 = vmatprep.subr.mxu0 0.0
        %1368 = vmatpush1.msra.mxu0 0.0
        %1369 = vmatprep.subr.mxu0 0.0
        %1370 = vmatpush1.msra.mxu0 0.0
        %1371 = vmatprep.mubr.f32.mxu0 0.0
        %1372 = vmatmul.mubr.f32.gmra.mrb[0].mxu0 %v1077
        %v1373 = vpop.f32.mrb[0].mxu0
        %v1374 = vadd.f32 %v1297, %v1373
        %v1375 = vpop.f32.mrb[0].mxu0
        %v1376 = vadd.f32 %v1299, %v1375
        %1377 = vmatprep.mubr.f32.mxu0 0.0
        %1378 = vmatmul.mubr.f32.gmra.mrb[0].mxu0 %v1082
        %v1379 = vpop.f32.mrb[0].mxu0
        %v1380 = vadd.f32 %v1303, %v1379
        %v1381 = vpop.f32.mrb[0].mxu0
        %v1382 = vadd.f32 %v1305, %v1381
        %1383 = vdwg.mxu0
        %1384 = vmatprep.subr.mxu0 0.0
        %1385 = vmatpush1.msra.mxu0 %v1088
        %1386 = vmatprep.subr.mxu0 0.0
        %1387 = vmatpush1.msra.mxu0 %v1091
        %1388 = vmatprep.subr.mxu0 0.0
        %1389 = vmatpush1.msra.mxu0 %v1094
        %1390 = vmatprep.subr.mxu0 0.0
        %1391 = vmatpush1.msra.mxu0 %v1097
        %1392 = vmatprep.subr.mxu0 0.0
        %1393 = vmatpush1.msra.mxu0 %v1100
        %1394 = vmatprep.subr.mxu0 0.0
        %1395 = vmatpush1.msra.mxu0 %v1103
        %1396 = vmatprep.subr.mxu0 0.0
        %1397 = vmatpush1.msra.mxu0 %v1106
        %1398 = vmatprep.subr.mxu0 0.0
        %1399 = vmatpush1.msra.mxu0 %v1109
        %1400 = vmatprep.subr.mxu0 0.0
        %1401 = vmatpush1.msra.mxu0 %v1112
        %1402 = vmatprep.subr.mxu0 0.0
        %1403 = vmatpush1.msra.mxu0 %v1115
        %1404 = vmatprep.subr.mxu0 0.0
        %1405 = vmatpush1.msra.mxu0 %v1118
        %1406 = vmatprep.subr.mxu0 0.0
        %1407 = vmatpush1.msra.mxu0 %v1121
        %1408 = vmatprep.subr.mxu0 0.0
        %1409 = vmatpush1.msra.mxu0 %v1124
        %1410 = vmatprep.subr.mxu0 0.0
        %1411 = vmatpush1.msra.mxu0 %v1127
        %1412 = vmatprep.subr.mxu0 0.0
        %1413 = vmatpush1.msra.mxu0 %v1130
        %1414 = vmatprep.subr.mxu0 0.0
        %1415 = vmatpush1.msra.mxu0 %v1133
        %1416 = vmatprep.subr.mxu0 0.0
        %1417 = vmatpush1.msra.mxu0 %v1136
        %1418 = vmatprep.subr.mxu0 0.0
        %1419 = vmatpush1.msra.mxu0 %v1139
        %1420 = vmatprep.subr.mxu0 0.0
        %1421 = vmatpush1.msra.mxu0 %v1142
        %1422 = vmatprep.subr.mxu0 0.0
        %1423 = vmatpush1.msra.mxu0 %v1145
        %1424 = vmatprep.subr.mxu0 0.0
        %1425 = vmatpush1.msra.mxu0 %v1148
        %1426 = vmatprep.subr.mxu0 0.0
        %1427 = vmatpush1.msra.mxu0 %v1151
        %1428 = vmatprep.subr.mxu0 0.0
        %1429 = vmatpush1.msra.mxu0 %v1154
        %1430 = vmatprep.subr.mxu0 0.0
        %1431 = vmatpush1.msra.mxu0 %v1157
        %1432 = vmatprep.subr.mxu0 0.0
        %1433 = vmatpush1.msra.mxu0 %v1160
        %1434 = vmatprep.subr.mxu0 0.0
        %1435 = vmatpush1.msra.mxu0 %v1163
        %1436 = vmatprep.subr.mxu0 0.0
        %1437 = vmatpush1.msra.mxu0 %v1166
        %1438 = vmatprep.subr.mxu0 0.0
        %1439 = vmatpush1.msra.mxu0 %v1169
        %1440 = vmatprep.subr.mxu0 0.0
        %1441 = vmatpush1.msra.mxu0 %v1172
        %1442 = vmatprep.subr.mxu0 0.0
        %1443 = vmatpush1.msra.mxu0 %v1175
        %1444 = vmatprep.subr.mxu0 0.0
        %1445 = vmatpush1.msra.mxu0 %v1178
        %1446 = vmatprep.subr.mxu0 0.0
        %1447 = vmatpush1.msra.mxu0 %v1181
        %1448 = vmatprep.mubr.f32.mxu0 %v1002
        %1449 = vmatmul.mubr.f32.gmra.mrb[0].mxu0 %v1000
        %v1450 = vpop.f32.mrb[0].mxu0
        %v1451 = vadd.f32 0.0, %v1450
        %v1452 = vpop.f32.mrb[0].mxu0
        %1453 = vmatprep.mubr.f32.mxu0 %v1008
        %1454 = vmatmul.mubr.f32.gmra.mrb[0].mxu0 %v1006
        %v1455 = vpop.f32.mrb[0].mxu0
        %v1456 = vadd.f32 0.0, %v1455
        %v1457 = vpop.f32.mrb[0].mxu0
        %1458 = vdwg.mxu0
        %1459 = vmatprep.subr.mxu0 0.0
        %1460 = vmatpush1.msra.mxu0 %v1184
        %1461 = vmatprep.subr.mxu0 0.0
        %1462 = vmatpush1.msra.mxu0 %v1187
        %1463 = vmatprep.subr.mxu0 0.0
        %1464 = vmatpush1.msra.mxu0 %v1190
        %1465 = vmatprep.subr.mxu0 0.0
        %1466 = vmatpush1.msra.mxu0 %v1193
        %1467 = vmatprep.subr.mxu0 0.0
        %1468 = vmatpush1.msra.mxu0 %v1196
        %1469 = vmatprep.subr.mxu0 0.0
        %1470 = vmatpush1.msra.mxu0 %v1199
        %1471 = vmatprep.subr.mxu0 0.0
        %1472 = vmatpush1.msra.mxu0 %v1202
        %1473 = vmatprep.subr.mxu0 0.0
        %1474 = vmatpush1.msra.mxu0 %v1205
        %1475 = vmatprep.subr.mxu0 0.0
        %1476 = vmatpush1.msra.mxu0 %v1208
        %1477 = vmatprep.subr.mxu0 0.0
        %1478 = vmatpush1.msra.mxu0 %v1211
        %1479 = vmatprep.subr.mxu0 0.0
        %1480 = vmatpush1.msra.mxu0 %v1214
        %1481 = vmatprep.subr.mxu0 0.0
        %1482 = vmatpush1.msra.mxu0 %v1217
        %1483 = vmatprep.subr.mxu0 0.0
        %1484 = vmatpush1.msra.mxu0 %v1220
        %1485 = vmatprep.subr.mxu0 0.0
        %1486 = vmatpush1.msra.mxu0 %v1223
        %1487 = vmatprep.subr.mxu0 0.0
        %1488 = vmatpush1.msra.mxu0 %v1226
        %1489 = vmatprep.subr.mxu0 0.0
        %1490 = vmatpush1.msra.mxu0 %v1229
        %1491 = vmatprep.subr.mxu0 0.0
        %1492 = vmatpush1.msra.mxu0 0.0
        %1493 = vmatprep.subr.mxu0 0.0
        %1494 = vmatpush1.msra.mxu0 0.0
        %1495 = vmatprep.subr.mxu0 0.0
        %1496 = vmatpush1.msra.mxu0 0.0
        %1497 = vmatprep.subr.mxu0 0.0
        %1498 = vmatpush1.msra.mxu0 0.0
        %1499 = vmatprep.subr.mxu0 0.0
        %1500 = vmatpush1.msra.mxu0 0.0
        %1501 = vmatprep.subr.mxu0 0.0
        %1502 = vmatpush1.msra.mxu0 0.0
        %1503 = vmatprep.subr.mxu0 0.0
        %1504 = vmatpush1.msra.mxu0 0.0
        %1505 = vmatprep.subr.mxu0 0.0
        %1506 = vmatpush1.msra.mxu0 0.0
        %1507 = vmatprep.subr.mxu0 0.0
        %1508 = vmatpush1.msra.mxu0 0.0
        %1509 = vmatprep.subr.mxu0 0.0
        %1510 = vmatpush1.msra.mxu0 0.0
        %1511 = vmatprep.subr.mxu0 0.0
        %1512 = vmatpush1.msra.mxu0 0.0
        %1513 = vmatprep.subr.mxu0 0.0
        %1514 = vmatpush1.msra.mxu0 0.0
        %1515 = vmatprep.subr.mxu0 0.0
        %1516 = vmatpush1.msra.mxu0 0.0
        %1517 = vmatprep.subr.mxu0 0.0
        %1518 = vmatpush1.msra.mxu0 0.0
        %1519 = vmatprep.subr.mxu0 0.0
        %1520 = vmatpush1.msra.mxu0 0.0
        %1521 = vmatprep.subr.mxu0 0.0
        %1522 = vmatpush1.msra.mxu0 0.0
        %1523 = vmatprep.mubr.f32.mxu0 0.0
        %1524 = vmatmul.mubr.f32.gmra.mrb[0].mxu0 %v1077
        %v1525 = vpop.f32.mrb[0].mxu0
        %v1526 = vadd.f32 %v1451, %v1525
        %v1527 = vpop.f32.mrb[0].mxu0
        %1528 = vmatprep.mubr.f32.mxu0 0.0
        %1529 = vmatmul.mubr.f32.gmra.mrb[0].mxu0 %v1082
        %v1530 = vpop.f32.mrb[0].mxu0
        %v1531 = vadd.f32 %v1456, %v1530
        %v1532 = vpop.f32.mrb[0].mxu0
        %1533 = vdwg.mxu0
        %1534 = vmatprep.subr.mxu0 %v781
        %1535 = vmatpush1.msra.mxu0 %v780
        %1536 = vmatprep.subr.mxu0 %v784
        %1537 = vmatpush1.msra.mxu0 %v783
        %1538 = vmatprep.subr.mxu0 %v787
        %1539 = vmatpush1.msra.mxu0 %v786
        %1540 = vmatprep.subr.mxu0 %v790
        %1541 = vmatpush1.msra.mxu0 %v789
        %1542 = vmatprep.subr.mxu0 %v793
        %1543 = vmatpush1.msra.mxu0 %v792
        %1544 = vmatprep.subr.mxu0 %v796
        %1545 = vmatpush1.msra.mxu0 %v795
        %1546 = vmatprep.subr.mxu0 %v799
        %1547 = vmatpush1.msra.mxu0 %v798
        %1548 = vmatprep.subr.mxu0 %v802
        %1549 = vmatpush1.msra.mxu0 %v801
        %1550 = vmatprep.subr.mxu0 %v805
        %1551 = vmatpush1.msra.mxu0 %v804
        %1552 = vmatprep.subr.mxu0 %v808
        %1553 = vmatpush1.msra.mxu0 %v807
        %1554 = vmatprep.subr.mxu0 %v811
        %1555 = vmatpush1.msra.mxu0 %v810
        %1556 = vmatprep.subr.mxu0 %v814
        %1557 = vmatpush1.msra.mxu0 %v813
        %1558 = vmatprep.subr.mxu0 %v817
        %1559 = vmatpush1.msra.mxu0 %v816
        %1560 = vmatprep.subr.mxu0 %v820
        %1561 = vmatpush1.msra.mxu0 %v819
        %1562 = vmatprep.subr.mxu0 %v823
        %1563 = vmatpush1.msra.mxu0 %v822
        %1564 = vmatprep.subr.mxu0 %v826
        %1565 = vmatpush1.msra.mxu0 %v825
        %1566 = vmatprep.subr.mxu0 %v829
        %1567 = vmatpush1.msra.mxu0 %v828
        %1568 = vmatprep.subr.mxu0 %v832
        %1569 = vmatpush1.msra.mxu0 %v831
        %1570 = vmatprep.subr.mxu0 %v835
        %1571 = vmatpush1.msra.mxu0 %v834
        %1572 = vmatprep.subr.mxu0 %v838
        %1573 = vmatpush1.msra.mxu0 %v837
        %1574 = vmatprep.subr.mxu0 %v841
        %1575 = vmatpush1.msra.mxu0 %v840
        %1576 = vmatprep.subr.mxu0 %v844
        %1577 = vmatpush1.msra.mxu0 %v843
        %1578 = vmatprep.subr.mxu0 %v847
        %1579 = vmatpush1.msra.mxu0 %v846
        %1580 = vmatprep.subr.mxu0 %v850
        %1581 = vmatpush1.msra.mxu0 %v849
        %1582 = vmatprep.subr.mxu0 %v853
        %1583 = vmatpush1.msra.mxu0 %v852
        %1584 = vmatprep.subr.mxu0 %v856
        %1585 = vmatpush1.msra.mxu0 %v855
        %1586 = vmatprep.subr.mxu0 %v859
        %1587 = vmatpush1.msra.mxu0 %v858
        %1588 = vmatprep.subr.mxu0 %v862
        %1589 = vmatpush1.msra.mxu0 %v861
        %1590 = vmatprep.subr.mxu0 %v865
        %1591 = vmatpush1.msra.mxu0 %v864
        %1592 = vmatprep.subr.mxu0 %v868
        %1593 = vmatpush1.msra.mxu0 %v867
        %1594 = vmatprep.subr.mxu0 %v871
        %1595 = vmatpush1.msra.mxu0 %v870
        %1596 = vmatprep.subr.mxu0 %v874
        %1597 = vmatpush1.msra.mxu0 %v873
        %1598 = vmatprep.mubr.f32.mxu0 %v697
        %1599 = vmatmul.mubr.f32.gmra.mrb[0].mxu0 %v695
        %v1600 = vpop.f32.mrb[0].mxu0
        %v1601 = vadd.f32 %v1374, %v1600
        %v1602 = vpop.f32.mrb[0].mxu0
        %v1603 = vadd.f32 %v1376, %v1602
        %1604 = vmatprep.mubr.f32.mxu0 %v703
        %1605 = vmatmul.mubr.f32.gmra.mrb[0].mxu0 %v701
        %v1606 = vpop.f32.mrb[0].mxu0
        %v1607 = vadd.f32 %v1380, %v1606
        %v1608 = vpop.f32.mrb[0].mxu0
        %v1609 = vadd.f32 %v1382, %v1608
        %1610 = vdwg.mxu0
        %1611 = vmatprep.subr.mxu0 %v877
        %1612 = vmatpush1.msra.mxu0 %v876
        %1613 = vmatprep.subr.mxu0 %v880
        %1614 = vmatpush1.msra.mxu0 %v879
        %1615 = vmatprep.subr.mxu0 %v883
        %1616 = vmatpush1.msra.mxu0 %v882
        %1617 = vmatprep.subr.mxu0 %v886
        %1618 = vmatpush1.msra.mxu0 %v885
        %1619 = vmatprep.subr.mxu0 %v889
        %1620 = vmatpush1.msra.mxu0 %v888
        %1621 = vmatprep.subr.mxu0 %v892
        %1622 = vmatpush1.msra.mxu0 %v891
        %1623 = vmatprep.subr.mxu0 %v895
        %1624 = vmatpush1.msra.mxu0 %v894
        %1625 = vmatprep.subr.mxu0 %v898
        %1626 = vmatpush1.msra.mxu0 %v897
        %1627 = vmatprep.subr.mxu0 %v901
        %1628 = vmatpush1.msra.mxu0 %v900
        %1629 = vmatprep.subr.mxu0 %v904
        %1630 = vmatpush1.msra.mxu0 %v903
        %1631 = vmatprep.subr.mxu0 %v907
        %1632 = vmatpush1.msra.mxu0 %v906
        %1633 = vmatprep.subr.mxu0 %v910
        %1634 = vmatpush1.msra.mxu0 %v909
        %1635 = vmatprep.subr.mxu0 %v913
        %1636 = vmatpush1.msra.mxu0 %v912
        %1637 = vmatprep.subr.mxu0 %v916
        %1638 = vmatpush1.msra.mxu0 %v915
        %1639 = vmatprep.subr.mxu0 %v919
        %1640 = vmatpush1.msra.mxu0 %v918
        %1641 = vmatprep.subr.mxu0 %v922
        %1642 = vmatpush1.msra.mxu0 %v921
        %1643 = vmatprep.subr.mxu0 0.0
        %1644 = vmatpush1.msra.mxu0 0.0
        %1645 = vmatprep.subr.mxu0 0.0
        %1646 = vmatpush1.msra.mxu0 0.0
        %1647 = vmatprep.subr.mxu0 0.0
        %1648 = vmatpush1.msra.mxu0 0.0
        %1649 = vmatprep.subr.mxu0 0.0
        %1650 = vmatpush1.msra.mxu0 0.0
        %1651 = vmatprep.subr.mxu0 0.0
        %1652 = vmatpush1.msra.mxu0 0.0
        %1653 = vmatprep.subr.mxu0 0.0
        %1654 = vmatpush1.msra.mxu0 0.0
        %1655 = vmatprep.subr.mxu0 0.0
        %1656 = vmatpush1.msra.mxu0 0.0
        %1657 = vmatprep.subr.mxu0 0.0
        %1658 = vmatpush1.msra.mxu0 0.0
        %1659 = vmatprep.subr.mxu0 0.0
        %1660 = vmatpush1.msra.mxu0 0.0
        %1661 = vmatprep.subr.mxu0 0.0
        %1662 = vmatpush1.msra.mxu0 0.0
        %1663 = vmatprep.subr.mxu0 0.0
        %1664 = vmatpush1.msra.mxu0 0.0
        %1665 = vmatprep.subr.mxu0 0.0
        %1666 = vmatpush1.msra.mxu0 0.0
        %1667 = vmatprep.subr.mxu0 0.0
        %1668 = vmatpush1.msra.mxu0 0.0
        %1669 = vmatprep.subr.mxu0 0.0
        %1670 = vmatpush1.msra.mxu0 0.0
        %1671 = vmatprep.subr.mxu0 0.0
        %1672 = vmatpush1.msra.mxu0 0.0
        %1673 = vmatprep.subr.mxu0 0.0
        %1674 = vmatpush1.msra.mxu0 0.0
        %1675 = vmatprep.mubr.f32.mxu0 0.0
        %1676 = vmatmul.mubr.f32.gmra.mrb[0].mxu0 %v772
        %v1677 = vpop.f32.mrb[0].mxu0
        %v1678 = vadd.f32 %v1601, %v1677
        %v1679 = vpop.f32.mrb[0].mxu0
        %v1680 = vadd.f32 %v1603, %v1679
        %1681 = vmatprep.mubr.f32.mxu0 0.0
        %1682 = vmatmul.mubr.f32.gmra.mrb[0].mxu0 %v777
        %v1683 = vpop.f32.mrb[0].mxu0
        %v1684 = vadd.f32 %v1607, %v1683
        %v1685 = vpop.f32.mrb[0].mxu0
        %v1686 = vadd.f32 %v1609, %v1685
        %1687 = vdwg.mxu0
        %1688 = vmatprep.subr.mxu0 0.0
        %1689 = vmatpush1.msra.mxu0 %v782
        %1690 = vmatprep.subr.mxu0 0.0
        %1691 = vmatpush1.msra.mxu0 %v785
        %1692 = vmatprep.subr.mxu0 0.0
        %1693 = vmatpush1.msra.mxu0 %v788
        %1694 = vmatprep.subr.mxu0 0.0
        %1695 = vmatpush1.msra.mxu0 %v791
        %1696 = vmatprep.subr.mxu0 0.0
        %1697 = vmatpush1.msra.mxu0 %v794
        %1698 = vmatprep.subr.mxu0 0.0
        %1699 = vmatpush1.msra.mxu0 %v797
        %1700 = vmatprep.subr.mxu0 0.0
        %1701 = vmatpush1.msra.mxu0 %v800
        %1702 = vmatprep.subr.mxu0 0.0
        %1703 = vmatpush1.msra.mxu0 %v803
        %1704 = vmatprep.subr.mxu0 0.0
        %1705 = vmatpush1.msra.mxu0 %v806
        %1706 = vmatprep.subr.mxu0 0.0
        %1707 = vmatpush1.msra.mxu0 %v809
        %1708 = vmatprep.subr.mxu0 0.0
        %1709 = vmatpush1.msra.mxu0 %v812
        %1710 = vmatprep.subr.mxu0 0.0
        %1711 = vmatpush1.msra.mxu0 %v815
        %1712 = vmatprep.subr.mxu0 0.0
        %1713 = vmatpush1.msra.mxu0 %v818
        %1714 = vmatprep.subr.mxu0 0.0
        %1715 = vmatpush1.msra.mxu0 %v821
        %1716 = vmatprep.subr.mxu0 0.0
        %1717 = vmatpush1.msra.mxu0 %v824
        %1718 = vmatprep.subr.mxu0 0.0
        %1719 = vmatpush1.msra.mxu0 %v827
        %1720 = vmatprep.subr.mxu0 0.0
        %1721 = vmatpush1.msra.mxu0 %v830
        %1722 = vmatprep.subr.mxu0 0.0
        %1723 = vmatpush1.msra.mxu0 %v833
        %1724 = vmatprep.subr.mxu0 0.0
        %1725 = vmatpush1.msra.mxu0 %v836
        %1726 = vmatprep.subr.mxu0 0.0
        %1727 = vmatpush1.msra.mxu0 %v839
        %1728 = vmatprep.subr.mxu0 0.0
        %1729 = vmatpush1.msra.mxu0 %v842
        %1730 = vmatprep.subr.mxu0 0.0
        %1731 = vmatpush1.msra.mxu0 %v845
        %1732 = vmatprep.subr.mxu0 0.0
        %1733 = vmatpush1.msra.mxu0 %v848
        %1734 = vmatprep.subr.mxu0 0.0
        %1735 = vmatpush1.msra.mxu0 %v851
        %1736 = vmatprep.subr.mxu0 0.0
        %1737 = vmatpush1.msra.mxu0 %v854
        %1738 = vmatprep.subr.mxu0 0.0
        %1739 = vmatpush1.msra.mxu0 %v857
        %1740 = vmatprep.subr.mxu0 0.0
        %1741 = vmatpush1.msra.mxu0 %v860
        %1742 = vmatprep.subr.mxu0 0.0
        %1743 = vmatpush1.msra.mxu0 %v863
        %1744 = vmatprep.subr.mxu0 0.0
        %1745 = vmatpush1.msra.mxu0 %v866
        %1746 = vmatprep.subr.mxu0 0.0
        %1747 = vmatpush1.msra.mxu0 %v869
        %1748 = vmatprep.subr.mxu0 0.0
        %1749 = vmatpush1.msra.mxu0 %v872
        %1750 = vmatprep.subr.mxu0 0.0
        %1751 = vmatpush1.msra.mxu0 %v875
        %1752 = vmatprep.mubr.f32.mxu0 %v697
        %1753 = vmatmul.mubr.f32.gmra.mrb[0].mxu0 %v695
        %v1754 = vpop.f32.mrb[0].mxu0
        %v1755 = vadd.f32 %v1526, %v1754
        %v1756 = vpop.f32.mrb[0].mxu0
        %1757 = vmatprep.mubr.f32.mxu0 %v703
        %1758 = vmatmul.mubr.f32.gmra.mrb[0].mxu0 %v701
        %v1759 = vpop.f32.mrb[0].mxu0
        %v1760 = vadd.f32 %v1531, %v1759
        %v1761 = vpop.f32.mrb[0].mxu0
        %1762 = vdwg.mxu0
        %1763 = vmatprep.subr.mxu0 0.0
        %1764 = vmatpush1.msra.mxu0 %v878
        %1765 = vmatprep.subr.mxu0 0.0
        %1766 = vmatpush1.msra.mxu0 %v881
        %1767 = vmatprep.subr.mxu0 0.0
        %1768 = vmatpush1.msra.mxu0 %v884
        %1769 = vmatprep.subr.mxu0 0.0
        %1770 = vmatpush1.msra.mxu0 %v887
        %1771 = vmatprep.subr.mxu0 0.0
        %1772 = vmatpush1.msra.mxu0 %v890
        %1773 = vmatprep.subr.mxu0 0.0
        %1774 = vmatpush1.msra.mxu0 %v893
        %1775 = vmatprep.subr.mxu0 0.0
        %1776 = vmatpush1.msra.mxu0 %v896
        %1777 = vmatprep.subr.mxu0 0.0
        %1778 = vmatpush1.msra.mxu0 %v899
        %1779 = vmatprep.subr.mxu0 0.0
        %1780 = vmatpush1.msra.mxu0 %v902
        %1781 = vmatprep.subr.mxu0 0.0
        %1782 = vmatpush1.msra.mxu0 %v905
        %1783 = vmatprep.subr.mxu0 0.0
        %1784 = vmatpush1.msra.mxu0 %v908
        %1785 = vmatprep.subr.mxu0 0.0
        %1786 = vmatpush1.msra.mxu0 %v911
        %1787 = vmatprep.subr.mxu0 0.0
        %1788 = vmatpush1.msra.mxu0 %v914
        %1789 = vmatprep.subr.mxu0 0.0
        %1790 = vmatpush1.msra.mxu0 %v917
        %1791 = vmatprep.subr.mxu0 0.0
        %1792 = vmatpush1.msra.mxu0 %v920
        %1793 = vmatprep.subr.mxu0 0.0
        %1794 = vmatpush1.msra.mxu0 %v923
        %1795 = vmatprep.subr.mxu0 0.0
        %1796 = vmatpush1.msra.mxu0 0.0
        %1797 = vmatprep.subr.mxu0 0.0
        %1798 = vmatpush1.msra.mxu0 0.0
        %1799 = vmatprep.subr.mxu0 0.0
        %1800 = vmatpush1.msra.mxu0 0.0
        %1801 = vmatprep.subr.mxu0 0.0
        %1802 = vmatpush1.msra.mxu0 0.0
        %1803 = vmatprep.subr.mxu0 0.0
        %1804 = vmatpush1.msra.mxu0 0.0
        %1805 = vmatprep.subr.mxu0 0.0
        %1806 = vmatpush1.msra.mxu0 0.0
        %1807 = vmatprep.subr.mxu0 0.0
        %1808 = vmatpush1.msra.mxu0 0.0
        %1809 = vmatprep.subr.mxu0 0.0
        %1810 = vmatpush1.msra.mxu0 0.0
        %1811 = vmatprep.subr.mxu0 0.0
        %1812 = vmatpush1.msra.mxu0 0.0
        %1813 = vmatprep.subr.mxu0 0.0
        %1814 = vmatpush1.msra.mxu0 0.0
        %1815 = vmatprep.subr.mxu0 0.0
        %1816 = vmatpush1.msra.mxu0 0.0
        %1817 = vmatprep.subr.mxu0 0.0
        %1818 = vmatpush1.msra.mxu0 0.0
        %1819 = vmatprep.subr.mxu0 0.0
        %1820 = vmatpush1.msra.mxu0 0.0
        %1821 = vmatprep.subr.mxu0 0.0
        %1822 = vmatpush1.msra.mxu0 0.0
        %1823 = vmatprep.subr.mxu0 0.0
        %1824 = vmatpush1.msra.mxu0 0.0
        %1825 = vmatprep.subr.mxu0 0.0
        %1826 = vmatpush1.msra.mxu0 0.0
        %1827 = vmatprep.mubr.f32.mxu0 0.0
        %1828 = vmatmul.mubr.f32.gmra.mrb[0].mxu0 %v772
        %v1829 = vpop.f32.mrb[0].mxu0
        %v1830 = vadd.f32 %v1755, %v1829
        %v1831 = vpop.f32.mrb[0].mxu0
        %1832 = vmatprep.mubr.f32.mxu0 0.0
        %1833 = vmatmul.mubr.f32.gmra.mrb[0].mxu0 %v777
        %v1834 = vpop.f32.mrb[0].mxu0
        %v1835 = vadd.f32 %v1760, %v1834
        %v1836 = vpop.f32.mrb[0].mxu0
        %1837 = vdwg.mxu0
        %s1838 = scalar_lea.vmem [#allocation8], 32
        %v1839 = vld [vmem:[%s1838] sm:$0xff]
        %v1840 = vld [vmem:[%s1838 + $0x8] sm:$0xff]
        %v1842 = vsel %vm621, %v1839, 0
        %v1845 = vsel %vm621, %v1840, 0
        %1847 = vmatprep.subr.mxu0 %v614
        %1848 = vmatpush1.msra.mxu0 %v613
        %1849 = vmatprep.subr.mxu0 %v617
        %1850 = vmatpush1.msra.mxu0 %v616
        %1851 = vmatprep.subr.mxu0 0.0
        %1852 = vmatpush1.msra.mxu0 0.0
        %1853 = vmatprep.subr.mxu0 0.0
        %1854 = vmatpush1.msra.mxu0 0.0
        %1855 = vmatprep.subr.mxu0 0.0
        %1856 = vmatpush1.msra.mxu0 0.0
        %1857 = vmatprep.subr.mxu0 0.0
        %1858 = vmatpush1.msra.mxu0 0.0
        %1859 = vmatprep.subr.mxu0 0.0
        %1860 = vmatpush1.msra.mxu0 0.0
        %1861 = vmatprep.subr.mxu0 0.0
        %1862 = vmatpush1.msra.mxu0 0.0
        %1863 = vmatprep.subr.mxu0 0.0
        %1864 = vmatpush1.msra.mxu0 0.0
        %1865 = vmatprep.subr.mxu0 0.0
        %1866 = vmatpush1.msra.mxu0 0.0
        %1867 = vmatprep.subr.mxu0 0.0
        %1868 = vmatpush1.msra.mxu0 0.0
        %1869 = vmatprep.subr.mxu0 0.0
        %1870 = vmatpush1.msra.mxu0 0.0
        %1871 = vmatprep.subr.mxu0 0.0
        %1872 = vmatpush1.msra.mxu0 0.0
        %1873 = vmatprep.subr.mxu0 0.0
        %1874 = vmatpush1.msra.mxu0 0.0
        %1875 = vmatprep.subr.mxu0 0.0
        %1876 = vmatpush1.msra.mxu0 0.0
        %1877 = vmatprep.subr.mxu0 0.0
        %1878 = vmatpush1.msra.mxu0 0.0
        %1879 = vmatprep.subr.mxu0 0.0
        %1880 = vmatpush1.msra.mxu0 0.0
        %1881 = vmatprep.subr.mxu0 0.0
        %1882 = vmatpush1.msra.mxu0 0.0
        %1883 = vmatprep.subr.mxu0 0.0
        %1884 = vmatpush1.msra.mxu0 0.0
        %1885 = vmatprep.subr.mxu0 0.0
        %1886 = vmatpush1.msra.mxu0 0.0
        %1887 = vmatprep.subr.mxu0 0.0
        %1888 = vmatpush1.msra.mxu0 0.0
        %1889 = vmatprep.subr.mxu0 0.0
        %1890 = vmatpush1.msra.mxu0 0.0
        %1891 = vmatprep.subr.mxu0 0.0
        %1892 = vmatpush1.msra.mxu0 0.0
        %1893 = vmatprep.subr.mxu0 0.0
        %1894 = vmatpush1.msra.mxu0 0.0
        %1895 = vmatprep.subr.mxu0 0.0
        %1896 = vmatpush1.msra.mxu0 0.0
        %1897 = vmatprep.subr.mxu0 0.0
        %1898 = vmatpush1.msra.mxu0 0.0
        %1899 = vmatprep.subr.mxu0 0.0
        %1900 = vmatpush1.msra.mxu0 0.0
        %1901 = vmatprep.subr.mxu0 0.0
        %1902 = vmatpush1.msra.mxu0 0.0
        %1903 = vmatprep.subr.mxu0 0.0
        %1904 = vmatpush1.msra.mxu0 0.0
        %1905 = vmatprep.subr.mxu0 0.0
        %1906 = vmatpush1.msra.mxu0 0.0
        %1907 = vmatprep.subr.mxu0 0.0
        %1908 = vmatpush1.msra.mxu0 0.0
        %1909 = vmatprep.subr.mxu0 0.0
        %1910 = vmatpush1.msra.mxu0 0.0
        %1911 = vmatprep.mubr.f32.mxu0 0.0
        %1912 = vmatmul.mubr.f32.gmra.mrb[0].mxu0 %v1842
        %v1913 = vpop.f32.mrb[0].mxu0
        %v1914 = vadd.f32 0.0, %v1913
        %v1915 = vpop.f32.mrb[0].mxu0
        %v1916 = vadd.f32 0.0, %v1915
        %1917 = vmatprep.mubr.f32.mxu0 0.0
        %1918 = vmatmul.mubr.f32.gmra.mrb[0].mxu0 %v1845
        %v1919 = vpop.f32.mrb[0].mxu0
        %v1920 = vadd.f32 0.0, %v1919
        %v1921 = vpop.f32.mrb[0].mxu0
        %v1922 = vadd.f32 0.0, %v1921
        %1923 = vdwg.mxu0
        %1924 = vmatprep.subr.mxu0 0.0
        %1925 = vmatpush1.msra.mxu0 %v615
        %1926 = vmatprep.subr.mxu0 0.0
        %1927 = vmatpush1.msra.mxu0 %v618
        %1928 = vmatprep.subr.mxu0 0.0
        %1929 = vmatpush1.msra.mxu0 0.0
        %1930 = vmatprep.subr.mxu0 0.0
        %1931 = vmatpush1.msra.mxu0 0.0
        %1932 = vmatprep.subr.mxu0 0.0
        %1933 = vmatpush1.msra.mxu0 0.0
        %1934 = vmatprep.subr.mxu0 0.0
        %1935 = vmatpush1.msra.mxu0 0.0
        %1936 = vmatprep.subr.mxu0 0.0
        %1937 = vmatpush1.msra.mxu0 0.0
        %1938 = vmatprep.subr.mxu0 0.0
        %1939 = vmatpush1.msra.mxu0 0.0
        %1940 = vmatprep.subr.mxu0 0.0
        %1941 = vmatpush1.msra.mxu0 0.0
        %1942 = vmatprep.subr.mxu0 0.0
        %1943 = vmatpush1.msra.mxu0 0.0
        %1944 = vmatprep.subr.mxu0 0.0
        %1945 = vmatpush1.msra.mxu0 0.0
        %1946 = vmatprep.subr.mxu0 0.0
        %1947 = vmatpush1.msra.mxu0 0.0
        %1948 = vmatprep.subr.mxu0 0.0
        %1949 = vmatpush1.msra.mxu0 0.0
        %1950 = vmatprep.subr.mxu0 0.0
        %1951 = vmatpush1.msra.mxu0 0.0
        %1952 = vmatprep.subr.mxu0 0.0
        %1953 = vmatpush1.msra.mxu0 0.0
        %1954 = vmatprep.subr.mxu0 0.0
        %1955 = vmatpush1.msra.mxu0 0.0
        %1956 = vmatprep.subr.mxu0 0.0
        %1957 = vmatpush1.msra.mxu0 0.0
        %1958 = vmatprep.subr.mxu0 0.0
        %1959 = vmatpush1.msra.mxu0 0.0
        %1960 = vmatprep.subr.mxu0 0.0
        %1961 = vmatpush1.msra.mxu0 0.0
        %1962 = vmatprep.subr.mxu0 0.0
        %1963 = vmatpush1.msra.mxu0 0.0
        %1964 = vmatprep.subr.mxu0 0.0
        %1965 = vmatpush1.msra.mxu0 0.0
        %1966 = vmatprep.subr.mxu0 0.0
        %1967 = vmatpush1.msra.mxu0 0.0
        %1968 = vmatprep.subr.mxu0 0.0
        %1969 = vmatpush1.msra.mxu0 0.0
        %1970 = vmatprep.subr.mxu0 0.0
        %1971 = vmatpush1.msra.mxu0 0.0
        %1972 = vmatprep.subr.mxu0 0.0
        %1973 = vmatpush1.msra.mxu0 0.0
        %1974 = vmatprep.subr.mxu0 0.0
        %1975 = vmatpush1.msra.mxu0 0.0
        %1976 = vmatprep.subr.mxu0 0.0
        %1977 = vmatpush1.msra.mxu0 0.0
        %1978 = vmatprep.subr.mxu0 0.0
        %1979 = vmatpush1.msra.mxu0 0.0
        %1980 = vmatprep.subr.mxu0 0.0
        %1981 = vmatpush1.msra.mxu0 0.0
        %1982 = vmatprep.subr.mxu0 0.0
        %1983 = vmatpush1.msra.mxu0 0.0
        %1984 = vmatprep.subr.mxu0 0.0
        %1985 = vmatpush1.msra.mxu0 0.0
        %1986 = vmatprep.subr.mxu0 0.0
        %1987 = vmatpush1.msra.mxu0 0.0
        %1988 = vmatprep.mubr.f32.mxu0 0.0
        %1989 = vmatmul.mubr.f32.gmra.mrb[0].mxu0 %v1842
        %v1990 = vpop.f32.mrb[0].mxu0
        %v1991 = vadd.f32 0.0, %v1990
        %v1992 = vpop.f32.mrb[0].mxu0
        %1993 = vmatprep.mubr.f32.mxu0 0.0
        %1994 = vmatmul.mubr.f32.gmra.mrb[0].mxu0 %v1845
        %v1995 = vpop.f32.mrb[0].mxu0
        %v1996 = vadd.f32 0.0, %v1995
        %v1997 = vpop.f32.mrb[0].mxu0
        %1998 = vdwg.mxu0
        %s1999 = scalar_lea.vmem [#allocation10], 2304
        %v2000 = vld [vmem:[%s1999] sm:$0xff]
        %v2001 = vld [vmem:[%s1999 + $0x8] sm:$0xff]
        %v2002 = vld [vmem:[%s1999 + $0x10] sm:$0xff]
        %v2003 = vld [vmem:[%s1999 + $0x18] sm:$0xff]
        %v2004 = vld [vmem:[%s1999 + $0x20] sm:$0xff]
        %v2005 = vld [vmem:[%s1999 + $0x28] sm:$0xff]
        %v2006 = vld [vmem:[%s1999 + $0x30] sm:$0xff]
        %v2007 = vld [vmem:[%s1999 + $0x38] sm:$0xff]
        %v2008 = vld [vmem:[%s1999 + $0x40] sm:$0xff]
        %v2009 = vld [vmem:[%s1999 + $0x48] sm:$0xff]
        %v2010 = vld [vmem:[%s1999 + $0x50] sm:$0xff]
        %v2011 = vld [vmem:[%s1999 + $0x58] sm:$0xff]
        %v2012 = vld [vmem:[%s1999 + $0x60] sm:$0xff]
        %v2013 = vld [vmem:[%s1999 + $0x68] sm:$0xff]
        %v2014 = vld [vmem:[%s1999 + $0x70] sm:$0xff]
        %v2015 = vld [vmem:[%s1999 + $0x78] sm:$0xff]
        %v2016 = vld [vmem:[%s1999 + $0x80] sm:$0xff]
        %v2017 = vld [vmem:[%s1999 + $0x88] sm:$0xff]
        %v2018 = vld [vmem:[%s1999 + $0x90] sm:$0xff]
        %v2019 = vld [vmem:[%s1999 + $0x98] sm:$0xff]
        %v2020 = vld [vmem:[%s1999 + $0xa0] sm:$0xff]
        %v2021 = vld [vmem:[%s1999 + $0xa8] sm:$0xff]
        %v2022 = vld [vmem:[%s1999 + $0xb0] sm:$0xff]
        %v2023 = vld [vmem:[%s1999 + $0xb8] sm:$0xff]
        %v2024 = vld [vmem:[%s1999 + $0xc0] sm:$0xff]
        %v2025 = vld [vmem:[%s1999 + $0xc8] sm:$0xff]
        %v2026 = vld [vmem:[%s1999 + $0xd0] sm:$0xff]
        %v2027 = vld [vmem:[%s1999 + $0xd8] sm:$0xff]
        %v2028 = vld [vmem:[%s1999 + $0xe0] sm:$0xff]
        %v2029 = vld [vmem:[%s1999 + $0xe8] sm:$0xff]
        %v2030 = vld [vmem:[%s1999 + $0xf0] sm:$0xff]
        %v2031 = vld [vmem:[%s1999 + $0xf8] sm:$0xff]
        %v2032 = vld [vmem:[%s1999 + $0x100] sm:$0xff]
        %v2033 = vld [vmem:[%s1999 + $0x108] sm:$0xff]
        %v2034 = vld [vmem:[%s1999 + $0x110] sm:$0xff]
        %v2035 = vld [vmem:[%s1999 + $0x118] sm:$0xff]
        %v2036 = vld [vmem:[%s1999 + $0x120] sm:$0xff]
        %v2037 = vld [vmem:[%s1999 + $0x128] sm:$0xff]
        %v2038 = vld [vmem:[%s1999 + $0x130] sm:$0xff]
        %v2039 = vld [vmem:[%s1999 + $0x138] sm:$0xff]
        %v2040 = vld [vmem:[%s1999 + $0x140] sm:$0xff]
        %v2041 = vld [vmem:[%s1999 + $0x148] sm:$0xff]
        %v2042 = vld [vmem:[%s1999 + $0x150] sm:$0xff]
        %v2043 = vld [vmem:[%s1999 + $0x158] sm:$0xff]
        %v2044 = vld [vmem:[%s1999 + $0x160] sm:$0xff]
        %v2045 = vld [vmem:[%s1999 + $0x168] sm:$0xff]
        %v2046 = vld [vmem:[%s1999 + $0x170] sm:$0xff]
        %v2047 = vld [vmem:[%s1999 + $0x178] sm:$0xff]
        %v2048 = vld [vmem:[%s1999 + $0x180] sm:$0xff]
        %v2049 = vld [vmem:[%s1999 + $0x188] sm:$0xff]
        %v2050 = vld [vmem:[%s1999 + $0x190] sm:$0xff]
        %v2051 = vld [vmem:[%s1999 + $0x198] sm:$0xff]
        %v2052 = vld [vmem:[%s1999 + $0x1a0] sm:$0xff]
        %v2053 = vld [vmem:[%s1999 + $0x1a8] sm:$0xff]
        %v2054 = vld [vmem:[%s1999 + $0x1b0] sm:$0xff]
        %v2055 = vld [vmem:[%s1999 + $0x1b8] sm:$0xff]
        %v2056 = vld [vmem:[%s1999 + $0x1c0] sm:$0xff]
        %v2057 = vld [vmem:[%s1999 + $0x1c8] sm:$0xff]
        %v2058 = vld [vmem:[%s1999 + $0x1d0] sm:$0xff]
        %v2059 = vld [vmem:[%s1999 + $0x1d8] sm:$0xff]
        %v2060 = vld [vmem:[%s1999 + $0x1e0] sm:$0xff]
        %v2061 = vld [vmem:[%s1999 + $0x1e8] sm:$0xff]
        %v2062 = vld [vmem:[%s1999 + $0x1f0] sm:$0xff]
        %v2063 = vld [vmem:[%s1999 + $0x1f8] sm:$0xff]
        %v2064 = vld [vmem:[%s1999 + $0x200] sm:$0xff]
        %v2065 = vld [vmem:[%s1999 + $0x208] sm:$0xff]
        %v2066 = vld [vmem:[%s1999 + $0x210] sm:$0xff]
        %v2067 = vld [vmem:[%s1999 + $0x218] sm:$0xff]
        %v2068 = vld [vmem:[%s1999 + $0x220] sm:$0xff]
        %v2069 = vld [vmem:[%s1999 + $0x228] sm:$0xff]
        %v2070 = vld [vmem:[%s1999 + $0x230] sm:$0xff]
        %v2071 = vld [vmem:[%s1999 + $0x238] sm:$0xff]
        %v2072 = vld [vmem:[%s1999 + $0x240] sm:$0xff]
        %v2073 = vld [vmem:[%s1999 + $0x248] sm:$0xff]
        %v2074 = vld [vmem:[%s1999 + $0x250] sm:$0xff]
        %v2075 = vld [vmem:[%s1999 + $0x258] sm:$0xff]
        %v2076 = vld [vmem:[%s1999 + $0x260] sm:$0xff]
        %v2077 = vld [vmem:[%s1999 + $0x268] sm:$0xff]
        %v2078 = vld [vmem:[%s1999 + $0x270] sm:$0xff]
        %v2079 = vld [vmem:[%s1999 + $0x278] sm:$0xff]
        %v2080 = vld [vmem:[%s1999 + $0x280] sm:$0xff]
        %v2081 = vld [vmem:[%s1999 + $0x288] sm:$0xff]
        %v2082 = vld [vmem:[%s1999 + $0x290] sm:$0xff]
        %v2083 = vld [vmem:[%s1999 + $0x298] sm:$0xff]
        %v2084 = vld [vmem:[%s1999 + $0x2a0] sm:$0xff]
        %v2085 = vld [vmem:[%s1999 + $0x2a8] sm:$0xff]
        %v2086 = vld [vmem:[%s1999 + $0x2b0] sm:$0xff]
        %v2087 = vld [vmem:[%s1999 + $0x2b8] sm:$0xff]
        %v2088 = vld [vmem:[%s1999 + $0x2c0] sm:$0xff]
        %v2089 = vld [vmem:[%s1999 + $0x2c8] sm:$0xff]
        %v2090 = vld [vmem:[%s1999 + $0x2d0] sm:$0xff]
        %v2091 = vld [vmem:[%s1999 + $0x2d8] sm:$0xff]
        %v2092 = vld [vmem:[%s1999 + $0x2e0] sm:$0xff]
        %v2093 = vld [vmem:[%s1999 + $0x2e8] sm:$0xff]
        %v2094 = vld [vmem:[%s1999 + $0x2f0] sm:$0xff]
        %v2095 = vld [vmem:[%s1999 + $0x2f8] sm:$0xff]
        %v2096 = vld [vmem:[%s1999 + $0x300] sm:$0xff]
        %v2097 = vld [vmem:[%s1999 + $0x308] sm:$0xff]
        %v2098 = vld [vmem:[%s1999 + $0x310] sm:$0xff]
        %v2099 = vld [vmem:[%s1999 + $0x318] sm:$0xff]
        %v2100 = vld [vmem:[%s1999 + $0x320] sm:$0xff]
        %v2101 = vld [vmem:[%s1999 + $0x328] sm:$0xff]
        %v2102 = vld [vmem:[%s1999 + $0x330] sm:$0xff]
        %v2103 = vld [vmem:[%s1999 + $0x338] sm:$0xff]
        %v2104 = vld [vmem:[%s1999 + $0x340] sm:$0xff]
        %v2105 = vld [vmem:[%s1999 + $0x348] sm:$0xff]
        %v2106 = vld [vmem:[%s1999 + $0x350] sm:$0xff]
        %v2107 = vld [vmem:[%s1999 + $0x358] sm:$0xff]
        %v2108 = vld [vmem:[%s1999 + $0x360] sm:$0xff]
        %v2109 = vld [vmem:[%s1999 + $0x368] sm:$0xff]
        %v2110 = vld [vmem:[%s1999 + $0x370] sm:$0xff]
        %v2111 = vld [vmem:[%s1999 + $0x378] sm:$0xff]
        %v2112 = vld [vmem:[%s1999 + $0x380] sm:$0xff]
        %v2113 = vld [vmem:[%s1999 + $0x388] sm:$0xff]
        %v2114 = vld [vmem:[%s1999 + $0x390] sm:$0xff]
        %v2115 = vld [vmem:[%s1999 + $0x398] sm:$0xff]
        %v2116 = vld [vmem:[%s1999 + $0x3a0] sm:$0xff]
        %v2117 = vld [vmem:[%s1999 + $0x3a8] sm:$0xff]
        %v2118 = vld [vmem:[%s1999 + $0x3b0] sm:$0xff]
        %v2119 = vld [vmem:[%s1999 + $0x3b8] sm:$0xff]
        %v2120 = vld [vmem:[%s1999 + $0x3c0] sm:$0xff]
        %v2121 = vld [vmem:[%s1999 + $0x3c8] sm:$0xff]
        %v2122 = vld [vmem:[%s1999 + $0x3d0] sm:$0xff]
        %v2123 = vld [vmem:[%s1999 + $0x3d8] sm:$0xff]
        %v2124 = vld [vmem:[%s1999 + $0x3e0] sm:$0xff]
        %v2125 = vld [vmem:[%s1999 + $0x3e8] sm:$0xff]
        %v2126 = vld [vmem:[%s1999 + $0x3f0] sm:$0xff]
        %v2127 = vld [vmem:[%s1999 + $0x3f8] sm:$0xff]
        %v2128 = vld [vmem:[%s1999 + $0x400] sm:$0xff]
        %v2129 = vld [vmem:[%s1999 + $0x408] sm:$0xff]
        %v2130 = vld [vmem:[%s1999 + $0x410] sm:$0xff]
        %v2131 = vld [vmem:[%s1999 + $0x418] sm:$0xff]
        %v2132 = vld [vmem:[%s1999 + $0x420] sm:$0xff]
        %v2133 = vld [vmem:[%s1999 + $0x428] sm:$0xff]
        %v2134 = vld [vmem:[%s1999 + $0x430] sm:$0xff]
        %v2135 = vld [vmem:[%s1999 + $0x438] sm:$0xff]
        %v2136 = vld [vmem:[%s1999 + $0x440] sm:$0xff]
        %v2137 = vld [vmem:[%s1999 + $0x448] sm:$0xff]
        %v2138 = vld [vmem:[%s1999 + $0x450] sm:$0xff]
        %v2139 = vld [vmem:[%s1999 + $0x458] sm:$0xff]
        %v2140 = vld [vmem:[%s1999 + $0x460] sm:$0xff]
        %v2141 = vld [vmem:[%s1999 + $0x468] sm:$0xff]
        %v2142 = vld [vmem:[%s1999 + $0x470] sm:$0xff]
        %v2143 = vld [vmem:[%s1999 + $0x478] sm:$0xff]
        %2144 = vmatprep.subr.mxu0 %v2001
        %2145 = vmatpush1.msra.mxu0 %v2000
        %2146 = vmatprep.subr.mxu0 %v2004
        %2147 = vmatpush1.msra.mxu0 %v2003
        %2148 = vmatprep.subr.mxu0 %v2007
        %2149 = vmatpush1.msra.mxu0 %v2006
        %2150 = vmatprep.subr.mxu0 %v2010
        %2151 = vmatpush1.msra.mxu0 %v2009
        %2152 = vmatprep.subr.mxu0 %v2013
        %2153 = vmatpush1.msra.mxu0 %v2012
        %2154 = vmatprep.subr.mxu0 %v2016
        %2155 = vmatpush1.msra.mxu0 %v2015
        %2156 = vmatprep.subr.mxu0 %v2019
        %2157 = vmatpush1.msra.mxu0 %v2018
        %2158 = vmatprep.subr.mxu0 %v2022
        %2159 = vmatpush1.msra.mxu0 %v2021
        %2160 = vmatprep.subr.mxu0 %v2025
        %2161 = vmatpush1.msra.mxu0 %v2024
        %2162 = vmatprep.subr.mxu0 %v2028
        %2163 = vmatpush1.msra.mxu0 %v2027
        %2164 = vmatprep.subr.mxu0 %v2031
        %2165 = vmatpush1.msra.mxu0 %v2030
        %2166 = vmatprep.subr.mxu0 %v2034
        %2167 = vmatpush1.msra.mxu0 %v2033
        %2168 = vmatprep.subr.mxu0 %v2037
        %2169 = vmatpush1.msra.mxu0 %v2036
        %2170 = vmatprep.subr.mxu0 %v2040
        %2171 = vmatpush1.msra.mxu0 %v2039
        %2172 = vmatprep.subr.mxu0 %v2043
        %2173 = vmatpush1.msra.mxu0 %v2042
        %2174 = vmatprep.subr.mxu0 %v2046
        %2175 = vmatpush1.msra.mxu0 %v2045
        %2176 = vmatprep.subr.mxu0 %v2049
        %2177 = vmatpush1.msra.mxu0 %v2048
        %2178 = vmatprep.subr.mxu0 %v2052
        %2179 = vmatpush1.msra.mxu0 %v2051
        %2180 = vmatprep.subr.mxu0 %v2055
        %2181 = vmatpush1.msra.mxu0 %v2054
        %2182 = vmatprep.subr.mxu0 %v2058
        %2183 = vmatpush1.msra.mxu0 %v2057
        %2184 = vmatprep.subr.mxu0 %v2061
        %2185 = vmatpush1.msra.mxu0 %v2060
        %2186 = vmatprep.subr.mxu0 %v2064
        %2187 = vmatpush1.msra.mxu0 %v2063
        %2188 = vmatprep.subr.mxu0 %v2067
        %2189 = vmatpush1.msra.mxu0 %v2066
        %2190 = vmatprep.subr.mxu0 %v2070
        %2191 = vmatpush1.msra.mxu0 %v2069
        %2192 = vmatprep.subr.mxu0 %v2073
        %2193 = vmatpush1.msra.mxu0 %v2072
        %2194 = vmatprep.subr.mxu0 %v2076
        %2195 = vmatpush1.msra.mxu0 %v2075
        %2196 = vmatprep.subr.mxu0 %v2079
        %2197 = vmatpush1.msra.mxu0 %v2078
        %2198 = vmatprep.subr.mxu0 %v2082
        %2199 = vmatpush1.msra.mxu0 %v2081
        %2200 = vmatprep.subr.mxu0 %v2085
        %2201 = vmatpush1.msra.mxu0 %v2084
        %2202 = vmatprep.subr.mxu0 %v2088
        %2203 = vmatpush1.msra.mxu0 %v2087
        %2204 = vmatprep.subr.mxu0 %v2091
        %2205 = vmatpush1.msra.mxu0 %v2090
        %2206 = vmatprep.subr.mxu0 %v2094
        %2207 = vmatpush1.msra.mxu0 %v2093
        %2208 = vmatprep.mubr.f32.mxu0 %v1916
        %2209 = vmatmul.mubr.f32.gmra.mrb[0].mxu0 %v1914
        %v2210 = vpop.f32.mrb[0].mxu0
        %v2211 = vadd.f32 0.0, %v2210
        %v2212 = vpop.f32.mrb[0].mxu0
        %v2213 = vadd.f32 0.0, %v2212
        %2214 = vmatprep.mubr.f32.mxu0 %v1922
        %2215 = vmatmul.mubr.f32.gmra.mrb[0].mxu0 %v1920
        %v2216 = vpop.f32.mrb[0].mxu0
        %v2217 = vadd.f32 0.0, %v2216
        %v2218 = vpop.f32.mrb[0].mxu0
        %v2219 = vadd.f32 0.0, %v2218
        %2220 = vdwg.mxu0
        %2221 = vmatprep.subr.mxu0 %v2097
        %2222 = vmatpush1.msra.mxu0 %v2096
        %2223 = vmatprep.subr.mxu0 %v2100
        %2224 = vmatpush1.msra.mxu0 %v2099
        %2225 = vmatprep.subr.mxu0 %v2103
        %2226 = vmatpush1.msra.mxu0 %v2102
        %2227 = vmatprep.subr.mxu0 %v2106
        %2228 = vmatpush1.msra.mxu0 %v2105
        %2229 = vmatprep.subr.mxu0 %v2109
        %2230 = vmatpush1.msra.mxu0 %v2108
        %2231 = vmatprep.subr.mxu0 %v2112
        %2232 = vmatpush1.msra.mxu0 %v2111
        %2233 = vmatprep.subr.mxu0 %v2115
        %2234 = vmatpush1.msra.mxu0 %v2114
        %2235 = vmatprep.subr.mxu0 %v2118
        %2236 = vmatpush1.msra.mxu0 %v2117
        %2237 = vmatprep.subr.mxu0 %v2121
        %2238 = vmatpush1.msra.mxu0 %v2120
        %2239 = vmatprep.subr.mxu0 %v2124
        %2240 = vmatpush1.msra.mxu0 %v2123
        %2241 = vmatprep.subr.mxu0 %v2127
        %2242 = vmatpush1.msra.mxu0 %v2126
        %2243 = vmatprep.subr.mxu0 %v2130
        %2244 = vmatpush1.msra.mxu0 %v2129
        %2245 = vmatprep.subr.mxu0 %v2133
        %2246 = vmatpush1.msra.mxu0 %v2132
        %2247 = vmatprep.subr.mxu0 %v2136
        %2248 = vmatpush1.msra.mxu0 %v2135
        %2249 = vmatprep.subr.mxu0 %v2139
        %2250 = vmatpush1.msra.mxu0 %v2138
        %2251 = vmatprep.subr.mxu0 %v2142
        %2252 = vmatpush1.msra.mxu0 %v2141
        %2253 = vmatprep.subr.mxu0 0.0
        %2254 = vmatpush1.msra.mxu0 0.0
        %2255 = vmatprep.subr.mxu0 0.0
        %2256 = vmatpush1.msra.mxu0 0.0
        %2257 = vmatprep.subr.mxu0 0.0
        %2258 = vmatpush1.msra.mxu0 0.0
        %2259 = vmatprep.subr.mxu0 0.0
        %2260 = vmatpush1.msra.mxu0 0.0
        %2261 = vmatprep.subr.mxu0 0.0
        %2262 = vmatpush1.msra.mxu0 0.0
        %2263 = vmatprep.subr.mxu0 0.0
        %2264 = vmatpush1.msra.mxu0 0.0
        %2265 = vmatprep.subr.mxu0 0.0
        %2266 = vmatpush1.msra.mxu0 0.0
        %2267 = vmatprep.subr.mxu0 0.0
        %2268 = vmatpush1.msra.mxu0 0.0
        %2269 = vmatprep.subr.mxu0 0.0
        %2270 = vmatpush1.msra.mxu0 0.0
        %2271 = vmatprep.subr.mxu0 0.0
        %2272 = vmatpush1.msra.mxu0 0.0
        %2273 = vmatprep.subr.mxu0 0.0
        %2274 = vmatpush1.msra.mxu0 0.0
        %2275 = vmatprep.subr.mxu0 0.0
        %2276 = vmatpush1.msra.mxu0 0.0
        %2277 = vmatprep.subr.mxu0 0.0
        %2278 = vmatpush1.msra.mxu0 0.0
        %2279 = vmatprep.subr.mxu0 0.0
        %2280 = vmatpush1.msra.mxu0 0.0
        %2281 = vmatprep.subr.mxu0 0.0
        %2282 = vmatpush1.msra.mxu0 0.0
        %2283 = vmatprep.subr.mxu0 0.0
        %2284 = vmatpush1.msra.mxu0 0.0
        %2285 = vmatprep.mubr.f32.mxu0 0.0
        %2286 = vmatmul.mubr.f32.gmra.mrb[0].mxu0 %v1991
        %v2287 = vpop.f32.mrb[0].mxu0
        %v2288 = vadd.f32 %v2211, %v2287
        %v2289 = vpop.f32.mrb[0].mxu0
        %v2290 = vadd.f32 %v2213, %v2289
        %2291 = vmatprep.mubr.f32.mxu0 0.0
        %2292 = vmatmul.mubr.f32.gmra.mrb[0].mxu0 %v1996
        %v2293 = vpop.f32.mrb[0].mxu0
        %v2294 = vadd.f32 %v2217, %v2293
        %v2295 = vpop.f32.mrb[0].mxu0
        %v2296 = vadd.f32 %v2219, %v2295
        %2297 = vdwg.mxu0
        %2298 = vmatprep.subr.mxu0 0.0
        %2299 = vmatpush1.msra.mxu0 %v2002
        %2300 = vmatprep.subr.mxu0 0.0
        %2301 = vmatpush1.msra.mxu0 %v2005
        %2302 = vmatprep.subr.mxu0 0.0
        %2303 = vmatpush1.msra.mxu0 %v2008
        %2304 = vmatprep.subr.mxu0 0.0
        %2305 = vmatpush1.msra.mxu0 %v2011
        %2306 = vmatprep.subr.mxu0 0.0
        %2307 = vmatpush1.msra.mxu0 %v2014
        %2308 = vmatprep.subr.mxu0 0.0
        %2309 = vmatpush1.msra.mxu0 %v2017
        %2310 = vmatprep.subr.mxu0 0.0
        %2311 = vmatpush1.msra.mxu0 %v2020
        %2312 = vmatprep.subr.mxu0 0.0
        %2313 = vmatpush1.msra.mxu0 %v2023
        %2314 = vmatprep.subr.mxu0 0.0
        %2315 = vmatpush1.msra.mxu0 %v2026
        %2316 = vmatprep.subr.mxu0 0.0
        %2317 = vmatpush1.msra.mxu0 %v2029
        %2318 = vmatprep.subr.mxu0 0.0
        %2319 = vmatpush1.msra.mxu0 %v2032
        %2320 = vmatprep.subr.mxu0 0.0
        %2321 = vmatpush1.msra.mxu0 %v2035
        %2322 = vmatprep.subr.mxu0 0.0
        %2323 = vmatpush1.msra.mxu0 %v2038
        %2324 = vmatprep.subr.mxu0 0.0
        %2325 = vmatpush1.msra.mxu0 %v2041
        %2326 = vmatprep.subr.mxu0 0.0
        %2327 = vmatpush1.msra.mxu0 %v2044
        %2328 = vmatprep.subr.mxu0 0.0
        %2329 = vmatpush1.msra.mxu0 %v2047
        %2330 = vmatprep.subr.mxu0 0.0
        %2331 = vmatpush1.msra.mxu0 %v2050
        %2332 = vmatprep.subr.mxu0 0.0
        %2333 = vmatpush1.msra.mxu0 %v2053
        %2334 = vmatprep.subr.mxu0 0.0
        %2335 = vmatpush1.msra.mxu0 %v2056
        %2336 = vmatprep.subr.mxu0 0.0
        %2337 = vmatpush1.msra.mxu0 %v2059
        %2338 = vmatprep.subr.mxu0 0.0
        %2339 = vmatpush1.msra.mxu0 %v2062
        %2340 = vmatprep.subr.mxu0 0.0
        %2341 = vmatpush1.msra.mxu0 %v2065
        %2342 = vmatprep.subr.mxu0 0.0
        %2343 = vmatpush1.msra.mxu0 %v2068
        %2344 = vmatprep.subr.mxu0 0.0
        %2345 = vmatpush1.msra.mxu0 %v2071
        %2346 = vmatprep.subr.mxu0 0.0
        %2347 = vmatpush1.msra.mxu0 %v2074
        %2348 = vmatprep.subr.mxu0 0.0
        %2349 = vmatpush1.msra.mxu0 %v2077
        %2350 = vmatprep.subr.mxu0 0.0
        %2351 = vmatpush1.msra.mxu0 %v2080
        %2352 = vmatprep.subr.mxu0 0.0
        %2353 = vmatpush1.msra.mxu0 %v2083
        %2354 = vmatprep.subr.mxu0 0.0
        %2355 = vmatpush1.msra.mxu0 %v2086
        %2356 = vmatprep.subr.mxu0 0.0
        %2357 = vmatpush1.msra.mxu0 %v2089
        %2358 = vmatprep.subr.mxu0 0.0
        %2359 = vmatpush1.msra.mxu0 %v2092
        %2360 = vmatprep.subr.mxu0 0.0
        %2361 = vmatpush1.msra.mxu0 %v2095
        %2362 = vmatprep.mubr.f32.mxu0 %v1916
        %2363 = vmatmul.mubr.f32.gmra.mrb[0].mxu0 %v1914
        %v2364 = vpop.f32.mrb[0].mxu0
        %v2365 = vadd.f32 0.0, %v2364
        %v2366 = vpop.f32.mrb[0].mxu0
        %2367 = vmatprep.mubr.f32.mxu0 %v1922
        %2368 = vmatmul.mubr.f32.gmra.mrb[0].mxu0 %v1920
        %v2369 = vpop.f32.mrb[0].mxu0
        %v2370 = vadd.f32 0.0, %v2369
        %v2371 = vpop.f32.mrb[0].mxu0
        %2372 = vdwg.mxu0
        %2373 = vmatprep.subr.mxu0 0.0
        %2374 = vmatpush1.msra.mxu0 %v2098
        %2375 = vmatprep.subr.mxu0 0.0
        %2376 = vmatpush1.msra.mxu0 %v2101
        %2377 = vmatprep.subr.mxu0 0.0
        %2378 = vmatpush1.msra.mxu0 %v2104
        %2379 = vmatprep.subr.mxu0 0.0
        %2380 = vmatpush1.msra.mxu0 %v2107
        %2381 = vmatprep.subr.mxu0 0.0
        %2382 = vmatpush1.msra.mxu0 %v2110
        %2383 = vmatprep.subr.mxu0 0.0
        %2384 = vmatpush1.msra.mxu0 %v2113
        %2385 = vmatprep.subr.mxu0 0.0
        %2386 = vmatpush1.msra.mxu0 %v2116
        %2387 = vmatprep.subr.mxu0 0.0
        %2388 = vmatpush1.msra.mxu0 %v2119
        %2389 = vmatprep.subr.mxu0 0.0
        %2390 = vmatpush1.msra.mxu0 %v2122
        %2391 = vmatprep.subr.mxu0 0.0
        %2392 = vmatpush1.msra.mxu0 %v2125
        %2393 = vmatprep.subr.mxu0 0.0
        %2394 = vmatpush1.msra.mxu0 %v2128
        %2395 = vmatprep.subr.mxu0 0.0
        %2396 = vmatpush1.msra.mxu0 %v2131
        %2397 = vmatprep.subr.mxu0 0.0
        %2398 = vmatpush1.msra.mxu0 %v2134
        %2399 = vmatprep.subr.mxu0 0.0
        %2400 = vmatpush1.msra.mxu0 %v2137
        %2401 = vmatprep.subr.mxu0 0.0
        %2402 = vmatpush1.msra.mxu0 %v2140
        %2403 = vmatprep.subr.mxu0 0.0
        %2404 = vmatpush1.msra.mxu0 %v2143
        %2405 = vmatprep.subr.mxu0 0.0
        %2406 = vmatpush1.msra.mxu0 0.0
        %2407 = vmatprep.subr.mxu0 0.0
        %2408 = vmatpush1.msra.mxu0 0.0
        %2409 = vmatprep.subr.mxu0 0.0
        %2410 = vmatpush1.msra.mxu0 0.0
        %2411 = vmatprep.subr.mxu0 0.0
        %2412 = vmatpush1.msra.mxu0 0.0
        %2413 = vmatprep.subr.mxu0 0.0
        %2414 = vmatpush1.msra.mxu0 0.0
        %2415 = vmatprep.subr.mxu0 0.0
        %2416 = vmatpush1.msra.mxu0 0.0
        %2417 = vmatprep.subr.mxu0 0.0
        %2418 = vmatpush1.msra.mxu0 0.0
        %2419 = vmatprep.subr.mxu0 0.0
        %2420 = vmatpush1.msra.mxu0 0.0
        %2421 = vmatprep.subr.mxu0 0.0
        %2422 = vmatpush1.msra.mxu0 0.0
        %2423 = vmatprep.subr.mxu0 0.0
        %2424 = vmatpush1.msra.mxu0 0.0
        %2425 = vmatprep.subr.mxu0 0.0
        %2426 = vmatpush1.msra.mxu0 0.0
        %2427 = vmatprep.subr.mxu0 0.0
        %2428 = vmatpush1.msra.mxu0 0.0
        %2429 = vmatprep.subr.mxu0 0.0
        %2430 = vmatpush1.msra.mxu0 0.0
        %2431 = vmatprep.subr.mxu0 0.0
        %2432 = vmatpush1.msra.mxu0 0.0
        %2433 = vmatprep.subr.mxu0 0.0
        %2434 = vmatpush1.msra.mxu0 0.0
        %2435 = vmatprep.subr.mxu0 0.0
        %2436 = vmatpush1.msra.mxu0 0.0
        %2437 = vmatprep.mubr.f32.mxu0 0.0
        %2438 = vmatmul.mubr.f32.gmra.mrb[0].mxu0 %v1991
        %v2439 = vpop.f32.mrb[0].mxu0
        %v2440 = vadd.f32 %v2365, %v2439
        %v2441 = vpop.f32.mrb[0].mxu0
        %2442 = vmatprep.mubr.f32.mxu0 0.0
        %2443 = vmatmul.mubr.f32.gmra.mrb[0].mxu0 %v1996
        %v2444 = vpop.f32.mrb[0].mxu0
        %v2445 = vadd.f32 %v2370, %v2444
        %v2446 = vpop.f32.mrb[0].mxu0
        %2447 = vdwg.mxu0
        %v2448 = vadd.f32 %v1678, %v2288
        %v2449 = vadd.f32 %v1680, %v2290
        %v2450 = vadd.f32 %v1830, %v2440
        %v2451 = vadd.f32 %v1684, %v2294
        %v2452 = vadd.f32 %v1686, %v2296
        %v2453 = vadd.f32 %v1835, %v2445
        %v2454 = vld [vmem:[#allocation11] sm:$0x7]
        %v2456 = vlaneseq
        %v2457 = vshrl.u32 %v2456, 7
        %v2458 = vsub.s32 0, %v2457
        %v2459 = vrot.slane %v2454, %v2458
        %v2460 = vlaneseq
        %v2461 = vshrl.u32 %v2460, 7
        %v2462 = vsub.s32 1, %v2461
        %v2463 = vrot.slane %v2454, %v2462
        %v2464 = vlaneseq
        %v2465 = vshrl.u32 %v2464, 7
        %v2466 = vsub.s32 2, %v2465
        %v2467 = vrot.slane %v2454, %v2466
        %v2471 = vadd.f32 %v2448, %v2459
        %v2472 = vadd.f32 %v2449, %v2463
        %v2473 = vadd.f32 %v2450, %v2467
        %v2474 = vadd.f32 %v2451, %v2459
        %v2475 = vadd.f32 %v2452, %v2463
        %v2476 = vadd.f32 %v2453, %v2467
        %v2477 = vmax.f32 %v2471, 0.0
        %v2478 = vmax.f32 %v2472, 0.0
        %v2479 = vmax.f32 %v2473, 0.0
        %v2480 = vmax.f32 %v2474, 0.0
        %v2481 = vmax.f32 %v2475, 0.0
        %v2482 = vmax.f32 %v2476, 0.0
        %v2483 = vmin.f32 %v2477, 1.0
        %v2484 = vmin.f32 %v2478, 1.0
        %v2485 = vmin.f32 %v2479, 1.0
        %v2486 = vmin.f32 %v2480, 1.0
        %v2487 = vmin.f32 %v2481, 1.0
        %v2488 = vmin.f32 %v2482, 1.0
        %v2489 = vld [vmem:[%s6] sm:$0xff]
        %v2490 = vld [vmem:[%s6 + $0x8] sm:$0xff]
        %v2491 = vld [vmem:[%s6 + $0x10] sm:$0xff]
        %v2492 = vld [vmem:[%s6 + $0x18] sm:$0xff]
        %v2493 = vld [vmem:[%s6 + $0x20] sm:$0xff]
        %v2494 = vld [vmem:[%s6 + $0x28] sm:$0xff]
        %v2495 = vld [vmem:[%s6 + $0x30] sm:$0xff]
        %v2496 = vld [vmem:[%s6 + $0x38] sm:$0xff]
        %v2497 = vld [vmem:[%s6 + $0x40] sm:$0xff]
        %v2498 = vld [vmem:[%s6 + $0x48] sm:$0xff]
        %v2499 = vld [vmem:[%s6 + $0x50] sm:$0xff]
        %v2500 = vld [vmem:[%s6 + $0x58] sm:$0xff]
        %v2501 = vld [vmem:[%s6 + $0x60] sm:$0xff]
        %v2502 = vld [vmem:[%s6 + $0x68] sm:$0xff]
        %v2503 = vld [vmem:[%s6 + $0x70] sm:$0xff]
        %v2504 = vld [vmem:[%s6 + $0x78] sm:$0xff]
        %v2505 = vld [vmem:[%s6 + $0x80] sm:$0xff]
        %v2506 = vld [vmem:[%s6 + $0x88] sm:$0xff]
        %v2507 = vld [vmem:[%s6 + $0x90] sm:$0xff]
        %v2508 = vld [vmem:[%s6 + $0x98] sm:$0xff]
        %v2509 = vld [vmem:[%s6 + $0xa0] sm:$0xff]
        %v2510 = vld [vmem:[%s6 + $0xa8] sm:$0xff]
        %v2511 = vld [vmem:[%s6 + $0xb0] sm:$0xff]
        %v2512 = vld [vmem:[%s6 + $0xb8] sm:$0xff]
        %v2513 = vld [vmem:[%s6 + $0xc0] sm:$0xff]
        %v2514 = vld [vmem:[%s6 + $0xc8] sm:$0xff]
        %v2515 = vld [vmem:[%s6 + $0xd0] sm:$0xff]
        %v2516 = vld [vmem:[%s6 + $0xd8] sm:$0xff]
        %v2517 = vld [vmem:[%s6 + $0xe0] sm:$0xff]
        %v2518 = vld [vmem:[%s6 + $0xe8] sm:$0xff]
        %v2519 = vld [vmem:[%s6 + $0xf0] sm:$0xff]
        %v2520 = vld [vmem:[%s6 + $0xf8] sm:$0xff]
        %v2521 = vld [vmem:[%s6 + $0x100] sm:$0xff]
        %v2522 = vld [vmem:[%s6 + $0x108] sm:$0xff]
        %v2523 = vld [vmem:[%s6 + $0x110] sm:$0xff]
        %v2524 = vld [vmem:[%s6 + $0x118] sm:$0xff]
        %v2525 = vld [vmem:[%s6 + $0x120] sm:$0xff]
        %v2526 = vld [vmem:[%s6 + $0x128] sm:$0xff]
        %v2527 = vld [vmem:[%s6 + $0x130] sm:$0xff]
        %v2528 = vld [vmem:[%s6 + $0x138] sm:$0xff]
        %v2529 = vld [vmem:[%s6 + $0x140] sm:$0xff]
        %v2530 = vld [vmem:[%s6 + $0x148] sm:$0xff]
        %v2531 = vld [vmem:[%s6 + $0x150] sm:$0xff]
        %v2532 = vld [vmem:[%s6 + $0x158] sm:$0xff]
        %v2533 = vld [vmem:[%s6 + $0x160] sm:$0xff]
        %v2534 = vld [vmem:[%s6 + $0x168] sm:$0xff]
        %v2535 = vld [vmem:[%s6 + $0x170] sm:$0xff]
        %v2536 = vld [vmem:[%s6 + $0x178] sm:$0xff]
        %v2537 = vld [vmem:[#allocation13] sm:$0x1]
        %v2539 = vlaneseq
        %v2540 = vshrl.u32 %v2539, 7
        %v2541 = vsub.s32 0, %v2540
        %v2542 = vrot.slane %v2537, %v2541
        %2544 = vmatprep.subr.mxu0 0.0
        %2545 = vmatpush1.msra.mxu0 %v2489
        %2546 = vmatprep.subr.mxu0 0.0
        %2547 = vmatpush1.msra.mxu0 %v2490
        %2548 = vmatprep.subr.mxu0 0.0
        %2549 = vmatpush1.msra.mxu0 %v2491
        %2550 = vmatprep.subr.mxu0 0.0
        %2551 = vmatpush1.msra.mxu0 %v2492
        %2552 = vmatprep.subr.mxu0 0.0
        %2553 = vmatpush1.msra.mxu0 %v2493
        %2554 = vmatprep.subr.mxu0 0.0
        %2555 = vmatpush1.msra.mxu0 %v2494
        %2556 = vmatprep.subr.mxu0 0.0
        %2557 = vmatpush1.msra.mxu0 %v2495
        %2558 = vmatprep.subr.mxu0 0.0
        %2559 = vmatpush1.msra.mxu0 %v2496
        %2560 = vmatprep.subr.mxu0 0.0
        %2561 = vmatpush1.msra.mxu0 %v2497
        %2562 = vmatprep.subr.mxu0 0.0
        %2563 = vmatpush1.msra.mxu0 %v2498
        %2564 = vmatprep.subr.mxu0 0.0
        %2565 = vmatpush1.msra.mxu0 %v2499
        %2566 = vmatprep.subr.mxu0 0.0
        %2567 = vmatpush1.msra.mxu0 %v2500
        %2568 = vmatprep.subr.mxu0 0.0
        %2569 = vmatpush1.msra.mxu0 %v2501
        %2570 = vmatprep.subr.mxu0 0.0
        %2571 = vmatpush1.msra.mxu0 %v2502
        %2572 = vmatprep.subr.mxu0 0.0
        %2573 = vmatpush1.msra.mxu0 %v2503
        %2574 = vmatprep.subr.mxu0 0.0
        %2575 = vmatpush1.msra.mxu0 %v2504
        %2576 = vmatprep.subr.mxu0 0.0
        %2577 = vmatpush1.msra.mxu0 %v2505
        %2578 = vmatprep.subr.mxu0 0.0
        %2579 = vmatpush1.msra.mxu0 %v2506
        %2580 = vmatprep.subr.mxu0 0.0
        %2581 = vmatpush1.msra.mxu0 %v2507
        %2582 = vmatprep.subr.mxu0 0.0
        %2583 = vmatpush1.msra.mxu0 %v2508
        %2584 = vmatprep.subr.mxu0 0.0
        %2585 = vmatpush1.msra.mxu0 %v2509
        %2586 = vmatprep.subr.mxu0 0.0
        %2587 = vmatpush1.msra.mxu0 %v2510
        %2588 = vmatprep.subr.mxu0 0.0
        %2589 = vmatpush1.msra.mxu0 %v2511
        %2590 = vmatprep.subr.mxu0 0.0
        %2591 = vmatpush1.msra.mxu0 %v2512
        %2592 = vmatprep.subr.mxu0 0.0
        %2593 = vmatpush1.msra.mxu0 %v2513
        %2594 = vmatprep.subr.mxu0 0.0
        %2595 = vmatpush1.msra.mxu0 %v2514
        %2596 = vmatprep.subr.mxu0 0.0
        %2597 = vmatpush1.msra.mxu0 %v2515
        %2598 = vmatprep.subr.mxu0 0.0
        %2599 = vmatpush1.msra.mxu0 %v2516
        %2600 = vmatprep.subr.mxu0 0.0
        %2601 = vmatpush1.msra.mxu0 %v2517
        %2602 = vmatprep.subr.mxu0 0.0
        %2603 = vmatpush1.msra.mxu0 %v2518
        %2604 = vmatprep.subr.mxu0 0.0
        %2605 = vmatpush1.msra.mxu0 %v2519
        %2606 = vmatprep.subr.mxu0 0.0
        %2607 = vmatpush1.msra.mxu0 %v2520
        %2608 = vmatprep.mubr.f32.mxu0 %v2484
        %2609 = vmatmul.mubr.f32.gmra.mrb[0].mxu0 %v2483
        %v2610 = vpop.f32.mrb[0].mxu0
        %v2611 = vadd.f32 %v2542, %v2610
        %v2612 = vpop.f32.mrb[0].mxu0
        %2613 = vmatprep.mubr.f32.mxu0 %v2487
        %2614 = vmatmul.mubr.f32.gmra.mrb[0].mxu0 %v2486
        %v2615 = vpop.f32.mrb[0].mxu0
        %v2616 = vadd.f32 %v2542, %v2615
        %v2617 = vpop.f32.mrb[0].mxu0
        %2618 = vdwg.mxu0
        %2619 = vmatprep.subr.mxu0 0.0
        %2620 = vmatpush1.msra.mxu0 %v2521
        %2621 = vmatprep.subr.mxu0 0.0
        %2622 = vmatpush1.msra.mxu0 %v2522
        %2623 = vmatprep.subr.mxu0 0.0
        %2624 = vmatpush1.msra.mxu0 %v2523
        %2625 = vmatprep.subr.mxu0 0.0
        %2626 = vmatpush1.msra.mxu0 %v2524
        %2627 = vmatprep.subr.mxu0 0.0
        %2628 = vmatpush1.msra.mxu0 %v2525
        %2629 = vmatprep.subr.mxu0 0.0
        %2630 = vmatpush1.msra.mxu0 %v2526
        %2631 = vmatprep.subr.mxu0 0.0
        %2632 = vmatpush1.msra.mxu0 %v2527
        %2633 = vmatprep.subr.mxu0 0.0
        %2634 = vmatpush1.msra.mxu0 %v2528
        %2635 = vmatprep.subr.mxu0 0.0
        %2636 = vmatpush1.msra.mxu0 %v2529
        %2637 = vmatprep.subr.mxu0 0.0
        %2638 = vmatpush1.msra.mxu0 %v2530
        %2639 = vmatprep.subr.mxu0 0.0
        %2640 = vmatpush1.msra.mxu0 %v2531
        %2641 = vmatprep.subr.mxu0 0.0
        %2642 = vmatpush1.msra.mxu0 %v2532
        %2643 = vmatprep.subr.mxu0 0.0
        %2644 = vmatpush1.msra.mxu0 %v2533
        %2645 = vmatprep.subr.mxu0 0.0
        %2646 = vmatpush1.msra.mxu0 %v2534
        %2647 = vmatprep.subr.mxu0 0.0
        %2648 = vmatpush1.msra.mxu0 %v2535
        %2649 = vmatprep.subr.mxu0 0.0
        %2650 = vmatpush1.msra.mxu0 %v2536
        %2651 = vmatprep.subr.mxu0 0.0
        %2652 = vmatpush1.msra.mxu0 0.0
        %2653 = vmatprep.subr.mxu0 0.0
        %2654 = vmatpush1.msra.mxu0 0.0
        %2655 = vmatprep.subr.mxu0 0.0
        %2656 = vmatpush1.msra.mxu0 0.0
        %2657 = vmatprep.subr.mxu0 0.0
        %2658 = vmatpush1.msra.mxu0 0.0
        %2659 = vmatprep.subr.mxu0 0.0
        %2660 = vmatpush1.msra.mxu0 0.0
        %2661 = vmatprep.subr.mxu0 0.0
        %2662 = vmatpush1.msra.mxu0 0.0
        %2663 = vmatprep.subr.mxu0 0.0
        %2664 = vmatpush1.msra.mxu0 0.0
        %2665 = vmatprep.subr.mxu0 0.0
        %2666 = vmatpush1.msra.mxu0 0.0
        %2667 = vmatprep.subr.mxu0 0.0
        %2668 = vmatpush1.msra.mxu0 0.0
        %2669 = vmatprep.subr.mxu0 0.0
        %2670 = vmatpush1.msra.mxu0 0.0
        %2671 = vmatprep.subr.mxu0 0.0
        %2672 = vmatpush1.msra.mxu0 0.0
        %2673 = vmatprep.subr.mxu0 0.0
        %2674 = vmatpush1.msra.mxu0 0.0
        %2675 = vmatprep.subr.mxu0 0.0
        %2676 = vmatpush1.msra.mxu0 0.0
        %2677 = vmatprep.subr.mxu0 0.0
        %2678 = vmatpush1.msra.mxu0 0.0
        %2679 = vmatprep.subr.mxu0 0.0
        %2680 = vmatpush1.msra.mxu0 0.0
        %2681 = vmatprep.subr.mxu0 0.0
        %2682 = vmatpush1.msra.mxu0 0.0
        %2683 = vmatprep.mubr.f32.mxu0 0.0
        %2684 = vmatmul.mubr.f32.gmra.mrb[0].mxu0 %v2485
        %v2685 = vpop.f32.mrb[0].mxu0
        %v2686 = vadd.f32 %v2611, %v2685
        %v2687 = vpop.f32.mrb[0].mxu0
        %2688 = vmatprep.mubr.f32.mxu0 0.0
        %2689 = vmatmul.mubr.f32.gmra.mrb[0].mxu0 %v2488
        %v2690 = vpop.f32.mrb[0].mxu0
        %v2691 = vadd.f32 %v2616, %v2690
        %v2692 = vpop.f32.mrb[0].mxu0
        %2693 = vdwg.mxu0
        %v2694 = vadd.f32 %v2686, %v405
        %v2695 = vadd.f32 %v2691, %v406
        %2696 = vst.msk [vmem:[%s404] sm:$0xff] %vm448, %v2694
        %2697 = vst.msk [vmem:[%s404 + $0x8] sm:$0xff] %vm448, %v2695
        %s2698 = sand.u32 %s209, 1
        %s2699 = scalar_lea.sflag [#allocation4], %s2698
        %s2700 = sand.u32 %s209, 1
        %s2701 = smul.addr %s2700, 16
        %s2702 = scalar_lea.vmem [#allocation14], %s2701
        // Predicated region
        $region81: #{tpu_custom_call.1} parent=51 // pred_check
          %p2703 = pneg %p219
        $region82: #{tpu_custom_call.1} parent=51 // pred_check_branch
          %2705 = sbr.rel (%p2703) target = $region84
        $region83: #{tpu_custom_call.1} parent=51 // pred_region
          %s2707 = ssub.s32 256, 256
          %2708 = vsyncadd %s2699, %s2707
          %s2709 = smul.addr %s28, 2
          %s2710 = smul.addr %s2709, 128
          %s2711 = scalar_lea.hbm %s8, %s2710
          %s2712 = sshll.u32 %s2702, 4
          %s2713 = int_to_ptr.vmem [resolvable:$true] %s2712
          %2718 = dma.vmem_to_hbm [thread:$0]  %s2713, 256, %s2711, %s2699, 128, 128, 8
        $region84: #{tpu_custom_call.1} parent=51 // pred_fallthru
          _
      $region52: #{tpu_custom_call.1} parent=5 // pred_fallthru
        _
      %p2719 = scmp.le.s32.totalorder 2, %s23
      // Predicated region
      $region85: #{tpu_custom_call.1} parent=5 // pred_check
        %p2720 = pneg %p2719
      $region86: #{tpu_custom_call.1} parent=5 // pred_check_branch
        %2722 = sbr.rel (%p2720) target = $region88
      $region87: #{tpu_custom_call.1} parent=5 // pred_region
        %s2723 = ssub.s32 %s23, 2
        // Predicated region
        $region89: #{tpu_custom_call.1} parent=87 // pred_check
          %p2724 = pneg %p225
        $region90: #{tpu_custom_call.1} parent=87 // pred_check_branch
          %2726 = sbr.rel (%p2724) target = $region92
        $region91: #{tpu_custom_call.1} parent=87 // pred_region
          %s2727 = sand.u32 %s210, 1
          %s2728 = scalar_lea.sflag [#allocation4], %s2727
          %s2729 = sand.u32 %s210, 1
          %s2730 = smul.addr %s2729, 16
          %s2731 = scalar_lea.vmem [#allocation14], %s2730
          %2732 = dma.done %s2728, 256
        $region92: #{tpu_custom_call.1} parent=87 // pred_fallthru
          _
      $region88: #{tpu_custom_call.1} parent=5 // pred_fallthru
        _
    $region6: #{tpu_custom_call.1} parent=1 // loop_footer
      %s27 = sadd.s32 1, %s23
    $region7: #{tpu_custom_call.1} parent=1 // loop_footer_branch
      %22 = sbr.rel target = $region3
    $region8: #{tpu_custom_call.1} parent=1 // loop_exit
      _
    %2733 = vsyncpa [#allocation3], 1
    %s2734 = scalar_lea.sflag [#allocation3], 1
    %2735 = vsyncpa %s2734, 1
    %2736 = vsyncpa [#allocation6], 1
    %2737 = vsyncpa [#allocation9], 1
    %2738 = vsyncpa [#allocation12], 1
    %2739 = vsyncpa [#allocation4], 1
    %s2740 = scalar_lea.sflag [#allocation4], 1
    %2741 = vsyncpa %s2740, 1

</llo_original>
